<compile_context>
chip_gen: v7x
topology: tpu7x:2x2x1
jax: 0.10.0
libtpu: 0.0.40
codegen_flags: <defaults>
</compile_context>

<pallas_src>
import functools

import jax
import jax.numpy as jnp
from jax.experimental import pallas as pl
from jax.experimental.pallas import tpu as pltpu

_BT = 8  # batch tile (images per grid step); multiple of 8 keeps rows sublane-aligned


# ----------------------------------------------------------------------------
# Fused Pallas kernel
# ----------------------------------------------------------------------------
def _mnist_fused_kernel(x_ref, w1b_ref, b1_ref, w2b_ref, b2_ref,
                        sw1_ref, sh1_ref, sw2_ref, sh2_ref,
                        wfc1_ref, bfc1_ref, wfc2_ref, bfc2_ref,
                        o_ref, h1_ref, h2_ref, *, bt):
    f32 = jnp.float32

    # ---- conv1: 5x5, 1->10, as 5 banded matmuls -> (bt*24, 24*10) ----------
    c1 = jnp.zeros((bt * 24, 240), f32)
    for dy in range(5):
        xs = x_ref[:, dy:dy + 24, :].reshape(bt * 24, 28)     # rows = b*24 + oh
        c1 = c1 + jnp.dot(xs, w1b_ref[dy], preferred_element_type=f32)
    c1 = c1 + b1_ref[...]                                     # per-channel bias

    # ---- max_pool2d(., 2) then relu, via 0/1 selection matmuls -------------
    cw = jnp.maximum(jnp.dot(c1, sw1_ref[0], preferred_element_type=f32),
                     jnp.dot(c1, sw1_ref[1], preferred_element_type=f32))
    h1 = jnp.maximum(jnp.dot(sh1_ref[0], cw, preferred_element_type=f32),
                     jnp.dot(sh1_ref[1], cw, preferred_element_type=f32))
    h1 = jnp.maximum(h1, 0.0)                  # (bt*16, 120); rows 12..15 of each image = pad
    h1_ref[...] = h1.reshape(bt, 16, 120)

    # ---- conv2: 5x5, 10->20, banded matmuls on the VMEM-resident h1 --------
    # TODO(synk): conv2_drop (nn.Dropout2d) is identity in eval/inference mode.
    c2 = jnp.zeros((bt * 8, 160), f32)
    for dy in range(5):
        hs = h1_ref[:, dy:dy + 8, :].reshape(bt * 8, 120)
        c2 = c2 + jnp.dot(hs, w2b_ref[dy], preferred_element_type=f32)
    c2 = c2 + b2_ref[...]

    # ---- pool + relu ---------------------------------------------------------
    cw2 = jnp.maximum(jnp.dot(c2, sw2_ref[0], preferred_element_type=f32),
                      jnp.dot(c2, sw2_ref[1], preferred_element_type=f32))
    h2 = jnp.maximum(jnp.dot(sh2_ref[0], cw2, preferred_element_type=f32),
                     jnp.dot(sh2_ref[1], cw2, preferred_element_type=f32))
    h2 = jnp.maximum(h2, 0.0)                  # (bt*8, 80); rows 4..7 of each image = pad
    h2_ref[...] = h2.reshape(bt, 8, 80)

    # ---- fc1 (320 -> 50) + relu; torch NCHW flatten folded into the weight --
    y1 = jnp.zeros((bt, 50), f32)
    for h in range(4):
        y1 = y1 + jnp.dot(h2_ref[:, h, :], wfc1_ref[h], preferred_element_type=f32)
    y1 = jnp.maximum(y1 + bfc1_ref[...], 0.0)
    # TODO(synk): f.dropout after fc1 is identity in eval/inference mode.

    # ---- fc2 (50 -> 10) + stable log_softmax --------------------------------
    logits = jnp.dot(y1, wfc2_ref[...], preferred_element_type=f32) + bfc2_ref[...]
    m = jnp.max(logits, axis=-1, keepdims=True)
    z = logits - m
    lse = jnp.log(jnp.sum(jnp.exp(z), axis=-1, keepdims=True))
    o_ref[...] = (z - lse).astype(o_ref.dtype)


# ----------------------------------------------------------------------------
# One-time weight preparation (banded conv weights, pooling selectors, fc1 perm)
# ----------------------------------------------------------------------------
def _prep_weights(params, bt):
    f32 = jnp.float32

    # conv1 as 5 banded (28, 240) matrices: col = ow*10 + cout
    w1 = params["conv1_w"].astype(f32)                    # (10,1,5,5) [co,ci,kh,kw]
    w1p = jnp.transpose(w1[:, 0], (1, 2, 0))              # (5,5,10)   [kh,kw,co]
    iw = jnp.arange(28)[:, None]
    ow = (jnp.arange(240) // 10)[None, :]
    co = jnp.broadcast_to((jnp.arange(240) % 10)[None, :], (28, 240))
    dx = iw - ow
    w1band = jnp.where((dx >= 0) & (dx <= 4),
                       w1p[:, jnp.clip(dx, 0, 4), co], 0.0)          # (5,28,240)
    b1row = jnp.tile(params["conv1_b"].astype(f32), 24)[None, :]      # (1,240)

    # conv2 as 5 banded (120, 160): row = wi*10 + cin, col = ow*20 + cout
    w2 = params["conv2_w"].astype(f32)                    # (20,10,5,5) [co,ci,kh,kw]
    w2p = jnp.transpose(w2, (2, 3, 1, 0))                 # (5,5,10,20) [kh,kw,ci,co]
    wi = jnp.arange(120)[:, None]
    ci = jnp.broadcast_to(wi % 10, (120, 160))
    ow2 = (jnp.arange(160) // 20)[None, :]
    co2 = jnp.broadcast_to((jnp.arange(160) % 20)[None, :], (120, 160))
    dx2 = wi // 10 - ow2
    w2band = jnp.where((dx2 >= 0) & (dx2 <= 4),
                       w2p[:, jnp.clip(dx2, 0, 4), ci, co2], 0.0)     # (5,120,160)
    b2row = jnp.tile(params["conv2_b"].astype(f32), 8)[None, :]       # (1,160)

    # 0/1 selection matrices implementing the 2x2 max-pool (even/odd picks)
    def w_sel(C, OW):                                     # (2, OW*C, (OW//2)*C)
        i = jnp.arange(OW * C)
        j = jnp.arange((OW // 2) * C)
        same_c = (i[:, None] % C) == (j[None, :] % C)
        owi, pwj = i[:, None] // C, j[None, :] // C
        return jnp.stack([(same_c & (owi == 2 * pwj)).astype(f32),
                          (same_c & (owi == 2 * pwj + 1)).astype(f32)])

    def h_sel(oh_in, slab):                               # (2, bt*slab, bt*oh_in)
        ph = oh_in // 2
        r = jnp.arange(bt * slab)
        c = jnp.arange(bt * oh_in)
        p = (r % slab)[:, None]
        oh = (c % oh_in)[None, :]
        base = ((r // slab)[:, None] == (c // oh_in)[None, :]) & (p < ph)
        return jnp.stack([(base & (oh == 2 * p)).astype(f32),
                          (base & (oh == 2 * p + 1)).astype(f32)])

    sw1, sw2 = w_sel(10, 24), w_sel(20, 8)
    sh1, sh2 = h_sel(24, 16), h_sel(8, 8)

    # fc1: permute columns so our (h, w, c)-interleaved flatten matches torch's
    # NCHW x.view(-1, 320) ordering (index c*16 + h*4 + w).
    wfc1 = params["fc1_w"].astype(f32).reshape(50, 20, 4, 4)          # (o,c,h,w)
    wfc1 = jnp.transpose(wfc1, (2, 3, 1, 0)).reshape(4, 80, 50)       # (h, w*20+c, o)
    bfc1 = params["fc1_b"].astype(f32)[None, :]                       # (1,50)
    wfc2 = params["fc2_w"].astype(f32).T                              # (50,10)
    bfc2 = params["fc2_b"].astype(f32)[None, :]                       # (1,10)

    return (w1band, b1row, w2band, b2row, sw1, sh1, sw2, sh2,
            wfc1, bfc1, wfc2, bfc2)


# ----------------------------------------------------------------------------
# Wrapper
# ----------------------------------------------------------------------------
def mnist_cnn_forward(params, x_nchw):
    """Matches MnistCNN.forward in eval mode; returns (N, 10) log-probs."""
    N = x_nchw.shape[0]
    bt = _BT
    x = x_nchw.reshape(N, 28, 28).astype(jnp.float32)     # (N,1,28,28) -> (N,28,28)
    n_pad = -(-N // bt) * bt
    if n_pad != N:
        x = jnp.pad(x, ((0, n_pad - N), (0, 0), (0, 0)))

    prep = _prep_weights(params, bt)
    const3 = lambda i: (0, 0, 0)
    const2 = lambda i: (0, 0)
    weight_specs = [
        pl.BlockSpec(p.shape, const3 if p.ndim == 3 else const2) for p in prep
    ]

    out = pl.pallas_call(
        functools.partial(_mnist_fused_kernel, bt=bt),
        grid=(n_pad // bt,),
        in_specs=[pl.BlockSpec((bt, 28, 28), lambda i: (i, 0, 0))] + weight_specs,
        out_specs=pl.BlockSpec((bt, 10), lambda i: (i, 0)),
        out_shape=jax.ShapeDtypeStruct((n_pad, 10), jnp.float32),
        scratch_shapes=[pltpu.VMEM((bt, 16, 120), jnp.float32),
                        pltpu.VMEM((bt, 8, 80), jnp.float32)],
        compiler_params=pltpu.CompilerParams(
            dimension_semantics=("parallel",)),
    )(x, *prep)
    return out[:N]


# ----------------------------------------------------------------------------
# Deterministic init (PyTorch-layout shapes) + pure-JAX reference
# ----------------------------------------------------------------------------
def init_params(key):
    ks = jax.random.split(key, 8)

    def u(k, shape, fan_in):
        bound = 1.0 / jnp.sqrt(float(fan_in))
        return jax.random.uniform(k, shape, jnp.float32, -bound, bound)

    return {
        "conv1_w": u(ks[0], (10, 1, 5, 5), 25),
        "conv1_b": u(ks[1], (10,), 25),
        "conv2_w": u(ks[2], (20, 10, 5, 5), 250),
        "conv2_b": u(ks[3], (20,), 250),
        "fc1_w": u(ks[4], (50, 320), 320),
        "fc1_b": u(ks[5], (50,), 320),
        "fc2_w": u(ks[6], (10, 50), 50),
        "fc2_b": u(ks[7], (10,), 50),
    }


def _reference_forward(params, x_nchw):
    """Plain-JAX reference of MnistCNN.forward (eval mode)."""
    N = x_nchw.shape[0]
    x = x_nchw.astype(jnp.float32)

    def conv5x5(x, w, b):                     # x (N,Ci,H,W), w (Co,Ci,5,5)
        H, W = x.shape[2] - 4, x.shape[3] - 4
        acc = jnp.zeros((x.shape[0], w.shape[0], H, W), jnp.float32)
        for kh in range(5):
            for kw in range(5):
                acc = acc + jnp.einsum('nihw,oi->nohw',
                                       x[:, :, kh:kh + H, kw:kw + W],
                                       w[:, :, kh, kw])
        return acc + b[None, :, None, None]

    def pool_relu(x):
        n, c, h, w = x.shape
        x = x.reshape(n, c, h // 2, 2, w // 2, 2).max(axis=(3, 5))
        return jnp.maximum(x, 0.0)

    h = pool_relu(conv5x5(x, params["conv1_w"], params["conv1_b"]))
    h = pool_relu(conv5x5(h, params["conv2_w"], params["conv2_b"]))
    h = h.reshape(N, 320)
    h = jnp.maximum(h @ params["fc1_w"].T + params["fc1_b"], 0.0)
    logits = h @ params["fc2_w"].T + params["fc2_b"]
    return jax.nn.log_softmax(logits, axis=-1)


if __name__ == "__main__":
    key = jax.random.PRNGKey(0)
    pkey, xkey = jax.random.split(key)
    params = init_params(pkey)
    # MNIST-shaped input (28x28 is forced by fc1 in_features=320); batch=2.
    x = jax.random.normal(xkey, (2, 1, 28, 28), jnp.float32)

    out = jax.jit(mnist_cnn_forward)(params, x)
    jax.block_until_ready(out)
    assert out.shape == (2, 10)
    # log_softmax rows must exponentiate-and-sum to ~1
    assert bool(jnp.allclose(jnp.sum(jnp.exp(out), axis=1), 1.0, atol=1e-4))
    # numerics vs pure-JAX reference (tolerance covers MXU f32-pass precision)
    ref = _reference_forward(params, x)
    assert bool(jnp.allclose(out, ref, atol=3e-2, rtol=3e-2)), (
        float(jnp.max(jnp.abs(out - ref))))
    print("KERNEL_OK")
</pallas_src>

<mosaic_0001>
module attributes {stable_mosaic.version = 11 : i64} {
  func.func @_mnist_fused_kernel(%arg0: i32, %arg1: memref<8x28x28xf32, #tpu.memory_space<vmem>>, %arg2: memref<5x28x240xf32, #tpu.memory_space<vmem>>, %arg3: memref<1x240xf32, #tpu.memory_space<vmem>>, %arg4: memref<5x120x160xf32, #tpu.memory_space<vmem>>, %arg5: memref<1x160xf32, #tpu.memory_space<vmem>>, %arg6: memref<2x240x120xf32, #tpu.memory_space<vmem>>, %arg7: memref<2x128x192xf32, #tpu.memory_space<vmem>>, %arg8: memref<2x160x80xf32, #tpu.memory_space<vmem>>, %arg9: memref<2x64x64xf32, #tpu.memory_space<vmem>>, %arg10: memref<4x80x50xf32, #tpu.memory_space<vmem>>, %arg11: memref<1x50xf32, #tpu.memory_space<vmem>>, %arg12: memref<50x10xf32, #tpu.memory_space<vmem>>, %arg13: memref<1x10xf32, #tpu.memory_space<vmem>>, %arg14: memref<8x10xf32, #tpu.memory_space<vmem>>, %arg15: memref<8x16x120xf32, #tpu.memory_space<vmem>>, %arg16: memref<8x8x80xf32, #tpu.memory_space<vmem>>) attributes {dimension_semantics = [#tpu.dimension_semantics<parallel>], iteration_bounds = array<i64: 1>, scalar_prefetch = 0 : i64, scratch_operands = 2 : i64, tpu.core_type = #tpu.core_type<tc>, window_params = [{transform_indices = @transform_0, window_bounds = array<i64: 8, 28, 28>}, {pipeline_mode = #tpu.pipeline_mode<synchronous>, transform_indices = @transform_1, window_bounds = array<i64: 5, 28, 240>}, {pipeline_mode = #tpu.pipeline_mode<synchronous>, transform_indices = @transform_2, window_bounds = array<i64: 1, 240>}, {pipeline_mode = #tpu.pipeline_mode<synchronous>, transform_indices = @transform_3, window_bounds = array<i64: 5, 120, 160>}, {pipeline_mode = #tpu.pipeline_mode<synchronous>, transform_indices = @transform_4, window_bounds = array<i64: 1, 160>}, {pipeline_mode = #tpu.pipeline_mode<synchronous>, transform_indices = @transform_5, window_bounds = array<i64: 2, 240, 120>}, {pipeline_mode = #tpu.pipeline_mode<synchronous>, transform_indices = @transform_6, window_bounds = array<i64: 2, 128, 192>}, {pipeline_mode = #tpu.pipeline_mode<synchronous>, transform_indices = @transform_7, window_bounds = array<i64: 2, 160, 80>}, {pipeline_mode = #tpu.pipeline_mode<synchronous>, transform_indices = @transform_8, window_bounds = array<i64: 2, 64, 64>}, {pipeline_mode = #tpu.pipeline_mode<synchronous>, transform_indices = @transform_9, window_bounds = array<i64: 4, 80, 50>}, {pipeline_mode = #tpu.pipeline_mode<synchronous>, transform_indices = @transform_10, window_bounds = array<i64: 1, 50>}, {pipeline_mode = #tpu.pipeline_mode<synchronous>, transform_indices = @transform_11, window_bounds = array<i64: 50, 10>}, {pipeline_mode = #tpu.pipeline_mode<synchronous>, transform_indices = @transform_12, window_bounds = array<i64: 1, 10>}, {transform_indices = @transform_13, window_bounds = array<i64: 8, 10>}]} {
    %cst = arith.constant 0.000000e+00 : f32
    %0 = vector.broadcast %cst : f32 to vector<192x240xf32>
    %c0 = arith.constant 0 : index
    %c0_0 = arith.constant 0 : index
    %c0_1 = arith.constant 0 : index
    %1 = vector.load %arg1[%c0, %c0_0, %c0_1] : memref<8x28x28xf32, #tpu.memory_space<vmem>>, vector<8x24x28xf32>
    %2 = vector.shape_cast %1 : vector<8x24x28xf32> to vector<192x28xf32>
    %c0_2 = arith.constant 0 : index
    %c0_3 = arith.constant 0 : index
    %c0_4 = arith.constant 0 : index
    %3 = vector.load %arg2[%c0_2, %c0_3, %c0_4] : memref<5x28x240xf32, #tpu.memory_space<vmem>>, vector<1x28x240xf32>
    %4 = vector.shape_cast %3 : vector<1x28x240xf32> to vector<28x240xf32>
    %cst_5 = arith.constant dense<0.000000e+00> : vector<192x240xf32>
    %5 = tpu.matmul %2, %4, %cst_5 {dimension_numbers = #tpu.dot_dimension_numbers<[1], [0], [0], [1], [0, 0, 1, 1], [], []>} : vector<192x28xf32>, vector<28x240xf32>, vector<192x240xf32> -> vector<192x240xf32>
    %6 = arith.addf %0, %5 : vector<192x240xf32>
    %c0_6 = arith.constant 0 : index
    %c1 = arith.constant 1 : index
    %c0_7 = arith.constant 0 : index
    %7 = vector.load %arg1[%c0_6, %c1, %c0_7] : memref<8x28x28xf32, #tpu.memory_space<vmem>>, vector<8x24x28xf32>
    %8 = vector.shape_cast %7 : vector<8x24x28xf32> to vector<192x28xf32>
    %c1_8 = arith.constant 1 : index
    %c0_9 = arith.constant 0 : index
    %c0_10 = arith.constant 0 : index
    %9 = vector.load %arg2[%c1_8, %c0_9, %c0_10] : memref<5x28x240xf32, #tpu.memory_space<vmem>>, vector<1x28x240xf32>
    %10 = vector.shape_cast %9 : vector<1x28x240xf32> to vector<28x240xf32>
    %cst_11 = arith.constant dense<0.000000e+00> : vector<192x240xf32>
    %11 = tpu.matmul %8, %10, %cst_11 {dimension_numbers = #tpu.dot_dimension_numbers<[1], [0], [0], [1], [0, 0, 1, 1], [], []>} : vector<192x28xf32>, vector<28x240xf32>, vector<192x240xf32> -> vector<192x240xf32>
    %12 = arith.addf %6, %11 : vector<192x240xf32>
    %c0_12 = arith.constant 0 : index
    %c2 = arith.constant 2 : index
    %c0_13 = arith.constant 0 : index
    %13 = vector.load %arg1[%c0_12, %c2, %c0_13] : memref<8x28x28xf32, #tpu.memory_space<vmem>>, vector<8x24x28xf32>
    %14 = vector.shape_cast %13 : vector<8x24x28xf32> to vector<192x28xf32>
    %c2_14 = arith.constant 2 : index
    %c0_15 = arith.constant 0 : index
    %c0_16 = arith.constant 0 : index
    %15 = vector.load %arg2[%c2_14, %c0_15, %c0_16] : memref<5x28x240xf32, #tpu.memory_space<vmem>>, vector<1x28x240xf32>
    %16 = vector.shape_cast %15 : vector<1x28x240xf32> to vector<28x240xf32>
    %cst_17 = arith.constant dense<0.000000e+00> : vector<192x240xf32>
    %17 = tpu.matmul %14, %16, %cst_17 {dimension_numbers = #tpu.dot_dimension_numbers<[1], [0], [0], [1], [0, 0, 1, 1], [], []>} : vector<192x28xf32>, vector<28x240xf32>, vector<192x240xf32> -> vector<192x240xf32>
    %18 = arith.addf %12, %17 : vector<192x240xf32>
    %c0_18 = arith.constant 0 : index
    %c3 = arith.constant 3 : index
    %c0_19 = arith.constant 0 : index
    %19 = vector.load %arg1[%c0_18, %c3, %c0_19] : memref<8x28x28xf32, #tpu.memory_space<vmem>>, vector<8x24x28xf32>
    %20 = vector.shape_cast %19 : vector<8x24x28xf32> to vector<192x28xf32>
    %c3_20 = arith.constant 3 : index
    %c0_21 = arith.constant 0 : index
    %c0_22 = arith.constant 0 : index
    %21 = vector.load %arg2[%c3_20, %c0_21, %c0_22] : memref<5x28x240xf32, #tpu.memory_space<vmem>>, vector<1x28x240xf32>
    %22 = vector.shape_cast %21 : vector<1x28x240xf32> to vector<28x240xf32>
    %cst_23 = arith.constant dense<0.000000e+00> : vector<192x240xf32>
    %23 = tpu.matmul %20, %22, %cst_23 {dimension_numbers = #tpu.dot_dimension_numbers<[1], [0], [0], [1], [0, 0, 1, 1], [], []>} : vector<192x28xf32>, vector<28x240xf32>, vector<192x240xf32> -> vector<192x240xf32>
    %24 = arith.addf %18, %23 : vector<192x240xf32>
    %c0_24 = arith.constant 0 : index
    %c4 = arith.constant 4 : index
    %c0_25 = arith.constant 0 : index
    %25 = vector.load %arg1[%c0_24, %c4, %c0_25] : memref<8x28x28xf32, #tpu.memory_space<vmem>>, vector<8x24x28xf32>
    %26 = vector.shape_cast %25 : vector<8x24x28xf32> to vector<192x28xf32>
    %c4_26 = arith.constant 4 : index
    %c0_27 = arith.constant 0 : index
    %c0_28 = arith.constant 0 : index
    %27 = vector.load %arg2[%c4_26, %c0_27, %c0_28] : memref<5x28x240xf32, #tpu.memory_space<vmem>>, vector<1x28x240xf32>
    %28 = vector.shape_cast %27 : vector<1x28x240xf32> to vector<28x240xf32>
    %cst_29 = arith.constant dense<0.000000e+00> : vector<192x240xf32>
    %29 = tpu.matmul %26, %28, %cst_29 {dimension_numbers = #tpu.dot_dimension_numbers<[1], [0], [0], [1], [0, 0, 1, 1], [], []>} : vector<192x28xf32>, vector<28x240xf32>, vector<192x240xf32> -> vector<192x240xf32>
    %30 = arith.addf %24, %29 : vector<192x240xf32>
    %c0_30 = arith.constant 0 : index
    %c0_31 = arith.constant 0 : index
    %31 = vector.load %arg3[%c0_30, %c0_31] : memref<1x240xf32, #tpu.memory_space<vmem>>, vector<1x240xf32>
    %32 = vector.broadcast %31 : vector<1x240xf32> to vector<192x240xf32>
    %33 = arith.addf %30, %32 : vector<192x240xf32>
    %c0_32 = arith.constant 0 : index
    %c0_33 = arith.constant 0 : index
    %c0_34 = arith.constant 0 : index
    %34 = vector.load %arg6[%c0_32, %c0_33, %c0_34] : memref<2x240x120xf32, #tpu.memory_space<vmem>>, vector<1x240x120xf32>
    %35 = vector.shape_cast %34 : vector<1x240x120xf32> to vector<240x120xf32>
    %cst_35 = arith.constant dense<0.000000e+00> : vector<192x120xf32>
    %36 = tpu.matmul %33, %35, %cst_35 {dimension_numbers = #tpu.dot_dimension_numbers<[1], [0], [0], [1], [0, 0, 1, 1], [], []>} : vector<192x240xf32>, vector<240x120xf32>, vector<192x120xf32> -> vector<192x120xf32>
    %c1_36 = arith.constant 1 : index
    %c0_37 = arith.constant 0 : index
    %c0_38 = arith.constant 0 : index
    %37 = vector.load %arg6[%c1_36, %c0_37, %c0_38] : memref<2x240x120xf32, #tpu.memory_space<vmem>>, vector<1x240x120xf32>
    %38 = vector.shape_cast %37 : vector<1x240x120xf32> to vector<240x120xf32>
    %cst_39 = arith.constant dense<0.000000e+00> : vector<192x120xf32>
    %39 = tpu.matmul %33, %38, %cst_39 {dimension_numbers = #tpu.dot_dimension_numbers<[1], [0], [0], [1], [0, 0, 1, 1], [], []>} : vector<192x240xf32>, vector<240x120xf32>, vector<192x120xf32> -> vector<192x120xf32>
    %40 = arith.maximumf %36, %39 : vector<192x120xf32>
    %c0_40 = arith.constant 0 : index
    %c0_41 = arith.constant 0 : index
    %c0_42 = arith.constant 0 : index
    %41 = vector.load %arg7[%c0_40, %c0_41, %c0_42] : memref<2x128x192xf32, #tpu.memory_space<vmem>>, vector<1x128x192xf32>
    %42 = vector.shape_cast %41 : vector<1x128x192xf32> to vector<128x192xf32>
    %cst_43 = arith.constant dense<0.000000e+00> : vector<128x120xf32>
    %43 = tpu.matmul %42, %40, %cst_43 {dimension_numbers = #tpu.dot_dimension_numbers<[1], [0], [0], [1], [0, 0, 1, 1], [], []>} : vector<128x192xf32>, vector<192x120xf32>, vector<128x120xf32> -> vector<128x120xf32>
    %c1_44 = arith.constant 1 : index
    %c0_45 = arith.constant 0 : index
    %c0_46 = arith.constant 0 : index
    %44 = vector.load %arg7[%c1_44, %c0_45, %c0_46] : memref<2x128x192xf32, #tpu.memory_space<vmem>>, vector<1x128x192xf32>
    %45 = vector.shape_cast %44 : vector<1x128x192xf32> to vector<128x192xf32>
    %cst_47 = arith.constant dense<0.000000e+00> : vector<128x120xf32>
    %46 = tpu.matmul %45, %40, %cst_47 {dimension_numbers = #tpu.dot_dimension_numbers<[1], [0], [0], [1], [0, 0, 1, 1], [], []>} : vector<128x192xf32>, vector<192x120xf32>, vector<128x120xf32> -> vector<128x120xf32>
    %47 = arith.maximumf %43, %46 : vector<128x120xf32>
    %cst_48 = arith.constant 0.000000e+00 : f32
    %48 = vector.broadcast %cst_48 : f32 to vector<128x120xf32>
    %49 = arith.maximumf %47, %48 : vector<128x120xf32>
    %50 = vector.shape_cast %49 : vector<128x120xf32> to vector<8x16x120xf32>
    %c0_49 = arith.constant 0 : index
    %c0_50 = arith.constant 0 : index
    %c0_51 = arith.constant 0 : index
    %51 = vector.load %arg15[%c0_49, %c0_50, %c0_51] : memref<8x16x120xf32, #tpu.memory_space<vmem>>, vector<8x16x120xf32>
    tpu.vector_store %arg15[%c0_49, %c0_50, %c0_51], %50 {strides = array<i32>} : memref<8x16x120xf32, #tpu.memory_space<vmem>>, vector<8x16x120xf32>,
    %cst_52 = arith.constant 0.000000e+00 : f32
    %52 = vector.broadcast %cst_52 : f32 to vector<64x160xf32>
    %c0_53 = arith.constant 0 : index
    %c0_54 = arith.constant 0 : index
    %c0_55 = arith.constant 0 : index
    %53 = vector.load %arg15[%c0_53, %c0_54, %c0_55] : memref<8x16x120xf32, #tpu.memory_space<vmem>>, vector<8x8x120xf32>
    %54 = vector.shape_cast %53 : vector<8x8x120xf32> to vector<64x120xf32>
    %c0_56 = arith.constant 0 : index
    %c0_57 = arith.constant 0 : index
    %c0_58 = arith.constant 0 : index
    %55 = vector.load %arg4[%c0_56, %c0_57, %c0_58] : memref<5x120x160xf32, #tpu.memory_space<vmem>>, vector<1x120x160xf32>
    %56 = vector.shape_cast %55 : vector<1x120x160xf32> to vector<120x160xf32>
    %cst_59 = arith.constant dense<0.000000e+00> : vector<64x160xf32>
    %57 = tpu.matmul %54, %56, %cst_59 {dimension_numbers = #tpu.dot_dimension_numbers<[1], [0], [0], [1], [0, 0, 1, 1], [], []>} : vector<64x120xf32>, vector<120x160xf32>, vector<64x160xf32> -> vector<64x160xf32>
    %58 = arith.addf %52, %57 : vector<64x160xf32>
    %c0_60 = arith.constant 0 : index
    %c1_61 = arith.constant 1 : index
    %c0_62 = arith.constant 0 : index
    %59 = vector.load %arg15[%c0_60, %c1_61, %c0_62] : memref<8x16x120xf32, #tpu.memory_space<vmem>>, vector<8x8x120xf32>
    %60 = vector.shape_cast %59 : vector<8x8x120xf32> to vector<64x120xf32>
    %c1_63 = arith.constant 1 : index
    %c0_64 = arith.constant 0 : index
    %c0_65 = arith.constant 0 : index
    %61 = vector.load %arg4[%c1_63, %c0_64, %c0_65] : memref<5x120x160xf32, #tpu.memory_space<vmem>>, vector<1x120x160xf32>
    %62 = vector.shape_cast %61 : vector<1x120x160xf32> to vector<120x160xf32>
    %cst_66 = arith.constant dense<0.000000e+00> : vector<64x160xf32>
    %63 = tpu.matmul %60, %62, %cst_66 {dimension_numbers = #tpu.dot_dimension_numbers<[1], [0], [0], [1], [0, 0, 1, 1], [], []>} : vector<64x120xf32>, vector<120x160xf32>, vector<64x160xf32> -> vector<64x160xf32>
    %64 = arith.addf %58, %63 : vector<64x160xf32>
    %c0_67 = arith.constant 0 : index
    %c2_68 = arith.constant 2 : index
    %c0_69 = arith.constant 0 : index
    %65 = vector.load %arg15[%c0_67, %c2_68, %c0_69] : memref<8x16x120xf32, #tpu.memory_space<vmem>>, vector<8x8x120xf32>
    %66 = vector.shape_cast %65 : vector<8x8x120xf32> to vector<64x120xf32>
    %c2_70 = arith.constant 2 : index
    %c0_71 = arith.constant 0 : index
    %c0_72 = arith.constant 0 : index
    %67 = vector.load %arg4[%c2_70, %c0_71, %c0_72] : memref<5x120x160xf32, #tpu.memory_space<vmem>>, vector<1x120x160xf32>
    %68 = vector.shape_cast %67 : vector<1x120x160xf32> to vector<120x160xf32>
    %cst_73 = arith.constant dense<0.000000e+00> : vector<64x160xf32>
    %69 = tpu.matmul %66, %68, %cst_73 {dimension_numbers = #tpu.dot_dimension_numbers<[1], [0], [0], [1], [0, 0, 1, 1], [], []>} : vector<64x120xf32>, vector<120x160xf32>, vector<64x160xf32> -> vector<64x160xf32>
    %70 = arith.addf %64, %69 : vector<64x160xf32>
    %c0_74 = arith.constant 0 : index
    %c3_75 = arith.constant 3 : index
    %c0_76 = arith.constant 0 : index
    %71 = vector.load %arg15[%c0_74, %c3_75, %c0_76] : memref<8x16x120xf32, #tpu.memory_space<vmem>>, vector<8x8x120xf32>
    %72 = vector.shape_cast %71 : vector<8x8x120xf32> to vector<64x120xf32>
    %c3_77 = arith.constant 3 : index
    %c0_78 = arith.constant 0 : index
    %c0_79 = arith.constant 0 : index
    %73 = vector.load %arg4[%c3_77, %c0_78, %c0_79] : memref<5x120x160xf32, #tpu.memory_space<vmem>>, vector<1x120x160xf32>
    %74 = vector.shape_cast %73 : vector<1x120x160xf32> to vector<120x160xf32>
    %cst_80 = arith.constant dense<0.000000e+00> : vector<64x160xf32>
    %75 = tpu.matmul %72, %74, %cst_80 {dimension_numbers = #tpu.dot_dimension_numbers<[1], [0], [0], [1], [0, 0, 1, 1], [], []>} : vector<64x120xf32>, vector<120x160xf32>, vector<64x160xf32> -> vector<64x160xf32>
    %76 = arith.addf %70, %75 : vector<64x160xf32>
    %c0_81 = arith.constant 0 : index
    %c4_82 = arith.constant 4 : index
    %c0_83 = arith.constant 0 : index
    %77 = vector.load %arg15[%c0_81, %c4_82, %c0_83] : memref<8x16x120xf32, #tpu.memory_space<vmem>>, vector<8x8x120xf32>
    %78 = vector.shape_cast %77 : vector<8x8x120xf32> to vector<64x120xf32>
    %c4_84 = arith.constant 4 : index
    %c0_85 = arith.constant 0 : index
    %c0_86 = arith.constant 0 : index
    %79 = vector.load %arg4[%c4_84, %c0_85, %c0_86] : memref<5x120x160xf32, #tpu.memory_space<vmem>>, vector<1x120x160xf32>
    %80 = vector.shape_cast %79 : vector<1x120x160xf32> to vector<120x160xf32>
    %cst_87 = arith.constant dense<0.000000e+00> : vector<64x160xf32>
    %81 = tpu.matmul %78, %80, %cst_87 {dimension_numbers = #tpu.dot_dimension_numbers<[1], [0], [0], [1], [0, 0, 1, 1], [], []>} : vector<64x120xf32>, vector<120x160xf32>, vector<64x160xf32> -> vector<64x160xf32>
    %82 = arith.addf %76, %81 : vector<64x160xf32>
    %c0_88 = arith.constant 0 : index
    %c0_89 = arith.constant 0 : index
    %83 = vector.load %arg5[%c0_88, %c0_89] : memref<1x160xf32, #tpu.memory_space<vmem>>, vector<1x160xf32>
    %84 = vector.broadcast %83 : vector<1x160xf32> to vector<64x160xf32>
    %85 = arith.addf %82, %84 : vector<64x160xf32>
    %c0_90 = arith.constant 0 : index
    %c0_91 = arith.constant 0 : index
    %c0_92 = arith.constant 0 : index
    %86 = vector.load %arg8[%c0_90, %c0_91, %c0_92] : memref<2x160x80xf32, #tpu.memory_space<vmem>>, vector<1x160x80xf32>
    %87 = vector.shape_cast %86 : vector<1x160x80xf32> to vector<160x80xf32>
    %cst_93 = arith.constant dense<0.000000e+00> : vector<64x80xf32>
    %88 = tpu.matmul %85, %87, %cst_93 {dimension_numbers = #tpu.dot_dimension_numbers<[1], [0], [0], [1], [0, 0, 1, 1], [], []>} : vector<64x160xf32>, vector<160x80xf32>, vector<64x80xf32> -> vector<64x80xf32>
    %c1_94 = arith.constant 1 : index
    %c0_95 = arith.constant 0 : index
    %c0_96 = arith.constant 0 : index
    %89 = vector.load %arg8[%c1_94, %c0_95, %c0_96] : memref<2x160x80xf32, #tpu.memory_space<vmem>>, vector<1x160x80xf32>
    %90 = vector.shape_cast %89 : vector<1x160x80xf32> to vector<160x80xf32>
    %cst_97 = arith.constant dense<0.000000e+00> : vector<64x80xf32>
    %91 = tpu.matmul %85, %90, %cst_97 {dimension_numbers = #tpu.dot_dimension_numbers<[1], [0], [0], [1], [0, 0, 1, 1], [], []>} : vector<64x160xf32>, vector<160x80xf32>, vector<64x80xf32> -> vector<64x80xf32>
    %92 = arith.maximumf %88, %91 : vector<64x80xf32>
    %c0_98 = arith.constant 0 : index
    %c0_99 = arith.constant 0 : index
    %c0_100 = arith.constant 0 : index
    %93 = vector.load %arg9[%c0_98, %c0_99, %c0_100] : memref<2x64x64xf32, #tpu.memory_space<vmem>>, vector<1x64x64xf32>
    %94 = vector.shape_cast %93 : vector<1x64x64xf32> to vector<64x64xf32>
    %cst_101 = arith.constant dense<0.000000e+00> : vector<64x80xf32>
    %95 = tpu.matmul %94, %92, %cst_101 {dimension_numbers = #tpu.dot_dimension_numbers<[1], [0], [0], [1], [0, 0, 1, 1], [], []>} : vector<64x64xf32>, vector<64x80xf32>, vector<64x80xf32> -> vector<64x80xf32>
    %c1_102 = arith.constant 1 : index
    %c0_103 = arith.constant 0 : index
    %c0_104 = arith.constant 0 : index
    %96 = vector.load %arg9[%c1_102, %c0_103, %c0_104] : memref<2x64x64xf32, #tpu.memory_space<vmem>>, vector<1x64x64xf32>
    %97 = vector.shape_cast %96 : vector<1x64x64xf32> to vector<64x64xf32>
    %cst_105 = arith.constant dense<0.000000e+00> : vector<64x80xf32>
    %98 = tpu.matmul %97, %92, %cst_105 {dimension_numbers = #tpu.dot_dimension_numbers<[1], [0], [0], [1], [0, 0, 1, 1], [], []>} : vector<64x64xf32>, vector<64x80xf32>, vector<64x80xf32> -> vector<64x80xf32>
    %99 = arith.maximumf %95, %98 : vector<64x80xf32>
    %cst_106 = arith.constant 0.000000e+00 : f32
    %100 = vector.broadcast %cst_106 : f32 to vector<64x80xf32>
    %101 = arith.maximumf %99, %100 : vector<64x80xf32>
    %102 = vector.shape_cast %101 : vector<64x80xf32> to vector<8x8x80xf32>
    %c0_107 = arith.constant 0 : index
    %c0_108 = arith.constant 0 : index
    %c0_109 = arith.constant 0 : index
    %103 = vector.load %arg16[%c0_107, %c0_108, %c0_109] : memref<8x8x80xf32, #tpu.memory_space<vmem>>, vector<8x8x80xf32>
    tpu.vector_store %arg16[%c0_107, %c0_108, %c0_109], %102 {strides = array<i32>} : memref<8x8x80xf32, #tpu.memory_space<vmem>>, vector<8x8x80xf32>,
    %cst_110 = arith.constant 0.000000e+00 : f32
    %104 = vector.broadcast %cst_110 : f32 to vector<8x50xf32>
    %c0_111 = arith.constant 0 : index
    %c0_112 = arith.constant 0 : index
    %c0_113 = arith.constant 0 : index
    %105 = vector.load %arg16[%c0_111, %c0_112, %c0_113] : memref<8x8x80xf32, #tpu.memory_space<vmem>>, vector<8x1x80xf32>
    %106 = vector.shape_cast %105 : vector<8x1x80xf32> to vector<8x80xf32>
    %c0_114 = arith.constant 0 : index
    %c0_115 = arith.constant 0 : index
    %c0_116 = arith.constant 0 : index
    %107 = vector.load %arg10[%c0_114, %c0_115, %c0_116] : memref<4x80x50xf32, #tpu.memory_space<vmem>>, vector<1x80x50xf32>
    %108 = vector.shape_cast %107 : vector<1x80x50xf32> to vector<80x50xf32>
    %cst_117 = arith.constant dense<0.000000e+00> : vector<8x50xf32>
    %109 = tpu.matmul %106, %108, %cst_117 {dimension_numbers = #tpu.dot_dimension_numbers<[1], [0], [0], [1], [0, 0, 1, 1], [], []>} : vector<8x80xf32>, vector<80x50xf32>, vector<8x50xf32> -> vector<8x50xf32>
    %110 = arith.addf %104, %109 : vector<8x50xf32>
    %c0_118 = arith.constant 0 : index
    %c1_119 = arith.constant 1 : index
    %c0_120 = arith.constant 0 : index
    %111 = vector.load %arg16[%c0_118, %c1_119, %c0_120] : memref<8x8x80xf32, #tpu.memory_space<vmem>>, vector<8x1x80xf32>
    %112 = vector.shape_cast %111 : vector<8x1x80xf32> to vector<8x80xf32>
    %c1_121 = arith.constant 1 : index
    %c0_122 = arith.constant 0 : index
    %c0_123 = arith.constant 0 : index
    %113 = vector.load %arg10[%c1_121, %c0_122, %c0_123] : memref<4x80x50xf32, #tpu.memory_space<vmem>>, vector<1x80x50xf32>
    %114 = vector.shape_cast %113 : vector<1x80x50xf32> to vector<80x50xf32>
    %cst_124 = arith.constant dense<0.000000e+00> : vector<8x50xf32>
    %115 = tpu.matmul %112, %114, %cst_124 {dimension_numbers = #tpu.dot_dimension_numbers<[1], [0], [0], [1], [0, 0, 1, 1], [], []>} : vector<8x80xf32>, vector<80x50xf32>, vector<8x50xf32> -> vector<8x50xf32>
    %116 = arith.addf %110, %115 : vector<8x50xf32>
    %c0_125 = arith.constant 0 : index
    %c2_126 = arith.constant 2 : index
    %c0_127 = arith.constant 0 : index
    %117 = vector.load %arg16[%c0_125, %c2_126, %c0_127] : memref<8x8x80xf32, #tpu.memory_space<vmem>>, vector<8x1x80xf32>
    %118 = vector.shape_cast %117 : vector<8x1x80xf32> to vector<8x80xf32>
    %c2_128 = arith.constant 2 : index
    %c0_129 = arith.constant 0 : index
    %c0_130 = arith.constant 0 : index
    %119 = vector.load %arg10[%c2_128, %c0_129, %c0_130] : memref<4x80x50xf32, #tpu.memory_space<vmem>>, vector<1x80x50xf32>
    %120 = vector.shape_cast %119 : vector<1x80x50xf32> to vector<80x50xf32>
    %cst_131 = arith.constant dense<0.000000e+00> : vector<8x50xf32>
    %121 = tpu.matmul %118, %120, %cst_131 {dimension_numbers = #tpu.dot_dimension_numbers<[1], [0], [0], [1], [0, 0, 1, 1], [], []>} : vector<8x80xf32>, vector<80x50xf32>, vector<8x50xf32> -> vector<8x50xf32>
    %122 = arith.addf %116, %121 : vector<8x50xf32>
    %c0_132 = arith.constant 0 : index
    %c3_133 = arith.constant 3 : index
    %c0_134 = arith.constant 0 : index
    %123 = vector.load %arg16[%c0_132, %c3_133, %c0_134] : memref<8x8x80xf32, #tpu.memory_space<vmem>>, vector<8x1x80xf32>
    %124 = vector.shape_cast %123 : vector<8x1x80xf32> to vector<8x80xf32>
    %c3_135 = arith.constant 3 : index
    %c0_136 = arith.constant 0 : index
    %c0_137 = arith.constant 0 : index
    %125 = vector.load %arg10[%c3_135, %c0_136, %c0_137] : memref<4x80x50xf32, #tpu.memory_space<vmem>>, vector<1x80x50xf32>
    %126 = vector.shape_cast %125 : vector<1x80x50xf32> to vector<80x50xf32>
    %cst_138 = arith.constant dense<0.000000e+00> : vector<8x50xf32>
    %127 = tpu.matmul %124, %126, %cst_138 {dimension_numbers = #tpu.dot_dimension_numbers<[1], [0], [0], [1], [0, 0, 1, 1], [], []>} : vector<8x80xf32>, vector<80x50xf32>, vector<8x50xf32> -> vector<8x50xf32>
    %128 = arith.addf %122, %127 : vector<8x50xf32>
    %c0_139 = arith.constant 0 : index
    %c0_140 = arith.constant 0 : index
    %129 = vector.load %arg11[%c0_139, %c0_140] : memref<1x50xf32, #tpu.memory_space<vmem>>, vector<1x50xf32>
    %130 = vector.broadcast %129 : vector<1x50xf32> to vector<8x50xf32>
    %131 = arith.addf %128, %130 : vector<8x50xf32>
    %cst_141 = arith.constant 0.000000e+00 : f32
    %132 = vector.broadcast %cst_141 : f32 to vector<8x50xf32>
    %133 = arith.maximumf %131, %132 : vector<8x50xf32>
    %c0_142 = arith.constant 0 : index
    %c0_143 = arith.constant 0 : index
    %134 = vector.load %arg12[%c0_142, %c0_143] : memref<50x10xf32, #tpu.memory_space<vmem>>, vector<50x10xf32>
    %cst_144 = arith.constant dense<0.000000e+00> : vector<8x10xf32>
    %135 = tpu.matmul %133, %134, %cst_144 {dimension_numbers = #tpu.dot_dimension_numbers<[1], [0], [0], [1], [0, 0, 1, 1], [], []>} : vector<8x50xf32>, vector<50x10xf32>, vector<8x10xf32> -> vector<8x10xf32>
    %c0_145 = arith.constant 0 : index
    %c0_146 = arith.constant 0 : index
    %136 = vector.load %arg13[%c0_145, %c0_146] : memref<1x10xf32, #tpu.memory_space<vmem>>, vector<1x10xf32>
    %137 = vector.broadcast %136 : vector<1x10xf32> to vector<8x10xf32>
    %138 = arith.addf %135, %137 : vector<8x10xf32>
    %cst_147 = arith.constant dense<0xFF800000> : vector<8xf32>
    %139 = vector.multi_reduction <maximumf>, %138, %cst_147 [1] : vector<8x10xf32> to vector<8xf32>
    %140 = vector.shape_cast %139 : vector<8xf32> to vector<8x1xf32>
    %141 = vector.broadcast %140 : vector<8x1xf32> to vector<8x10xf32>
    %142 = arith.subf %138, %141 : vector<8x10xf32>
    %143 = math.exp %142 : vector<8x10xf32>
    %cst_148 = arith.constant dense<0.000000e+00> : vector<8xf32>
    %144 = vector.multi_reduction <add>, %143, %cst_148 [1] : vector<8x10xf32> to vector<8xf32>
    %145 = vector.shape_cast %144 : vector<8xf32> to vector<8x1xf32>
    %146 = math.log %145 : vector<8x1xf32>
    %147 = vector.broadcast %146 : vector<8x1xf32> to vector<8x10xf32>
    %148 = arith.subf %142, %147 : vector<8x10xf32>
    %c0_149 = arith.constant 0 : index
    %c0_150 = arith.constant 0 : index
    %149 = vector.load %arg14[%c0_149, %c0_150] : memref<8x10xf32, #tpu.memory_space<vmem>>, vector<8x10xf32>
    tpu.vector_store %arg14[%c0_149, %c0_150], %148 {strides = array<i32>} : memref<8x10xf32, #tpu.memory_space<vmem>>, vector<8x10xf32>,
    return
  }
  func.func @transform_0(%arg0: i32) -> (i32, i32, i32) {
    %c0_i32 = arith.constant 0 : i32
    %c0_i32_0 = arith.constant 0 : i32
    %c0_i32_1 = arith.constant 0 : i32
    return %arg0, %c0_i32, %c0_i32_0 : i32, i32, i32
  }
  func.func @transform_1(%arg0: i32) -> (i32, i32, i32) {
    %c0_i32 = arith.constant 0 : i32
    %c0_i32_0 = arith.constant 0 : i32
    %c0_i32_1 = arith.constant 0 : i32
    %c0_i32_2 = arith.constant 0 : i32
    return %c0_i32, %c0_i32_0, %c0_i32_1 : i32, i32, i32
  }
  func.func @transform_2(%arg0: i32) -> (i32, i32) {
    %c0_i32 = arith.constant 0 : i32
    %c0_i32_0 = arith.constant 0 : i32
    %c0_i32_1 = arith.constant 0 : i32
    return %c0_i32, %c0_i32_0 : i32, i32
  }
  func.func @transform_3(%arg0: i32) -> (i32, i32, i32) {
    %c0_i32 = arith.constant 0 : i32
    %c0_i32_0 = arith.constant 0 : i32
    %c0_i32_1 = arith.constant 0 : i32
    %c0_i32_2 = arith.constant 0 : i32
    return %c0_i32, %c0_i32_0, %c0_i32_1 : i32, i32, i32
  }
  func.func @transform_4(%arg0: i32) -> (i32, i32) {
    %c0_i32 = arith.constant 0 : i32
    %c0_i32_0 = arith.constant 0 : i32
    %c0_i32_1 = arith.constant 0 : i32
    return %c0_i32, %c0_i32_0 : i32, i32
  }
  func.func @transform_5(%arg0: i32) -> (i32, i32, i32) {
    %c0_i32 = arith.constant 0 : i32
    %c0_i32_0 = arith.constant 0 : i32
    %c0_i32_1 = arith.constant 0 : i32
    %c0_i32_2 = arith.constant 0 : i32
    return %c0_i32, %c0_i32_0, %c0_i32_1 : i32, i32, i32
  }
  func.func @transform_6(%arg0: i32) -> (i32, i32, i32) {
    %c0_i32 = arith.constant 0 : i32
    %c0_i32_0 = arith.constant 0 : i32
    %c0_i32_1 = arith.constant 0 : i32
    %c0_i32_2 = arith.constant 0 : i32
    return %c0_i32, %c0_i32_0, %c0_i32_1 : i32, i32, i32
  }
  func.func @transform_7(%arg0: i32) -> (i32, i32, i32) {
    %c0_i32 = arith.constant 0 : i32
    %c0_i32_0 = arith.constant 0 : i32
    %c0_i32_1 = arith.constant 0 : i32
    %c0_i32_2 = arith.constant 0 : i32
    return %c0_i32, %c0_i32_0, %c0_i32_1 : i32, i32, i32
  }
  func.func @transform_8(%arg0: i32) -> (i32, i32, i32) {
    %c0_i32 = arith.constant 0 : i32
    %c0_i32_0 = arith.constant 0 : i32
    %c0_i32_1 = arith.constant 0 : i32
    %c0_i32_2 = arith.constant 0 : i32
    return %c0_i32, %c0_i32_0, %c0_i32_1 : i32, i32, i32
  }
  func.func @transform_9(%arg0: i32) -> (i32, i32, i32) {
    %c0_i32 = arith.constant 0 : i32
    %c0_i32_0 = arith.constant 0 : i32
    %c0_i32_1 = arith.constant 0 : i32
    %c0_i32_2 = arith.constant 0 : i32
    return %c0_i32, %c0_i32_0, %c0_i32_1 : i32, i32, i32
  }
  func.func @transform_10(%arg0: i32) -> (i32, i32) {
    %c0_i32 = arith.constant 0 : i32
    %c0_i32_0 = arith.constant 0 : i32
    %c0_i32_1 = arith.constant 0 : i32
    return %c0_i32, %c0_i32_0 : i32, i32
  }
  func.func @transform_11(%arg0: i32) -> (i32, i32) {
    %c0_i32 = arith.constant 0 : i32
    %c0_i32_0 = arith.constant 0 : i32
    %c0_i32_1 = arith.constant 0 : i32
    return %c0_i32, %c0_i32_0 : i32, i32
  }
  func.func @transform_12(%arg0: i32) -> (i32, i32) {
    %c0_i32 = arith.constant 0 : i32
    %c0_i32_0 = arith.constant 0 : i32
    %c0_i32_1 = arith.constant 0 : i32
    return %c0_i32, %c0_i32_0 : i32, i32
  }
  func.func @transform_13(%arg0: i32) -> (i32, i32) {
    %c0_i32 = arith.constant 0 : i32
    %c0_i32_0 = arith.constant 0 : i32
    return %arg0, %c0_i32 : i32, i32
  }
}

</mosaic_0001>

<llo_original>
// kernel: tile.13
$region0: #{tile.13}
  #allocation2 [shape = 's32[1]{0}', space=sflag, size = 0x4, scoped, tag = 'scoped memory for tile.13']
  %s0 = inlined_call_operand.hbm [shape: f32[10], index: 0, kind: input, shape index: {}]
  %s1 = inlined_call_operand.vmem [shape: f32[24,10], index: 1, kind: output, shape index: {}]
  $region1: #{tile.13} parent=0
    #allocation0 [shape = 'u8[512]{0}', space=vmem, size = 0x400, scoped, tag = 'operand span for operand 0']
    #allocation1 [shape = 's32[1]{0}', space=sflag, size = 0x4, scoped, tag = 'scoped memory for tile.13']
    %2 = vsyncpa [#allocation1], 0
    // Predicated region
    $region2: #{tile.13} parent=1 // pred_check
      _
    $region3: #{tile.13} parent=1 // pred_check_branch
      %4 = sbr.rel (0) target = $region5
    $region4: #{tile.13} parent=1 // pred_region
      %s6 = ssub.s32 16, 16
      %7 = vsyncadd [#allocation1], %s6
      %s9 = sshll.u32 [#allocation0], 4
      %s10 = int_to_ptr.vmem [resolvable:$true] %s9
      %12 = dma.hbm_to_vmem [thread:$0]  %s0, 16, %s10, [#allocation1]
    $region5: #{tile.13} parent=1 // pred_fallthru
      _
    // Predicated region
    $region6: #{tile.13} parent=1 // pred_check
      _
    $region7: #{tile.13} parent=1 // pred_check_branch
      %14 = sbr.rel (0) target = $region9
    $region8: #{tile.13} parent=1 // pred_region
      %15 = dma.done [#allocation1], 16
    $region9: #{tile.13} parent=1 // pred_fallthru
      _
    %v16 = vld [vmem:[#allocation0] ss:$0 sm:$0xff]
    %17 = vst [vmem:[%s1] sm:$0xff] %v16
    %s18 = scalar_lea.vmem %s1, 8
    %19 = vst [vmem:[%s18] sm:$0xff] %v16
    %s20 = scalar_lea.vmem %s1, 16
    %21 = vst [vmem:[%s20] sm:$0xff] %v16
    %22 = vsyncpa [#allocation1], 1

// kernel: tile.14
$region0: #{tile.14}
  %s0 = inlined_call_operand.vmem [shape: f32[24,10], index: 0, kind: input, shape index: {}]
  %s1 = inlined_call_operand.vmem [shape: f32[1,240], index: 1, kind: output, shape index: {}]
  $region1: #{tile.14} parent=0
    #allocation0 [shape = 'u8[8192]{0}', space=vmem, size = 0x2000, scoped, tag = 'scoped mem for output reshape']
    %v2 = vld [vmem:[%s0] sm:$0x1]
    %vm3 = vcmask 80896
    %4 = vst.msk [vmem:[#allocation0] sm:$0x1] %vm3, %v2
    %s5 = scalar_lea.vmem %s0, 12
    %v6 = vld [vmem:[%s5] sm:$0x1]
    %s7 = scalar_lea.vmem %s0, 12
    %v8 = vld [vmem:[%s7] sm:$0x1]
    %vm9 = vcmask 64512
    %v10 = vsel %vm9, %v8, %v6
    %11 = vrot.lane.b32.xlu0 %v10, 120
    %v12 = vpop.permute.xlu0 %11
    %vm13 = vcmask 15360
    %s14 = scalar_lea.vmem [#allocation0], 8
    %15 = vst.msk [vmem:[%s14] sm:$0x1] %vm13, %v12
    %vm16 = vcmask 1048512
    %17 = vst.msk [vmem:[#allocation0] sm:$0x1] %vm16, %v12
    %s18 = scalar_lea.vmem %s0, 11
    %v19 = vld [vmem:[%s18] sm:$0x1]
    %20 = vrot.lane.b32.xlu0 %v19, 110
    %v21 = vpop.permute.xlu0 %20
    %vm22 = vcmask 982896
    %23 = vst.msk [vmem:[#allocation0] sm:$0x1] %vm22, %v21
    %s24 = scalar_lea.vmem %s0, 23
    %v25 = vld [vmem:[%s24] sm:$0x1]
    %26 = vrot.lane.b32.xlu0 %v25, 102
    %v27 = vpop.permute.xlu0 %26
    %vm28 = vcmask 917296
    %s29 = scalar_lea.vmem [#allocation0], 8
    %30 = vst.msk [vmem:[%s29] sm:$0x1] %vm28, %v27
    %s31 = scalar_lea.vmem %s0, 10
    %v32 = vld [vmem:[%s31] sm:$0x1]
    %33 = vrot.lane.b32.xlu0 %v32, 100
    %v34 = vpop.permute.xlu0 %33
    %vm35 = vcmask 900896
    %36 = vst.msk [vmem:[#allocation0] sm:$0x1] %vm35, %v34
    %s37 = scalar_lea.vmem %s0, 22
    %v38 = vld [vmem:[%s37] sm:$0x1]
    %39 = vrot.lane.b32.xlu0 %v38, 92
    %v40 = vpop.permute.xlu0 %39
    %vm41 = vcmask 835296
    %s42 = scalar_lea.vmem [#allocation0], 8
    %43 = vst.msk [vmem:[%s42] sm:$0x1] %vm41, %v40
    %s44 = scalar_lea.vmem %s0, 9
    %v45 = vld [vmem:[%s44] sm:$0x1]
    %46 = vrot.lane.b32.xlu0 %v45, 90
    %v47 = vpop.permute.xlu0 %46
    %vm48 = vcmask 818896
    %49 = vst.msk [vmem:[#allocation0] sm:$0x1] %vm48, %v47
    %s50 = scalar_lea.vmem %s0, 21
    %v51 = vld [vmem:[%s50] sm:$0x1]
    %52 = vrot.lane.b32.xlu0 %v51, 82
    %v53 = vpop.permute.xlu0 %52
    %vm54 = vcmask 753296
    %s55 = scalar_lea.vmem [#allocation0], 8
    %56 = vst.msk [vmem:[%s55] sm:$0x1] %vm54, %v53
    %s57 = scalar_lea.vmem %s0, 8
    %v58 = vld [vmem:[%s57] sm:$0x1]
    %59 = vrot.lane.b32.xlu0 %v58, 80
    %v60 = vpop.permute.xlu0 %59
    %vm61 = vcmask 736896
    %62 = vst.msk [vmem:[#allocation0] sm:$0x1] %vm61, %v60
    %s63 = scalar_lea.vmem %s0, 20
    %v64 = vld [vmem:[%s63] sm:$0x1]
    %65 = vrot.lane.b32.xlu0 %v64, 72
    %v66 = vpop.permute.xlu0 %65
    %vm67 = vcmask 671296
    %s68 = scalar_lea.vmem [#allocation0], 8
    %69 = vst.msk [vmem:[%s68] sm:$0x1] %vm67, %v66
    %s70 = scalar_lea.vmem %s0, 7
    %v71 = vld [vmem:[%s70] sm:$0x1]
    %72 = vrot.lane.b32.xlu0 %v71, 70
    %v73 = vpop.permute.xlu0 %72
    %vm74 = vcmask 654896
    %75 = vst.msk [vmem:[#allocation0] sm:$0x1] %vm74, %v73
    %s76 = scalar_lea.vmem %s0, 19
    %v77 = vld [vmem:[%s76] sm:$0x1]
    %78 = vrot.lane.b32.xlu0 %v77, 62
    %v79 = vpop.permute.xlu0 %78
    %vm80 = vcmask 589296
    %s81 = scalar_lea.vmem [#allocation0], 8
    %82 = vst.msk [vmem:[%s81] sm:$0x1] %vm80, %v79
    %s83 = scalar_lea.vmem %s0, 6
    %v84 = vld [vmem:[%s83] sm:$0x1]
    %85 = vrot.lane.b32.xlu0 %v84, 60
    %v86 = vpop.permute.xlu0 %85
    %vm87 = vcmask 572896
    %88 = vst.msk [vmem:[#allocation0] sm:$0x1] %vm87, %v86
    %s89 = scalar_lea.vmem %s0, 18
    %v90 = vld [vmem:[%s89] sm:$0x1]
    %91 = vrot.lane.b32.xlu0 %v90, 52
    %v92 = vpop.permute.xlu0 %91
    %vm93 = vcmask 507296
    %s94 = scalar_lea.vmem [#allocation0], 8
    %95 = vst.msk [vmem:[%s94] sm:$0x1] %vm93, %v92
    %s96 = scalar_lea.vmem %s0, 5
    %v97 = vld [vmem:[%s96] sm:$0x1]
    %98 = vrot.lane.b32.xlu0 %v97, 50
    %v99 = vpop.permute.xlu0 %98
    %vm100 = vcmask 490896
    %101 = vst.msk [vmem:[#allocation0] sm:$0x1] %vm100, %v99
    %s102 = scalar_lea.vmem %s0, 17
    %v103 = vld [vmem:[%s102] sm:$0x1]
    %104 = vrot.lane.b32.xlu0 %v103, 42
    %v105 = vpop.permute.xlu0 %104
    %vm106 = vcmask 425296
    %s107 = scalar_lea.vmem [#allocation0], 8
    %108 = vst.msk [vmem:[%s107] sm:$0x1] %vm106, %v105
    %s109 = scalar_lea.vmem %s0, 4
    %v110 = vld [vmem:[%s109] sm:$0x1]
    %111 = vrot.lane.b32.xlu0 %v110, 40
    %v112 = vpop.permute.xlu0 %111
    %vm113 = vcmask 408896
    %114 = vst.msk [vmem:[#allocation0] sm:$0x1] %vm113, %v112
    %s115 = scalar_lea.vmem %s0, 16
    %v116 = vld [vmem:[%s115] sm:$0x1]
    %117 = vrot.lane.b32.xlu0 %v116, 32
    %v118 = vpop.permute.xlu0 %117
    %vm119 = vcmask 343296
    %s120 = scalar_lea.vmem [#allocation0], 8
    %121 = vst.msk [vmem:[%s120] sm:$0x1] %vm119, %v118
    %s122 = scalar_lea.vmem %s0, 3
    %v123 = vld [vmem:[%s122] sm:$0x1]
    %124 = vrot.lane.b32.xlu0 %v123, 30
    %v125 = vpop.permute.xlu0 %124
    %vm126 = vcmask 326896
    %127 = vst.msk [vmem:[#allocation0] sm:$0x1] %vm126, %v125
    %s128 = scalar_lea.vmem %s0, 15
    %v129 = vld [vmem:[%s128] sm:$0x1]
    %130 = vrot.lane.b32.xlu0 %v129, 22
    %v131 = vpop.permute.xlu0 %130
    %vm132 = vcmask 261296
    %s133 = scalar_lea.vmem [#allocation0], 8
    %134 = vst.msk [vmem:[%s133] sm:$0x1] %vm132, %v131
    %s135 = scalar_lea.vmem %s0, 2
    %v136 = vld [vmem:[%s135] sm:$0x1]
    %137 = vrot.lane.b32.xlu0 %v136, 20
    %v138 = vpop.permute.xlu0 %137
    %vm139 = vcmask 244896
    %140 = vst.msk [vmem:[#allocation0] sm:$0x1] %vm139, %v138
    %s141 = scalar_lea.vmem %s0, 14
    %v142 = vld [vmem:[%s141] sm:$0x1]
    %143 = vrot.lane.b32.xlu0 %v142, 12
    %v144 = vpop.permute.xlu0 %143
    %vm145 = vcmask 179296
    %s146 = scalar_lea.vmem [#allocation0], 8
    %147 = vst.msk [vmem:[%s146] sm:$0x1] %vm145, %v144
    %s148 = scalar_lea.vmem %s0, 1
    %v149 = vld [vmem:[%s148] sm:$0x1]
    %150 = vrot.lane.b32.xlu0 %v149, 10
    %v151 = vpop.permute.xlu0 %150
    %vm152 = vcmask 162896
    %153 = vst.msk [vmem:[#allocation0] sm:$0x1] %vm152, %v151
    %s154 = scalar_lea.vmem %s0, 13
    %v155 = vld [vmem:[%s154] sm:$0x1]
    %156 = vrot.lane.b32.xlu0 %v155, 2
    %v157 = vpop.permute.xlu0 %156
    %vm158 = vcmask 97296
    %s159 = scalar_lea.vmem [#allocation0], 8
    %160 = vst.msk [vmem:[%s159] sm:$0x1] %vm158, %v157
    %s162 = sshllo.u32 0, 1
    %v164 = vld [vmem:[#allocation0] sm:%s162]
    %s165 = sshllo.u32 0, 1
    %166 = vst [vmem:[%s1] sm:%s165] %v164
    %s167 = scalar_lea.vmem [#allocation0], 8
    %v168 = vld [vmem:[%s167] sm:%s162]
    %s169 = sshllo.u32 0, 1
    %s170 = scalar_lea.vmem %s1, 1
    %171 = vst [vmem:[%s170] sm:%s169] %v168

// kernel: tile.18
$region0: #{tile.18}
  #allocation0 [shape = 's32[1]{0}', space=sflag, size = 0x4, scoped, tag = 'scoped memory for tile.18']
  %s0 = inlined_call_operand.vmem [shape: f32[20], index: 0, kind: input, shape index: {}]
  %s1 = inlined_call_operand.vmem [shape: f32[8,20], index: 1, kind: output, shape index: {}]
  // Predicated region
  $region2: #{tile.18} parent=0 // pred_check
    _
  $region3: #{tile.18} parent=0 // pred_check_branch
    %3 = sbr.rel (0) target = $region5
  $region4: #{tile.18} parent=0 // pred_region
    _
  $region5: #{tile.18} parent=0 // pred_fallthru
    _
  %v4 = vld [vmem:[%s0] ss:$0 sm:$0xff]
  %5 = vst [vmem:[%s1] sm:$0xff] %v4

// kernel: tile.19
$region0: #{tile.19}
  %s0 = inlined_call_operand.vmem [shape: f32[8,20], index: 0, kind: input, shape index: {}]
  %s1 = inlined_call_operand.vmem [shape: f32[1,160], index: 1, kind: output, shape index: {}]
  $region1: #{tile.19} parent=0
    #allocation0 [shape = 'u8[8192]{0}', space=vmem, size = 0x2000, scoped, tag = 'scoped mem for output reshape']
    %v2 = vld [vmem:[%s0] sm:$0x1]
    %vm3 = vcmask 162816
    %4 = vst.msk [vmem:[#allocation0] sm:$0x1] %vm3, %v2
    %s5 = scalar_lea.vmem %s0, 6
    %v6 = vld [vmem:[%s5] sm:$0x1]
    %s7 = scalar_lea.vmem %s0, 6
    %v8 = vld [vmem:[%s7] sm:$0x1]
    %vm9 = vcmask 64512
    %v10 = vsel %vm9, %v8, %v6
    %11 = vrot.lane.b32.xlu0 %v10, 120
    %v12 = vpop.permute.xlu0 %11
    %vm13 = vcmask 97280
    %s14 = scalar_lea.vmem [#allocation0], 8
    %15 = vst.msk [vmem:[%s14] sm:$0x1] %vm13, %v12
    %vm16 = vcmask 1048512
    %17 = vst.msk [vmem:[#allocation0] sm:$0x1] %vm16, %v12
    %s18 = scalar_lea.vmem %s0, 5
    %v19 = vld [vmem:[%s18] sm:$0x1]
    %20 = vrot.lane.b32.xlu0 %v19, 100
    %v21 = vpop.permute.xlu0 %20
    %vm22 = vcmask 982816
    %23 = vst.msk [vmem:[#allocation0] sm:$0x1] %vm22, %v21
    %s24 = scalar_lea.vmem %s0, 4
    %v25 = vld [vmem:[%s24] sm:$0x1]
    %26 = vrot.lane.b32.xlu0 %v25, 80
    %v27 = vpop.permute.xlu0 %26
    %vm28 = vcmask 818816
    %29 = vst.msk [vmem:[#allocation0] sm:$0x1] %vm28, %v27
    %s30 = scalar_lea.vmem %s0, 3
    %v31 = vld [vmem:[%s30] sm:$0x1]
    %32 = vrot.lane.b32.xlu0 %v31, 60
    %v33 = vpop.permute.xlu0 %32
    %vm34 = vcmask 654816
    %35 = vst.msk [vmem:[#allocation0] sm:$0x1] %vm34, %v33
    %s36 = scalar_lea.vmem %s0, 2
    %v37 = vld [vmem:[%s36] sm:$0x1]
    %38 = vrot.lane.b32.xlu0 %v37, 40
    %v39 = vpop.permute.xlu0 %38
    %vm40 = vcmask 490816
    %41 = vst.msk [vmem:[#allocation0] sm:$0x1] %vm40, %v39
    %s42 = scalar_lea.vmem %s0, 1
    %v43 = vld [vmem:[%s42] sm:$0x1]
    %44 = vrot.lane.b32.xlu0 %v43, 20
    %v45 = vpop.permute.xlu0 %44
    %vm46 = vcmask 326816
    %47 = vst.msk [vmem:[#allocation0] sm:$0x1] %vm46, %v45
    %s48 = scalar_lea.vmem %s0, 7
    %v49 = vld [vmem:[%s48] sm:$0x1]
    %50 = vrot.lane.b32.xlu0 %v49, 12
    %v51 = vpop.permute.xlu0 %50
    %vm52 = vcmask 261216
    %s53 = scalar_lea.vmem [#allocation0], 8
    %54 = vst.msk [vmem:[%s53] sm:$0x1] %vm52, %v51
    %s56 = sshllo.u32 0, 1
    %v58 = vld [vmem:[#allocation0] sm:%s56]
    %s59 = sshllo.u32 0, 1
    %60 = vst [vmem:[%s1] sm:%s59] %v58
    %s61 = scalar_lea.vmem [#allocation0], 8
    %v62 = vld [vmem:[%s61] sm:%s56]
    %s63 = sshllo.u32 0, 1
    %s64 = scalar_lea.vmem %s1, 1
    %65 = vst [vmem:[%s64] sm:%s63] %v62

// kernel: mnist_cnn_forward.1
$region0: #{mnist_cnn_forward.1}
  #allocation0 [shape = 'u32[]', space=smem, size = 0x4, offset = 0x4, fixed_abs, tag = 'smem constant byte address 0x4 - core index']
  #allocation1 [shape = 'u32[144,128]{1,0:T(1,128)}', space=vmem, size = 0x12000, scoped, tag = 'internal scratch']
  #allocation2 [shape = 'f32[8,16,120]{2,1,0:T(8,128)}', space=vmem, size = 0x10000, scoped, tag = 'scratch operand']
  #allocation3 [shape = 'f32[8,8,80]{2,1,0:T(8,128)}', space=vmem, size = 0x8000, scoped, tag = 'scratch operand']
  %s0 = inlined_call_operand.vmem [shape: f32[8,28,28], index: 0, kind: input, shape index: {}]
  %s1 = inlined_call_operand.vmem [shape: f32[5,28,240], index: 1, kind: input, shape index: {}]
  %s2 = inlined_call_operand.vmem [shape: f32[1,240], index: 2, kind: input, shape index: {}]
  %s3 = inlined_call_operand.vmem [shape: f32[5,120,160], index: 3, kind: input, shape index: {}]
  %s4 = inlined_call_operand.vmem [shape: f32[1,160], index: 4, kind: input, shape index: {}]
  %s5 = inlined_call_operand.vmem [shape: f32[2,240,120], index: 5, kind: input, shape index: {}]
  %s6 = inlined_call_operand.vmem [shape: f32[2,128,192], index: 6, kind: input, shape index: {}]
  %s7 = inlined_call_operand.vmem [shape: f32[2,160,80], index: 7, kind: input, shape index: {}]
  %s8 = inlined_call_operand.vmem [shape: f32[2,64,64], index: 8, kind: input, shape index: {}]
  %s9 = inlined_call_operand.vmem [shape: f32[4,80,50], index: 9, kind: input, shape index: {}]
  %s10 = inlined_call_operand.vmem [shape: f32[1,50], index: 10, kind: input, shape index: {}]
  %s11 = inlined_call_operand.vmem [shape: f32[50,10], index: 11, kind: input, shape index: {}]
  %s12 = inlined_call_operand.vmem [shape: f32[1,10], index: 12, kind: input, shape index: {}]
  %s13 = inlined_call_operand.vmem [shape: f32[8,10], index: 13, kind: output, shape index: {}]
  %s14 = sld [smem:[#allocation0]]
  $region62: #{mnist_cnn_forward.1} parent=0
    _
  %s16 = ssub.s32 1, %s14
  %s17 = scalar_select 0, %s16, %s14
  // Predicated region
  $region2: #{mnist_cnn_forward.1} parent=0 // pred_check
    _
  $region3: #{mnist_cnn_forward.1} parent=0 // pred_check_branch
    %19 = sbr.rel (0) target = $region5
  $region4: #{mnist_cnn_forward.1} parent=0 // pred_region
    _
  $region5: #{mnist_cnn_forward.1} parent=0 // pred_fallthru
    _
  // Predicated region
  $region6: #{mnist_cnn_forward.1} parent=0 // pred_check
    _
  $region7: #{mnist_cnn_forward.1} parent=0 // pred_check_branch
    %21 = sbr.rel (0) target = $region9
  $region8: #{mnist_cnn_forward.1} parent=0 // pred_region
    _
  $region9: #{mnist_cnn_forward.1} parent=0 // pred_fallthru
    _
  // Predicated region
  $region10: #{mnist_cnn_forward.1} parent=0 // pred_check
    _
  $region11: #{mnist_cnn_forward.1} parent=0 // pred_check_branch
    %23 = sbr.rel (0) target = $region13
  $region12: #{mnist_cnn_forward.1} parent=0 // pred_region
    _
  $region13: #{mnist_cnn_forward.1} parent=0 // pred_fallthru
    _
  // Predicated region
  $region14: #{mnist_cnn_forward.1} parent=0 // pred_check
    _
  $region15: #{mnist_cnn_forward.1} parent=0 // pred_check_branch
    %25 = sbr.rel (0) target = $region17
  $region16: #{mnist_cnn_forward.1} parent=0 // pred_region
    _
  $region17: #{mnist_cnn_forward.1} parent=0 // pred_fallthru
    _
  // Predicated region
  $region18: #{mnist_cnn_forward.1} parent=0 // pred_check
    _
  $region19: #{mnist_cnn_forward.1} parent=0 // pred_check_branch
    %27 = sbr.rel (0) target = $region21
  $region20: #{mnist_cnn_forward.1} parent=0 // pred_region
    _
  $region21: #{mnist_cnn_forward.1} parent=0 // pred_fallthru
    _
  // Predicated region
  $region22: #{mnist_cnn_forward.1} parent=0 // pred_check
    _
  $region23: #{mnist_cnn_forward.1} parent=0 // pred_check_branch
    %29 = sbr.rel (0) target = $region25
  $region24: #{mnist_cnn_forward.1} parent=0 // pred_region
    _
  $region25: #{mnist_cnn_forward.1} parent=0 // pred_fallthru
    _
  // Predicated region
  $region26: #{mnist_cnn_forward.1} parent=0 // pred_check
    _
  $region27: #{mnist_cnn_forward.1} parent=0 // pred_check_branch
    %31 = sbr.rel (0) target = $region29
  $region28: #{mnist_cnn_forward.1} parent=0 // pred_region
    _
  $region29: #{mnist_cnn_forward.1} parent=0 // pred_fallthru
    _
  // Predicated region
  $region30: #{mnist_cnn_forward.1} parent=0 // pred_check
    _
  $region31: #{mnist_cnn_forward.1} parent=0 // pred_check_branch
    %33 = sbr.rel (0) target = $region33
  $region32: #{mnist_cnn_forward.1} parent=0 // pred_region
    _
  $region33: #{mnist_cnn_forward.1} parent=0 // pred_fallthru
    _
  // Predicated region
  $region34: #{mnist_cnn_forward.1} parent=0 // pred_check
    _
  $region35: #{mnist_cnn_forward.1} parent=0 // pred_check_branch
    %35 = sbr.rel (0) target = $region37
  $region36: #{mnist_cnn_forward.1} parent=0 // pred_region
    _
  $region37: #{mnist_cnn_forward.1} parent=0 // pred_fallthru
    _
  // Predicated region
  $region38: #{mnist_cnn_forward.1} parent=0 // pred_check
    _
  $region39: #{mnist_cnn_forward.1} parent=0 // pred_check_branch
    %37 = sbr.rel (0) target = $region41
  $region40: #{mnist_cnn_forward.1} parent=0 // pred_region
    _
  $region41: #{mnist_cnn_forward.1} parent=0 // pred_fallthru
    _
  // Predicated region
  $region42: #{mnist_cnn_forward.1} parent=0 // pred_check
    _
  $region43: #{mnist_cnn_forward.1} parent=0 // pred_check_branch
    %39 = sbr.rel (0) target = $region45
  $region44: #{mnist_cnn_forward.1} parent=0 // pred_region
    _
  $region45: #{mnist_cnn_forward.1} parent=0 // pred_fallthru
    _
  // Predicated region
  $region46: #{mnist_cnn_forward.1} parent=0 // pred_check
    _
  $region47: #{mnist_cnn_forward.1} parent=0 // pred_check_branch
    %41 = sbr.rel (0) target = $region49
  $region48: #{mnist_cnn_forward.1} parent=0 // pred_region
    _
  $region49: #{mnist_cnn_forward.1} parent=0 // pred_fallthru
    _
  // Predicated region
  $region50: #{mnist_cnn_forward.1} parent=0 // pred_check
    _
  $region51: #{mnist_cnn_forward.1} parent=0 // pred_check_branch
    %43 = sbr.rel (0) target = $region53
  $region52: #{mnist_cnn_forward.1} parent=0 // pred_region
    _
  $region53: #{mnist_cnn_forward.1} parent=0 // pred_fallthru
    _
  %v44 = vld [vmem:[%s0] sm:$0xff]
  %v45 = vld [vmem:[%s0 + $0x8] sm:$0xff]
  %v46 = vld [vmem:[%s0 + $0x10] sm:$0xff]
  %v47 = vld [vmem:[%s0 + $0x20] sm:$0xff]
  %v48 = vld [vmem:[%s0 + $0x28] sm:$0xff]
  %v49 = vld [vmem:[%s0 + $0x30] sm:$0xff]
  %v50 = vld [vmem:[%s0 + $0x40] sm:$0xff]
  %v51 = vld [vmem:[%s0 + $0x48] sm:$0xff]
  %v52 = vld [vmem:[%s0 + $0x50] sm:$0xff]
  %v53 = vld [vmem:[%s0 + $0x60] sm:$0xff]
  %v54 = vld [vmem:[%s0 + $0x68] sm:$0xff]
  %v55 = vld [vmem:[%s0 + $0x70] sm:$0xff]
  %v56 = vld [vmem:[%s0 + $0x80] sm:$0xff]
  %v57 = vld [vmem:[%s0 + $0x88] sm:$0xff]
  %v58 = vld [vmem:[%s0 + $0x90] sm:$0xff]
  %v59 = vld [vmem:[%s0 + $0xa0] sm:$0xff]
  %v60 = vld [vmem:[%s0 + $0xa8] sm:$0xff]
  %v61 = vld [vmem:[%s0 + $0xb0] sm:$0xff]
  %v62 = vld [vmem:[%s0 + $0xc0] sm:$0xff]
  %v63 = vld [vmem:[%s0 + $0xc8] sm:$0xff]
  %v64 = vld [vmem:[%s0 + $0xd0] sm:$0xff]
  %v65 = vld [vmem:[%s0 + $0xe0] sm:$0xff]
  %v66 = vld [vmem:[%s0 + $0xe8] sm:$0xff]
  %v67 = vld [vmem:[%s0 + $0xf0] sm:$0xff]
  %v68 = vld [vmem:[%s1] sm:$0xff]
  %v69 = vld [vmem:[%s1 + $0x8] sm:$0xff]
  %v70 = vld [vmem:[%s1 + $0x10] sm:$0xff]
  %v71 = vld [vmem:[%s1 + $0x18] sm:$0xff]
  %v72 = vld [vmem:[%s1 + $0x20] sm:$0xff]
  %v73 = vld [vmem:[%s1 + $0x28] sm:$0xff]
  %v74 = vld [vmem:[%s1 + $0x30] sm:$0xf]
  %v75 = vld [vmem:[%s1 + $0x38] sm:$0xf]
  %v76 = vld [vmem:[%s0 + $0x1] sm:$0xff]
  %v77 = vld [vmem:[%s0 + $0x9] sm:$0xff]
  %v78 = vld [vmem:[%s0 + $0x11] sm:$0xff]
  %v79 = vld [vmem:[%s0 + $0x21] sm:$0xff]
  %v80 = vld [vmem:[%s0 + $0x29] sm:$0xff]
  %v81 = vld [vmem:[%s0 + $0x31] sm:$0xff]
  %v82 = vld [vmem:[%s0 + $0x41] sm:$0xff]
  %v83 = vld [vmem:[%s0 + $0x49] sm:$0xff]
  %v84 = vld [vmem:[%s0 + $0x51] sm:$0xff]
  %v85 = vld [vmem:[%s0 + $0x61] sm:$0xff]
  %v86 = vld [vmem:[%s0 + $0x69] sm:$0xff]
  %v87 = vld [vmem:[%s0 + $0x71] sm:$0xff]
  %v88 = vld [vmem:[%s0 + $0x81] sm:$0xff]
  %v89 = vld [vmem:[%s0 + $0x89] sm:$0xff]
  %v90 = vld [vmem:[%s0 + $0x91] sm:$0xff]
  %v91 = vld [vmem:[%s0 + $0xa1] sm:$0xff]
  %v92 = vld [vmem:[%s0 + $0xa9] sm:$0xff]
  %v93 = vld [vmem:[%s0 + $0xb1] sm:$0xff]
  %v94 = vld [vmem:[%s0 + $0xc1] sm:$0xff]
  %v95 = vld [vmem:[%s0 + $0xc9] sm:$0xff]
  %v96 = vld [vmem:[%s0 + $0xd1] sm:$0xff]
  %v97 = vld [vmem:[%s0 + $0xe1] sm:$0xff]
  %v98 = vld [vmem:[%s0 + $0xe9] sm:$0xff]
  %v99 = vld [vmem:[%s0 + $0xf1] sm:$0xff]
  %s100 = scalar_lea.vmem %s1, 64
  %v101 = vld [vmem:[%s100] sm:$0xff]
  %v102 = vld [vmem:[%s100 + $0x8] sm:$0xff]
  %v103 = vld [vmem:[%s100 + $0x10] sm:$0xff]
  %v104 = vld [vmem:[%s100 + $0x18] sm:$0xff]
  %v105 = vld [vmem:[%s100 + $0x20] sm:$0xff]
  %v106 = vld [vmem:[%s100 + $0x28] sm:$0xff]
  %v107 = vld [vmem:[%s100 + $0x30] sm:$0xf]
  %v108 = vld [vmem:[%s100 + $0x38] sm:$0xf]
  %vm109 = vcmask 228352
  %v111 = vsel %vm109, %v76, 0
  %v114 = vsel %vm109, %v77, 0
  %v117 = vsel %vm109, %v78, 0
  %v120 = vsel %vm109, %v79, 0
  %v123 = vsel %vm109, %v80, 0
  %v126 = vsel %vm109, %v81, 0
  %v129 = vsel %vm109, %v82, 0
  %v132 = vsel %vm109, %v83, 0
  %v135 = vsel %vm109, %v84, 0
  %v138 = vsel %vm109, %v85, 0
  %v141 = vsel %vm109, %v86, 0
  %v144 = vsel %vm109, %v87, 0
  %v147 = vsel %vm109, %v88, 0
  %v150 = vsel %vm109, %v89, 0
  %v153 = vsel %vm109, %v90, 0
  %v156 = vsel %vm109, %v91, 0
  %v159 = vsel %vm109, %v92, 0
  %v162 = vsel %vm109, %v93, 0
  %v165 = vsel %vm109, %v94, 0
  %v168 = vsel %vm109, %v95, 0
  %v171 = vsel %vm109, %v96, 0
  %v174 = vsel %vm109, %v97, 0
  %v177 = vsel %vm109, %v98, 0
  %v180 = vsel %vm109, %v99, 0
  %vm182 = vcmask 1043456
  %v184 = vsel %vm182, %v107, 0
  %v187 = vsel %vm182, %v108, 0
  %189 = vmatprep.subr.mxu0 %v102
  %190 = vmatpush1.msra.mxu0 %v101
  %191 = vmatprep.subr.mxu0 %v104
  %192 = vmatpush1.msra.mxu0 %v103
  %193 = vmatprep.subr.mxu0 %v106
  %194 = vmatpush1.msra.mxu0 %v105
  %195 = vmatprep.subr.mxu0 %v187
  %196 = vmatpush1.msra.mxu0 %v184
  %197 = vmatprep.subr.mxu0 0.0
  %198 = vmatpush1.msra.mxu0 0.0
  %199 = vmatprep.subr.mxu0 0.0
  %200 = vmatpush1.msra.mxu0 0.0
  %201 = vmatprep.subr.mxu0 0.0
  %202 = vmatpush1.msra.mxu0 0.0
  %203 = vmatprep.subr.mxu0 0.0
  %204 = vmatpush1.msra.mxu0 0.0
  %205 = vmatprep.subr.mxu0 0.0
  %206 = vmatpush1.msra.mxu0 0.0
  %207 = vmatprep.subr.mxu0 0.0
  %208 = vmatpush1.msra.mxu0 0.0
  %209 = vmatprep.subr.mxu0 0.0
  %210 = vmatpush1.msra.mxu0 0.0
  %211 = vmatprep.subr.mxu0 0.0
  %212 = vmatpush1.msra.mxu0 0.0
  %213 = vmatprep.subr.mxu0 0.0
  %214 = vmatpush1.msra.mxu0 0.0
  %215 = vmatprep.subr.mxu0 0.0
  %216 = vmatpush1.msra.mxu0 0.0
  %217 = vmatprep.subr.mxu0 0.0
  %218 = vmatpush1.msra.mxu0 0.0
  %219 = vmatprep.subr.mxu0 0.0
  %220 = vmatpush1.msra.mxu0 0.0
  %221 = vmatprep.subr.mxu0 0.0
  %222 = vmatpush1.msra.mxu0 0.0
  %223 = vmatprep.subr.mxu0 0.0
  %224 = vmatpush1.msra.mxu0 0.0
  %225 = vmatprep.subr.mxu0 0.0
  %226 = vmatpush1.msra.mxu0 0.0
  %227 = vmatprep.subr.mxu0 0.0
  %228 = vmatpush1.msra.mxu0 0.0
  %229 = vmatprep.subr.mxu0 0.0
  %230 = vmatpush1.msra.mxu0 0.0
  %231 = vmatprep.subr.mxu0 0.0
  %232 = vmatpush1.msra.mxu0 0.0
  %233 = vmatprep.subr.mxu0 0.0
  %234 = vmatpush1.msra.mxu0 0.0
  %235 = vmatprep.subr.mxu0 0.0
  %236 = vmatpush1.msra.mxu0 0.0
  %237 = vmatprep.subr.mxu0 0.0
  %238 = vmatpush1.msra.mxu0 0.0
  %239 = vmatprep.subr.mxu0 0.0
  %240 = vmatpush1.msra.mxu0 0.0
  %241 = vmatprep.subr.mxu0 0.0
  %242 = vmatpush1.msra.mxu0 0.0
  %243 = vmatprep.subr.mxu0 0.0
  %244 = vmatpush1.msra.mxu0 0.0
  %245 = vmatprep.subr.mxu0 0.0
  %246 = vmatpush1.msra.mxu0 0.0
  %247 = vmatprep.subr.mxu0 0.0
  %248 = vmatpush1.msra.mxu0 0.0
  %249 = vmatprep.subr.mxu0 0.0
  %250 = vmatpush1.msra.mxu0 0.0
  %251 = vmatprep.subr.mxu0 0.0
  %252 = vmatpush1.msra.mxu0 0.0
  %253 = vmatprep.mubr.f32.mxu0 0.0
  %254 = vmatmul.mubr.f32.gmra.mrb[0].mxu0 %v111
  %v255 = vpop.f32.mrb[0].mxu0
  %v256 = vadd.f32 0.0, %v255
  %v257 = vpop.f32.mrb[0].mxu0
  %v258 = vadd.f32 0.0, %v257
  %259 = vmatprep.mubr.f32.mxu0 0.0
  %260 = vmatmul.mubr.f32.gmra.mrb[0].mxu0 %v114
  %v261 = vpop.f32.mrb[0].mxu0
  %v262 = vadd.f32 0.0, %v261
  %v263 = vpop.f32.mrb[0].mxu0
  %v264 = vadd.f32 0.0, %v263
  %265 = vmatprep.mubr.f32.mxu0 0.0
  %266 = vmatmul.mubr.f32.gmra.mrb[0].mxu0 %v117
  %v267 = vpop.f32.mrb[0].mxu0
  %v268 = vadd.f32 0.0, %v267
  %v269 = vpop.f32.mrb[0].mxu0
  %v270 = vadd.f32 0.0, %v269
  %271 = vmatprep.mubr.f32.mxu0 0.0
  %272 = vmatmul.mubr.f32.gmra.mrb[0].mxu0 %v120
  %v273 = vpop.f32.mrb[0].mxu0
  %v274 = vadd.f32 0.0, %v273
  %v275 = vpop.f32.mrb[0].mxu0
  %v276 = vadd.f32 0.0, %v275
  %277 = vmatprep.mubr.f32.mxu0 0.0
  %278 = vmatmul.mubr.f32.gmra.mrb[0].mxu0 %v123
  %v279 = vpop.f32.mrb[0].mxu0
  %v280 = vadd.f32 0.0, %v279
  %v281 = vpop.f32.mrb[0].mxu0
  %v282 = vadd.f32 0.0, %v281
  %283 = vmatprep.mubr.f32.mxu0 0.0
  %284 = vmatmul.mubr.f32.gmra.mrb[0].mxu0 %v126
  %v285 = vpop.f32.mrb[0].mxu0
  %v286 = vadd.f32 0.0, %v285
  %v287 = vpop.f32.mrb[0].mxu0
  %v288 = vadd.f32 0.0, %v287
  %289 = vmatprep.mubr.f32.mxu0 0.0
  %290 = vmatmul.mubr.f32.gmra.mrb[0].mxu0 %v129
  %v291 = vpop.f32.mrb[0].mxu0
  %v292 = vadd.f32 0.0, %v291
  %v293 = vpop.f32.mrb[0].mxu0
  %v294 = vadd.f32 0.0, %v293
  %295 = vmatprep.mubr.f32.mxu0 0.0
  %296 = vmatmul.mubr.f32.gmra.mrb[0].mxu0 %v132
  %v297 = vpop.f32.mrb[0].mxu0
  %v298 = vadd.f32 0.0, %v297
  %v299 = vpop.f32.mrb[0].mxu0
  %v300 = vadd.f32 0.0, %v299
  %301 = vmatprep.mubr.f32.mxu0 0.0
  %302 = vmatmul.mubr.f32.gmra.mrb[0].mxu0 %v135
  %v303 = vpop.f32.mrb[0].mxu0
  %v304 = vadd.f32 0.0, %v303
  %v305 = vpop.f32.mrb[0].mxu0
  %v306 = vadd.f32 0.0, %v305
  %307 = vmatprep.mubr.f32.mxu0 0.0
  %308 = vmatmul.mubr.f32.gmra.mrb[0].mxu0 %v138
  %v309 = vpop.f32.mrb[0].mxu0
  %v310 = vadd.f32 0.0, %v309
  %v311 = vpop.f32.mrb[0].mxu0
  %v312 = vadd.f32 0.0, %v311
  %313 = vmatprep.mubr.f32.mxu0 0.0
  %314 = vmatmul.mubr.f32.gmra.mrb[0].mxu0 %v141
  %v315 = vpop.f32.mrb[0].mxu0
  %v316 = vadd.f32 0.0, %v315
  %v317 = vpop.f32.mrb[0].mxu0
  %v318 = vadd.f32 0.0, %v317
  %319 = vmatprep.mubr.f32.mxu0 0.0
  %320 = vmatmul.mubr.f32.gmra.mrb[0].mxu0 %v144
  %v321 = vpop.f32.mrb[0].mxu0
  %v322 = vadd.f32 0.0, %v321
  %v323 = vpop.f32.mrb[0].mxu0
  %v324 = vadd.f32 0.0, %v323
  %325 = vmatprep.mubr.f32.mxu0 0.0
  %326 = vmatmul.mubr.f32.gmra.mrb[0].mxu0 %v147
  %v327 = vpop.f32.mrb[0].mxu0
  %v328 = vadd.f32 0.0, %v327
  %v329 = vpop.f32.mrb[0].mxu0
  %v330 = vadd.f32 0.0, %v329
  %331 = vmatprep.mubr.f32.mxu0 0.0
  %332 = vmatmul.mubr.f32.gmra.mrb[0].mxu0 %v150
  %v333 = vpop.f32.mrb[0].mxu0
  %v334 = vadd.f32 0.0, %v333
  %v335 = vpop.f32.mrb[0].mxu0
  %v336 = vadd.f32 0.0, %v335
  %337 = vmatprep.mubr.f32.mxu0 0.0
  %338 = vmatmul.mubr.f32.gmra.mrb[0].mxu0 %v153
  %v339 = vpop.f32.mrb[0].mxu0
  %v340 = vadd.f32 0.0, %v339
  %v341 = vpop.f32.mrb[0].mxu0
  %v342 = vadd.f32 0.0, %v341
  %343 = vmatprep.mubr.f32.mxu0 0.0
  %344 = vmatmul.mubr.f32.gmra.mrb[0].mxu0 %v156
  %v345 = vpop.f32.mrb[0].mxu0
  %v346 = vadd.f32 0.0, %v345
  %v347 = vpop.f32.mrb[0].mxu0
  %v348 = vadd.f32 0.0, %v347
  %349 = vmatprep.mubr.f32.mxu0 0.0
  %350 = vmatmul.mubr.f32.gmra.mrb[0].mxu0 %v159
  %v351 = vpop.f32.mrb[0].mxu0
  %v352 = vadd.f32 0.0, %v351
  %v353 = vpop.f32.mrb[0].mxu0
  %v354 = vadd.f32 0.0, %v353
  %355 = vmatprep.mubr.f32.mxu0 0.0
  %356 = vmatmul.mubr.f32.gmra.mrb[0].mxu0 %v162
  %v357 = vpop.f32.mrb[0].mxu0
  %v358 = vadd.f32 0.0, %v357
  %v359 = vpop.f32.mrb[0].mxu0
  %v360 = vadd.f32 0.0, %v359
  %361 = vmatprep.mubr.f32.mxu0 0.0
  %362 = vmatmul.mubr.f32.gmra.mrb[0].mxu0 %v165
  %v363 = vpop.f32.mrb[0].mxu0
  %v364 = vadd.f32 0.0, %v363
  %v365 = vpop.f32.mrb[0].mxu0
  %v366 = vadd.f32 0.0, %v365
  %367 = vmatprep.mubr.f32.mxu0 0.0
  %368 = vmatmul.mubr.f32.gmra.mrb[0].mxu0 %v168
  %v369 = vpop.f32.mrb[0].mxu0
  %v370 = vadd.f32 0.0, %v369
  %v371 = vpop.f32.mrb[0].mxu0
  %v372 = vadd.f32 0.0, %v371
  %373 = vmatprep.mubr.f32.mxu0 0.0
  %374 = vmatmul.mubr.f32.gmra.mrb[0].mxu0 %v171
  %v375 = vpop.f32.mrb[0].mxu0
  %v376 = vadd.f32 0.0, %v375
  %v377 = vpop.f32.mrb[0].mxu0
  %v378 = vadd.f32 0.0, %v377
  %379 = vmatprep.mubr.f32.mxu0 0.0
  %380 = vmatmul.mubr.f32.gmra.mrb[0].mxu0 %v174
  %v381 = vpop.f32.mrb[0].mxu0
  %v382 = vadd.f32 0.0, %v381
  %v383 = vpop.f32.mrb[0].mxu0
  %v384 = vadd.f32 0.0, %v383
  %385 = vmatprep.mubr.f32.mxu0 0.0
  %386 = vmatmul.mubr.f32.gmra.mrb[0].mxu0 %v177
  %v387 = vpop.f32.mrb[0].mxu0
  %v388 = vadd.f32 0.0, %v387
  %v389 = vpop.f32.mrb[0].mxu0
  %v390 = vadd.f32 0.0, %v389
  %391 = vmatprep.mubr.f32.mxu0 0.0
  %392 = vmatmul.mubr.f32.gmra.mrb[0].mxu0 %v180
  %v393 = vpop.f32.mrb[0].mxu0
  %v394 = vadd.f32 0.0, %v393
  %v395 = vpop.f32.mrb[0].mxu0
  %v396 = vadd.f32 0.0, %v395
  %397 = vdwg.mxu0
  %v399 = vsel %vm109, %v44, 0
  %v402 = vsel %vm109, %v45, 0
  %v405 = vsel %vm109, %v46, 0
  %v408 = vsel %vm109, %v47, 0
  %v411 = vsel %vm109, %v48, 0
  %v414 = vsel %vm109, %v49, 0
  %v417 = vsel %vm109, %v50, 0
  %v420 = vsel %vm109, %v51, 0
  %v423 = vsel %vm109, %v52, 0
  %v426 = vsel %vm109, %v53, 0
  %v429 = vsel %vm109, %v54, 0
  %v432 = vsel %vm109, %v55, 0
  %v435 = vsel %vm109, %v56, 0
  %v438 = vsel %vm109, %v57, 0
  %v441 = vsel %vm109, %v58, 0
  %v444 = vsel %vm109, %v59, 0
  %v447 = vsel %vm109, %v60, 0
  %v450 = vsel %vm109, %v61, 0
  %v453 = vsel %vm109, %v62, 0
  %v456 = vsel %vm109, %v63, 0
  %v459 = vsel %vm109, %v64, 0
  %v462 = vsel %vm109, %v65, 0
  %v465 = vsel %vm109, %v66, 0
  %v468 = vsel %vm109, %v67, 0
  %v471 = vsel %vm182, %v74, 0
  %v474 = vsel %vm182, %v75, 0
  %476 = vmatprep.subr.mxu0 %v69
  %477 = vmatpush1.msra.mxu0 %v68
  %478 = vmatprep.subr.mxu0 %v71
  %479 = vmatpush1.msra.mxu0 %v70
  %480 = vmatprep.subr.mxu0 %v73
  %481 = vmatpush1.msra.mxu0 %v72
  %482 = vmatprep.subr.mxu0 %v474
  %483 = vmatpush1.msra.mxu0 %v471
  %484 = vmatprep.subr.mxu0 0.0
  %485 = vmatpush1.msra.mxu0 0.0
  %486 = vmatprep.subr.mxu0 0.0
  %487 = vmatpush1.msra.mxu0 0.0
  %488 = vmatprep.subr.mxu0 0.0
  %489 = vmatpush1.msra.mxu0 0.0
  %490 = vmatprep.subr.mxu0 0.0
  %491 = vmatpush1.msra.mxu0 0.0
  %492 = vmatprep.subr.mxu0 0.0
  %493 = vmatpush1.msra.mxu0 0.0
  %494 = vmatprep.subr.mxu0 0.0
  %495 = vmatpush1.msra.mxu0 0.0
  %496 = vmatprep.subr.mxu0 0.0
  %497 = vmatpush1.msra.mxu0 0.0
  %498 = vmatprep.subr.mxu0 0.0
  %499 = vmatpush1.msra.mxu0 0.0
  %500 = vmatprep.subr.mxu0 0.0
  %501 = vmatpush1.msra.mxu0 0.0
  %502 = vmatprep.subr.mxu0 0.0
  %503 = vmatpush1.msra.mxu0 0.0
  %504 = vmatprep.subr.mxu0 0.0
  %505 = vmatpush1.msra.mxu0 0.0
  %506 = vmatprep.subr.mxu0 0.0
  %507 = vmatpush1.msra.mxu0 0.0
  %508 = vmatprep.subr.mxu0 0.0
  %509 = vmatpush1.msra.mxu0 0.0
  %510 = vmatprep.subr.mxu0 0.0
  %511 = vmatpush1.msra.mxu0 0.0
  %512 = vmatprep.subr.mxu0 0.0
  %513 = vmatpush1.msra.mxu0 0.0
  %514 = vmatprep.subr.mxu0 0.0
  %515 = vmatpush1.msra.mxu0 0.0
  %516 = vmatprep.subr.mxu0 0.0
  %517 = vmatpush1.msra.mxu0 0.0
  %518 = vmatprep.subr.mxu0 0.0
  %519 = vmatpush1.msra.mxu0 0.0
  %520 = vmatprep.subr.mxu0 0.0
  %521 = vmatpush1.msra.mxu0 0.0
  %522 = vmatprep.subr.mxu0 0.0
  %523 = vmatpush1.msra.mxu0 0.0
  %524 = vmatprep.subr.mxu0 0.0
  %525 = vmatpush1.msra.mxu0 0.0
  %526 = vmatprep.subr.mxu0 0.0
  %527 = vmatpush1.msra.mxu0 0.0
  %528 = vmatprep.subr.mxu0 0.0
  %529 = vmatpush1.msra.mxu0 0.0
  %530 = vmatprep.subr.mxu0 0.0
  %531 = vmatpush1.msra.mxu0 0.0
  %532 = vmatprep.subr.mxu0 0.0
  %533 = vmatpush1.msra.mxu0 0.0
  %534 = vmatprep.subr.mxu0 0.0
  %535 = vmatpush1.msra.mxu0 0.0
  %536 = vmatprep.subr.mxu0 0.0
  %537 = vmatpush1.msra.mxu0 0.0
  %538 = vmatprep.subr.mxu0 0.0
  %539 = vmatpush1.msra.mxu0 0.0
  %540 = vmatprep.mubr.f32.mxu0 0.0
  %541 = vmatmul.mubr.f32.gmra.mrb[0].mxu0 %v399
  %v542 = vpop.f32.mrb[0].mxu0
  %v543 = vadd.f32 %v256, %v542
  %v544 = vpop.f32.mrb[0].mxu0
  %v545 = vadd.f32 %v258, %v544
  %546 = vmatprep.mubr.f32.mxu0 0.0
  %547 = vmatmul.mubr.f32.gmra.mrb[0].mxu0 %v402
  %v548 = vpop.f32.mrb[0].mxu0
  %v549 = vadd.f32 %v262, %v548
  %v550 = vpop.f32.mrb[0].mxu0
  %v551 = vadd.f32 %v264, %v550
  %552 = vmatprep.mubr.f32.mxu0 0.0
  %553 = vmatmul.mubr.f32.gmra.mrb[0].mxu0 %v405
  %v554 = vpop.f32.mrb[0].mxu0
  %v555 = vadd.f32 %v268, %v554
  %v556 = vpop.f32.mrb[0].mxu0
  %v557 = vadd.f32 %v270, %v556
  %558 = vmatprep.mubr.f32.mxu0 0.0
  %559 = vmatmul.mubr.f32.gmra.mrb[0].mxu0 %v408
  %v560 = vpop.f32.mrb[0].mxu0
  %v561 = vadd.f32 %v274, %v560
  %v562 = vpop.f32.mrb[0].mxu0
  %v563 = vadd.f32 %v276, %v562
  %564 = vmatprep.mubr.f32.mxu0 0.0
  %565 = vmatmul.mubr.f32.gmra.mrb[0].mxu0 %v411
  %v566 = vpop.f32.mrb[0].mxu0
  %v567 = vadd.f32 %v280, %v566
  %v568 = vpop.f32.mrb[0].mxu0
  %v569 = vadd.f32 %v282, %v568
  %570 = vmatprep.mubr.f32.mxu0 0.0
  %571 = vmatmul.mubr.f32.gmra.mrb[0].mxu0 %v414
  %v572 = vpop.f32.mrb[0].mxu0
  %v573 = vadd.f32 %v286, %v572
  %v574 = vpop.f32.mrb[0].mxu0
  %v575 = vadd.f32 %v288, %v574
  %576 = vmatprep.mubr.f32.mxu0 0.0
  %577 = vmatmul.mubr.f32.gmra.mrb[0].mxu0 %v417
  %v578 = vpop.f32.mrb[0].mxu0
  %v579 = vadd.f32 %v292, %v578
  %v580 = vpop.f32.mrb[0].mxu0
  %v581 = vadd.f32 %v294, %v580
  %582 = vmatprep.mubr.f32.mxu0 0.0
  %583 = vmatmul.mubr.f32.gmra.mrb[0].mxu0 %v420
  %v584 = vpop.f32.mrb[0].mxu0
  %v585 = vadd.f32 %v298, %v584
  %v586 = vpop.f32.mrb[0].mxu0
  %v587 = vadd.f32 %v300, %v586
  %588 = vmatprep.mubr.f32.mxu0 0.0
  %589 = vmatmul.mubr.f32.gmra.mrb[0].mxu0 %v423
  %v590 = vpop.f32.mrb[0].mxu0
  %v591 = vadd.f32 %v304, %v590
  %v592 = vpop.f32.mrb[0].mxu0
  %v593 = vadd.f32 %v306, %v592
  %594 = vmatprep.mubr.f32.mxu0 0.0
  %595 = vmatmul.mubr.f32.gmra.mrb[0].mxu0 %v426
  %v596 = vpop.f32.mrb[0].mxu0
  %v597 = vadd.f32 %v310, %v596
  %v598 = vpop.f32.mrb[0].mxu0
  %v599 = vadd.f32 %v312, %v598
  %600 = vmatprep.mubr.f32.mxu0 0.0
  %601 = vmatmul.mubr.f32.gmra.mrb[0].mxu0 %v429
  %v602 = vpop.f32.mrb[0].mxu0
  %v603 = vadd.f32 %v316, %v602
  %v604 = vpop.f32.mrb[0].mxu0
  %v605 = vadd.f32 %v318, %v604
  %606 = vmatprep.mubr.f32.mxu0 0.0
  %607 = vmatmul.mubr.f32.gmra.mrb[0].mxu0 %v432
  %v608 = vpop.f32.mrb[0].mxu0
  %v609 = vadd.f32 %v322, %v608
  %v610 = vpop.f32.mrb[0].mxu0
  %v611 = vadd.f32 %v324, %v610
  %612 = vmatprep.mubr.f32.mxu0 0.0
  %613 = vmatmul.mubr.f32.gmra.mrb[0].mxu0 %v435
  %v614 = vpop.f32.mrb[0].mxu0
  %v615 = vadd.f32 %v328, %v614
  %v616 = vpop.f32.mrb[0].mxu0
  %v617 = vadd.f32 %v330, %v616
  %618 = vmatprep.mubr.f32.mxu0 0.0
  %619 = vmatmul.mubr.f32.gmra.mrb[0].mxu0 %v438
  %v620 = vpop.f32.mrb[0].mxu0
  %v621 = vadd.f32 %v334, %v620
  %v622 = vpop.f32.mrb[0].mxu0
  %v623 = vadd.f32 %v336, %v622
  %624 = vmatprep.mubr.f32.mxu0 0.0
  %625 = vmatmul.mubr.f32.gmra.mrb[0].mxu0 %v441
  %v626 = vpop.f32.mrb[0].mxu0
  %v627 = vadd.f32 %v340, %v626
  %v628 = vpop.f32.mrb[0].mxu0
  %v629 = vadd.f32 %v342, %v628
  %630 = vmatprep.mubr.f32.mxu0 0.0
  %631 = vmatmul.mubr.f32.gmra.mrb[0].mxu0 %v444
  %v632 = vpop.f32.mrb[0].mxu0
  %v633 = vadd.f32 %v346, %v632
  %v634 = vpop.f32.mrb[0].mxu0
  %v635 = vadd.f32 %v348, %v634
  %636 = vmatprep.mubr.f32.mxu0 0.0
  %637 = vmatmul.mubr.f32.gmra.mrb[0].mxu0 %v447
  %v638 = vpop.f32.mrb[0].mxu0
  %v639 = vadd.f32 %v352, %v638
  %v640 = vpop.f32.mrb[0].mxu0
  %v641 = vadd.f32 %v354, %v640
  %642 = vmatprep.mubr.f32.mxu0 0.0
  %643 = vmatmul.mubr.f32.gmra.mrb[0].mxu0 %v450
  %v644 = vpop.f32.mrb[0].mxu0
  %v645 = vadd.f32 %v358, %v644
  %v646 = vpop.f32.mrb[0].mxu0
  %v647 = vadd.f32 %v360, %v646
  %648 = vmatprep.mubr.f32.mxu0 0.0
  %649 = vmatmul.mubr.f32.gmra.mrb[0].mxu0 %v453
  %v650 = vpop.f32.mrb[0].mxu0
  %v651 = vadd.f32 %v364, %v650
  %v652 = vpop.f32.mrb[0].mxu0
  %v653 = vadd.f32 %v366, %v652
  %654 = vmatprep.mubr.f32.mxu0 0.0
  %655 = vmatmul.mubr.f32.gmra.mrb[0].mxu0 %v456
  %v656 = vpop.f32.mrb[0].mxu0
  %v657 = vadd.f32 %v370, %v656
  %v658 = vpop.f32.mrb[0].mxu0
  %v659 = vadd.f32 %v372, %v658
  %660 = vmatprep.mubr.f32.mxu0 0.0
  %661 = vmatmul.mubr.f32.gmra.mrb[0].mxu0 %v459
  %v662 = vpop.f32.mrb[0].mxu0
  %v663 = vadd.f32 %v376, %v662
  %v664 = vpop.f32.mrb[0].mxu0
  %v665 = vadd.f32 %v378, %v664
  %666 = vmatprep.mubr.f32.mxu0 0.0
  %667 = vmatmul.mubr.f32.gmra.mrb[0].mxu0 %v462
  %v668 = vpop.f32.mrb[0].mxu0
  %v669 = vadd.f32 %v382, %v668
  %v670 = vpop.f32.mrb[0].mxu0
  %v671 = vadd.f32 %v384, %v670
  %672 = vmatprep.mubr.f32.mxu0 0.0
  %673 = vmatmul.mubr.f32.gmra.mrb[0].mxu0 %v465
  %v674 = vpop.f32.mrb[0].mxu0
  %v675 = vadd.f32 %v388, %v674
  %v676 = vpop.f32.mrb[0].mxu0
  %v677 = vadd.f32 %v390, %v676
  %678 = vmatprep.mubr.f32.mxu0 0.0
  %679 = vmatmul.mubr.f32.gmra.mrb[0].mxu0 %v468
  %v680 = vpop.f32.mrb[0].mxu0
  %v681 = vadd.f32 %v394, %v680
  %v682 = vpop.f32.mrb[0].mxu0
  %v683 = vadd.f32 %v396, %v682
  %684 = vdwg.mxu0
  %v685 = vld [vmem:[%s0 + $0x2] sm:$0xff]
  %v686 = vld [vmem:[%s0 + $0xa] sm:$0xff]
  %v687 = vld [vmem:[%s0 + $0x12] sm:$0xff]
  %v688 = vld [vmem:[%s0 + $0x22] sm:$0xff]
  %v689 = vld [vmem:[%s0 + $0x2a] sm:$0xff]
  %v690 = vld [vmem:[%s0 + $0x32] sm:$0xff]
  %v691 = vld [vmem:[%s0 + $0x42] sm:$0xff]
  %v692 = vld [vmem:[%s0 + $0x4a] sm:$0xff]
  %v693 = vld [vmem:[%s0 + $0x52] sm:$0xff]
  %v694 = vld [vmem:[%s0 + $0x62] sm:$0xff]
  %v695 = vld [vmem:[%s0 + $0x6a] sm:$0xff]
  %v696 = vld [vmem:[%s0 + $0x72] sm:$0xff]
  %v697 = vld [vmem:[%s0 + $0x82] sm:$0xff]
  %v698 = vld [vmem:[%s0 + $0x8a] sm:$0xff]
  %v699 = vld [vmem:[%s0 + $0x92] sm:$0xff]
  %v700 = vld [vmem:[%s0 + $0xa2] sm:$0xff]
  %v701 = vld [vmem:[%s0 + $0xaa] sm:$0xff]
  %v702 = vld [vmem:[%s0 + $0xb2] sm:$0xff]
  %v703 = vld [vmem:[%s0 + $0xc2] sm:$0xff]
  %v704 = vld [vmem:[%s0 + $0xca] sm:$0xff]
  %v705 = vld [vmem:[%s0 + $0xd2] sm:$0xff]
  %v706 = vld [vmem:[%s0 + $0xe2] sm:$0xff]
  %v707 = vld [vmem:[%s0 + $0xea] sm:$0xff]
  %v708 = vld [vmem:[%s0 + $0xf2] sm:$0xff]
  %s709 = scalar_lea.vmem %s1, 128
  %v710 = vld [vmem:[%s709] sm:$0xff]
  %v711 = vld [vmem:[%s709 + $0x8] sm:$0xff]
  %v712 = vld [vmem:[%s709 + $0x10] sm:$0xff]
  %v713 = vld [vmem:[%s709 + $0x18] sm:$0xff]
  %v714 = vld [vmem:[%s709 + $0x20] sm:$0xff]
  %v715 = vld [vmem:[%s709 + $0x28] sm:$0xff]
  %v716 = vld [vmem:[%s709 + $0x30] sm:$0xf]
  %v717 = vld [vmem:[%s709 + $0x38] sm:$0xf]
  %v719 = vsel %vm109, %v685, 0
  %v722 = vsel %vm109, %v686, 0
  %v725 = vsel %vm109, %v687, 0
  %v728 = vsel %vm109, %v688, 0
  %v731 = vsel %vm109, %v689, 0
  %v734 = vsel %vm109, %v690, 0
  %v737 = vsel %vm109, %v691, 0
  %v740 = vsel %vm109, %v692, 0
  %v743 = vsel %vm109, %v693, 0
  %v746 = vsel %vm109, %v694, 0
  %v749 = vsel %vm109, %v695, 0
  %v752 = vsel %vm109, %v696, 0
  %v755 = vsel %vm109, %v697, 0
  %v758 = vsel %vm109, %v698, 0
  %v761 = vsel %vm109, %v699, 0
  %v764 = vsel %vm109, %v700, 0
  %v767 = vsel %vm109, %v701, 0
  %v770 = vsel %vm109, %v702, 0
  %v773 = vsel %vm109, %v703, 0
  %v776 = vsel %vm109, %v704, 0
  %v779 = vsel %vm109, %v705, 0
  %v782 = vsel %vm109, %v706, 0
  %v785 = vsel %vm109, %v707, 0
  %v788 = vsel %vm109, %v708, 0
  %v791 = vsel %vm182, %v716, 0
  %v794 = vsel %vm182, %v717, 0
  %796 = vmatprep.subr.mxu0 %v711
  %797 = vmatpush1.msra.mxu0 %v710
  %798 = vmatprep.subr.mxu0 %v713
  %799 = vmatpush1.msra.mxu0 %v712
  %800 = vmatprep.subr.mxu0 %v715
  %801 = vmatpush1.msra.mxu0 %v714
  %802 = vmatprep.subr.mxu0 %v794
  %803 = vmatpush1.msra.mxu0 %v791
  %804 = vmatprep.subr.mxu0 0.0
  %805 = vmatpush1.msra.mxu0 0.0
  %806 = vmatprep.subr.mxu0 0.0
  %807 = vmatpush1.msra.mxu0 0.0
  %808 = vmatprep.subr.mxu0 0.0
  %809 = vmatpush1.msra.mxu0 0.0
  %810 = vmatprep.subr.mxu0 0.0
  %811 = vmatpush1.msra.mxu0 0.0
  %812 = vmatprep.subr.mxu0 0.0
  %813 = vmatpush1.msra.mxu0 0.0
  %814 = vmatprep.subr.mxu0 0.0
  %815 = vmatpush1.msra.mxu0 0.0
  %816 = vmatprep.subr.mxu0 0.0
  %817 = vmatpush1.msra.mxu0 0.0
  %818 = vmatprep.subr.mxu0 0.0
  %819 = vmatpush1.msra.mxu0 0.0
  %820 = vmatprep.subr.mxu0 0.0
  %821 = vmatpush1.msra.mxu0 0.0
  %822 = vmatprep.subr.mxu0 0.0
  %823 = vmatpush1.msra.mxu0 0.0
  %824 = vmatprep.subr.mxu0 0.0
  %825 = vmatpush1.msra.mxu0 0.0
  %826 = vmatprep.subr.mxu0 0.0
  %827 = vmatpush1.msra.mxu0 0.0
  %828 = vmatprep.subr.mxu0 0.0
  %829 = vmatpush1.msra.mxu0 0.0
  %830 = vmatprep.subr.mxu0 0.0
  %831 = vmatpush1.msra.mxu0 0.0
  %832 = vmatprep.subr.mxu0 0.0
  %833 = vmatpush1.msra.mxu0 0.0
  %834 = vmatprep.subr.mxu0 0.0
  %835 = vmatpush1.msra.mxu0 0.0
  %836 = vmatprep.subr.mxu0 0.0
  %837 = vmatpush1.msra.mxu0 0.0
  %838 = vmatprep.subr.mxu0 0.0
  %839 = vmatpush1.msra.mxu0 0.0
  %840 = vmatprep.subr.mxu0 0.0
  %841 = vmatpush1.msra.mxu0 0.0
  %842 = vmatprep.subr.mxu0 0.0
  %843 = vmatpush1.msra.mxu0 0.0
  %844 = vmatprep.subr.mxu0 0.0
  %845 = vmatpush1.msra.mxu0 0.0
  %846 = vmatprep.subr.mxu0 0.0
  %847 = vmatpush1.msra.mxu0 0.0
  %848 = vmatprep.subr.mxu0 0.0
  %849 = vmatpush1.msra.mxu0 0.0
  %850 = vmatprep.subr.mxu0 0.0
  %851 = vmatpush1.msra.mxu0 0.0
  %852 = vmatprep.subr.mxu0 0.0
  %853 = vmatpush1.msra.mxu0 0.0
  %854 = vmatprep.subr.mxu0 0.0
  %855 = vmatpush1.msra.mxu0 0.0
  %856 = vmatprep.subr.mxu0 0.0
  %857 = vmatpush1.msra.mxu0 0.0
  %858 = vmatprep.subr.mxu0 0.0
  %859 = vmatpush1.msra.mxu0 0.0
  %860 = vmatprep.mubr.f32.mxu0 0.0
  %861 = vmatmul.mubr.f32.gmra.mrb[0].mxu0 %v719
  %v862 = vpop.f32.mrb[0].mxu0
  %v863 = vadd.f32 0.0, %v862
  %v864 = vpop.f32.mrb[0].mxu0
  %v865 = vadd.f32 0.0, %v864
  %866 = vmatprep.mubr.f32.mxu0 0.0
  %867 = vmatmul.mubr.f32.gmra.mrb[0].mxu0 %v722
  %v868 = vpop.f32.mrb[0].mxu0
  %v869 = vadd.f32 0.0, %v868
  %v870 = vpop.f32.mrb[0].mxu0
  %v871 = vadd.f32 0.0, %v870
  %872 = vmatprep.mubr.f32.mxu0 0.0
  %873 = vmatmul.mubr.f32.gmra.mrb[0].mxu0 %v725
  %v874 = vpop.f32.mrb[0].mxu0
  %v875 = vadd.f32 0.0, %v874
  %v876 = vpop.f32.mrb[0].mxu0
  %v877 = vadd.f32 0.0, %v876
  %878 = vmatprep.mubr.f32.mxu0 0.0
  %879 = vmatmul.mubr.f32.gmra.mrb[0].mxu0 %v728
  %v880 = vpop.f32.mrb[0].mxu0
  %v881 = vadd.f32 0.0, %v880
  %v882 = vpop.f32.mrb[0].mxu0
  %v883 = vadd.f32 0.0, %v882
  %884 = vmatprep.mubr.f32.mxu0 0.0
  %885 = vmatmul.mubr.f32.gmra.mrb[0].mxu0 %v731
  %v886 = vpop.f32.mrb[0].mxu0
  %v887 = vadd.f32 0.0, %v886
  %v888 = vpop.f32.mrb[0].mxu0
  %v889 = vadd.f32 0.0, %v888
  %890 = vmatprep.mubr.f32.mxu0 0.0
  %891 = vmatmul.mubr.f32.gmra.mrb[0].mxu0 %v734
  %v892 = vpop.f32.mrb[0].mxu0
  %v893 = vadd.f32 0.0, %v892
  %v894 = vpop.f32.mrb[0].mxu0
  %v895 = vadd.f32 0.0, %v894
  %896 = vmatprep.mubr.f32.mxu0 0.0
  %897 = vmatmul.mubr.f32.gmra.mrb[0].mxu0 %v737
  %v898 = vpop.f32.mrb[0].mxu0
  %v899 = vadd.f32 0.0, %v898
  %v900 = vpop.f32.mrb[0].mxu0
  %v901 = vadd.f32 0.0, %v900
  %902 = vmatprep.mubr.f32.mxu0 0.0
  %903 = vmatmul.mubr.f32.gmra.mrb[0].mxu0 %v740
  %v904 = vpop.f32.mrb[0].mxu0
  %v905 = vadd.f32 0.0, %v904
  %v906 = vpop.f32.mrb[0].mxu0
  %v907 = vadd.f32 0.0, %v906
  %908 = vmatprep.mubr.f32.mxu0 0.0
  %909 = vmatmul.mubr.f32.gmra.mrb[0].mxu0 %v743
  %v910 = vpop.f32.mrb[0].mxu0
  %v911 = vadd.f32 0.0, %v910
  %v912 = vpop.f32.mrb[0].mxu0
  %v913 = vadd.f32 0.0, %v912
  %914 = vmatprep.mubr.f32.mxu0 0.0
  %915 = vmatmul.mubr.f32.gmra.mrb[0].mxu0 %v746
  %v916 = vpop.f32.mrb[0].mxu0
  %v917 = vadd.f32 0.0, %v916
  %v918 = vpop.f32.mrb[0].mxu0
  %v919 = vadd.f32 0.0, %v918
  %920 = vmatprep.mubr.f32.mxu0 0.0
  %921 = vmatmul.mubr.f32.gmra.mrb[0].mxu0 %v749
  %v922 = vpop.f32.mrb[0].mxu0
  %v923 = vadd.f32 0.0, %v922
  %v924 = vpop.f32.mrb[0].mxu0
  %v925 = vadd.f32 0.0, %v924
  %926 = vmatprep.mubr.f32.mxu0 0.0
  %927 = vmatmul.mubr.f32.gmra.mrb[0].mxu0 %v752
  %v928 = vpop.f32.mrb[0].mxu0
  %v929 = vadd.f32 0.0, %v928
  %v930 = vpop.f32.mrb[0].mxu0
  %v931 = vadd.f32 0.0, %v930
  %932 = vmatprep.mubr.f32.mxu0 0.0
  %933 = vmatmul.mubr.f32.gmra.mrb[0].mxu0 %v755
  %v934 = vpop.f32.mrb[0].mxu0
  %v935 = vadd.f32 0.0, %v934
  %v936 = vpop.f32.mrb[0].mxu0
  %v937 = vadd.f32 0.0, %v936
  %938 = vmatprep.mubr.f32.mxu0 0.0
  %939 = vmatmul.mubr.f32.gmra.mrb[0].mxu0 %v758
  %v940 = vpop.f32.mrb[0].mxu0
  %v941 = vadd.f32 0.0, %v940
  %v942 = vpop.f32.mrb[0].mxu0
  %v943 = vadd.f32 0.0, %v942
  %944 = vmatprep.mubr.f32.mxu0 0.0
  %945 = vmatmul.mubr.f32.gmra.mrb[0].mxu0 %v761
  %v946 = vpop.f32.mrb[0].mxu0
  %v947 = vadd.f32 0.0, %v946
  %v948 = vpop.f32.mrb[0].mxu0
  %v949 = vadd.f32 0.0, %v948
  %950 = vmatprep.mubr.f32.mxu0 0.0
  %951 = vmatmul.mubr.f32.gmra.mrb[0].mxu0 %v764
  %v952 = vpop.f32.mrb[0].mxu0
  %v953 = vadd.f32 0.0, %v952
  %v954 = vpop.f32.mrb[0].mxu0
  %v955 = vadd.f32 0.0, %v954
  %956 = vmatprep.mubr.f32.mxu0 0.0
  %957 = vmatmul.mubr.f32.gmra.mrb[0].mxu0 %v767
  %v958 = vpop.f32.mrb[0].mxu0
  %v959 = vadd.f32 0.0, %v958
  %v960 = vpop.f32.mrb[0].mxu0
  %v961 = vadd.f32 0.0, %v960
  %962 = vmatprep.mubr.f32.mxu0 0.0
  %963 = vmatmul.mubr.f32.gmra.mrb[0].mxu0 %v770
  %v964 = vpop.f32.mrb[0].mxu0
  %v965 = vadd.f32 0.0, %v964
  %v966 = vpop.f32.mrb[0].mxu0
  %v967 = vadd.f32 0.0, %v966
  %968 = vmatprep.mubr.f32.mxu0 0.0
  %969 = vmatmul.mubr.f32.gmra.mrb[0].mxu0 %v773
  %v970 = vpop.f32.mrb[0].mxu0
  %v971 = vadd.f32 0.0, %v970
  %v972 = vpop.f32.mrb[0].mxu0
  %v973 = vadd.f32 0.0, %v972
  %974 = vmatprep.mubr.f32.mxu0 0.0
  %975 = vmatmul.mubr.f32.gmra.mrb[0].mxu0 %v776
  %v976 = vpop.f32.mrb[0].mxu0
  %v977 = vadd.f32 0.0, %v976
  %v978 = vpop.f32.mrb[0].mxu0
  %v979 = vadd.f32 0.0, %v978
  %980 = vmatprep.mubr.f32.mxu0 0.0
  %981 = vmatmul.mubr.f32.gmra.mrb[0].mxu0 %v779
  %v982 = vpop.f32.mrb[0].mxu0
  %v983 = vadd.f32 0.0, %v982
  %v984 = vpop.f32.mrb[0].mxu0
  %v985 = vadd.f32 0.0, %v984
  %986 = vmatprep.mubr.f32.mxu0 0.0
  %987 = vmatmul.mubr.f32.gmra.mrb[0].mxu0 %v782
  %v988 = vpop.f32.mrb[0].mxu0
  %v989 = vadd.f32 0.0, %v988
  %v990 = vpop.f32.mrb[0].mxu0
  %v991 = vadd.f32 0.0, %v990
  %992 = vmatprep.mubr.f32.mxu0 0.0
  %993 = vmatmul.mubr.f32.gmra.mrb[0].mxu0 %v785
  %v994 = vpop.f32.mrb[0].mxu0
  %v995 = vadd.f32 0.0, %v994
  %v996 = vpop.f32.mrb[0].mxu0
  %v997 = vadd.f32 0.0, %v996
  %998 = vmatprep.mubr.f32.mxu0 0.0
  %999 = vmatmul.mubr.f32.gmra.mrb[0].mxu0 %v788
  %v1000 = vpop.f32.mrb[0].mxu0
  %v1001 = vadd.f32 0.0, %v1000
  %v1002 = vpop.f32.mrb[0].mxu0
  %v1003 = vadd.f32 0.0, %v1002
  %1004 = vdwg.mxu0
  %v1005 = vadd.f32 %v543, %v863
  %v1006 = vadd.f32 %v545, %v865
  %v1007 = vadd.f32 %v549, %v869
  %v1008 = vadd.f32 %v551, %v871
  %v1009 = vadd.f32 %v555, %v875
  %v1010 = vadd.f32 %v557, %v877
  %v1011 = vadd.f32 %v561, %v881
  %v1012 = vadd.f32 %v563, %v883
  %v1013 = vadd.f32 %v567, %v887
  %v1014 = vadd.f32 %v569, %v889
  %v1015 = vadd.f32 %v573, %v893
  %v1016 = vadd.f32 %v575, %v895
  %v1017 = vadd.f32 %v579, %v899
  %v1018 = vadd.f32 %v581, %v901
  %v1019 = vadd.f32 %v585, %v905
  %v1020 = vadd.f32 %v587, %v907
  %v1021 = vadd.f32 %v591, %v911
  %v1022 = vadd.f32 %v593, %v913
  %v1023 = vadd.f32 %v597, %v917
  %v1024 = vadd.f32 %v599, %v919
  %v1025 = vadd.f32 %v603, %v923
  %v1026 = vadd.f32 %v605, %v925
  %v1027 = vadd.f32 %v609, %v929
  %v1028 = vadd.f32 %v611, %v931
  %v1029 = vadd.f32 %v615, %v935
  %v1030 = vadd.f32 %v617, %v937
  %v1031 = vadd.f32 %v621, %v941
  %v1032 = vadd.f32 %v623, %v943
  %v1033 = vadd.f32 %v627, %v947
  %v1034 = vadd.f32 %v629, %v949
  %v1035 = vadd.f32 %v633, %v953
  %v1036 = vadd.f32 %v635, %v955
  %v1037 = vadd.f32 %v639, %v959
  %v1038 = vadd.f32 %v641, %v961
  %v1039 = vadd.f32 %v645, %v965
  %v1040 = vadd.f32 %v647, %v967
  %v1041 = vadd.f32 %v651, %v971
  %v1042 = vadd.f32 %v653, %v973
  %v1043 = vadd.f32 %v657, %v977
  %v1044 = vadd.f32 %v659, %v979
  %v1045 = vadd.f32 %v663, %v983
  %v1046 = vadd.f32 %v665, %v985
  %v1047 = vadd.f32 %v669, %v989
  %v1048 = vadd.f32 %v671, %v991
  %v1049 = vadd.f32 %v675, %v995
  %v1050 = vadd.f32 %v677, %v997
  %v1051 = vadd.f32 %v681, %v1001
  %v1052 = vadd.f32 %v683, %v1003
  %v1053 = vld [vmem:[%s0 + $0x3] sm:$0xff]
  %v1054 = vld [vmem:[%s0 + $0xb] sm:$0xff]
  %v1055 = vld [vmem:[%s0 + $0x13] sm:$0xff]
  %v1056 = vld [vmem:[%s0 + $0x23] sm:$0xff]
  %v1057 = vld [vmem:[%s0 + $0x2b] sm:$0xff]
  %v1058 = vld [vmem:[%s0 + $0x33] sm:$0xff]
  %v1059 = vld [vmem:[%s0 + $0x43] sm:$0xff]
  %v1060 = vld [vmem:[%s0 + $0x4b] sm:$0xff]
  %v1061 = vld [vmem:[%s0 + $0x53] sm:$0xff]
  %v1062 = vld [vmem:[%s0 + $0x63] sm:$0xff]
  %v1063 = vld [vmem:[%s0 + $0x6b] sm:$0xff]
  %v1064 = vld [vmem:[%s0 + $0x73] sm:$0xff]
  %v1065 = vld [vmem:[%s0 + $0x83] sm:$0xff]
  %v1066 = vld [vmem:[%s0 + $0x8b] sm:$0xff]
  %v1067 = vld [vmem:[%s0 + $0x93] sm:$0xff]
  %v1068 = vld [vmem:[%s0 + $0xa3] sm:$0xff]
  %v1069 = vld [vmem:[%s0 + $0xab] sm:$0xff]
  %v1070 = vld [vmem:[%s0 + $0xb3] sm:$0xff]
  %v1071 = vld [vmem:[%s0 + $0xc3] sm:$0xff]
  %v1072 = vld [vmem:[%s0 + $0xcb] sm:$0xff]
  %v1073 = vld [vmem:[%s0 + $0xd3] sm:$0xff]
  %v1074 = vld [vmem:[%s0 + $0xe3] sm:$0xff]
  %v1075 = vld [vmem:[%s0 + $0xeb] sm:$0xff]
  %v1076 = vld [vmem:[%s0 + $0xf3] sm:$0xff]
  %s1077 = scalar_lea.vmem %s1, 192
  %v1078 = vld [vmem:[%s1077] sm:$0xff]
  %v1079 = vld [vmem:[%s1077 + $0x8] sm:$0xff]
  %v1080 = vld [vmem:[%s1077 + $0x10] sm:$0xff]
  %v1081 = vld [vmem:[%s1077 + $0x18] sm:$0xff]
  %v1082 = vld [vmem:[%s1077 + $0x20] sm:$0xff]
  %v1083 = vld [vmem:[%s1077 + $0x28] sm:$0xff]
  %v1084 = vld [vmem:[%s1077 + $0x30] sm:$0xf]
  %v1085 = vld [vmem:[%s1077 + $0x38] sm:$0xf]
  %v1087 = vsel %vm109, %v1053, 0
  %v1090 = vsel %vm109, %v1054, 0
  %v1093 = vsel %vm109, %v1055, 0
  %v1096 = vsel %vm109, %v1056, 0
  %v1099 = vsel %vm109, %v1057, 0
  %v1102 = vsel %vm109, %v1058, 0
  %v1105 = vsel %vm109, %v1059, 0
  %v1108 = vsel %vm109, %v1060, 0
  %v1111 = vsel %vm109, %v1061, 0
  %v1114 = vsel %vm109, %v1062, 0
  %v1117 = vsel %vm109, %v1063, 0
  %v1120 = vsel %vm109, %v1064, 0
  %v1123 = vsel %vm109, %v1065, 0
  %v1126 = vsel %vm109, %v1066, 0
  %v1129 = vsel %vm109, %v1067, 0
  %v1132 = vsel %vm109, %v1068, 0
  %v1135 = vsel %vm109, %v1069, 0
  %v1138 = vsel %vm109, %v1070, 0
  %v1141 = vsel %vm109, %v1071, 0
  %v1144 = vsel %vm109, %v1072, 0
  %v1147 = vsel %vm109, %v1073, 0
  %v1150 = vsel %vm109, %v1074, 0
  %v1153 = vsel %vm109, %v1075, 0
  %v1156 = vsel %vm109, %v1076, 0
  %v1159 = vsel %vm182, %v1084, 0
  %v1162 = vsel %vm182, %v1085, 0
  %1164 = vmatprep.subr.mxu0 %v1079
  %1165 = vmatpush1.msra.mxu0 %v1078
  %1166 = vmatprep.subr.mxu0 %v1081
  %1167 = vmatpush1.msra.mxu0 %v1080
  %1168 = vmatprep.subr.mxu0 %v1083
  %1169 = vmatpush1.msra.mxu0 %v1082
  %1170 = vmatprep.subr.mxu0 %v1162
  %1171 = vmatpush1.msra.mxu0 %v1159
  %1172 = vmatprep.subr.mxu0 0.0
  %1173 = vmatpush1.msra.mxu0 0.0
  %1174 = vmatprep.subr.mxu0 0.0
  %1175 = vmatpush1.msra.mxu0 0.0
  %1176 = vmatprep.subr.mxu0 0.0
  %1177 = vmatpush1.msra.mxu0 0.0
  %1178 = vmatprep.subr.mxu0 0.0
  %1179 = vmatpush1.msra.mxu0 0.0
  %1180 = vmatprep.subr.mxu0 0.0
  %1181 = vmatpush1.msra.mxu0 0.0
  %1182 = vmatprep.subr.mxu0 0.0
  %1183 = vmatpush1.msra.mxu0 0.0
  %1184 = vmatprep.subr.mxu0 0.0
  %1185 = vmatpush1.msra.mxu0 0.0
  %1186 = vmatprep.subr.mxu0 0.0
  %1187 = vmatpush1.msra.mxu0 0.0
  %1188 = vmatprep.subr.mxu0 0.0
  %1189 = vmatpush1.msra.mxu0 0.0
  %1190 = vmatprep.subr.mxu0 0.0
  %1191 = vmatpush1.msra.mxu0 0.0
  %1192 = vmatprep.subr.mxu0 0.0
  %1193 = vmatpush1.msra.mxu0 0.0
  %1194 = vmatprep.subr.mxu0 0.0
  %1195 = vmatpush1.msra.mxu0 0.0
  %1196 = vmatprep.subr.mxu0 0.0
  %1197 = vmatpush1.msra.mxu0 0.0
  %1198 = vmatprep.subr.mxu0 0.0
  %1199 = vmatpush1.msra.mxu0 0.0
  %1200 = vmatprep.subr.mxu0 0.0
  %1201 = vmatpush1.msra.mxu0 0.0
  %1202 = vmatprep.subr.mxu0 0.0
  %1203 = vmatpush1.msra.mxu0 0.0
  %1204 = vmatprep.subr.mxu0 0.0
  %1205 = vmatpush1.msra.mxu0 0.0
  %1206 = vmatprep.subr.mxu0 0.0
  %1207 = vmatpush1.msra.mxu0 0.0
  %1208 = vmatprep.subr.mxu0 0.0
  %1209 = vmatpush1.msra.mxu0 0.0
  %1210 = vmatprep.subr.mxu0 0.0
  %1211 = vmatpush1.msra.mxu0 0.0
  %1212 = vmatprep.subr.mxu0 0.0
  %1213 = vmatpush1.msra.mxu0 0.0
  %1214 = vmatprep.subr.mxu0 0.0
  %1215 = vmatpush1.msra.mxu0 0.0
  %1216 = vmatprep.subr.mxu0 0.0
  %1217 = vmatpush1.msra.mxu0 0.0
  %1218 = vmatprep.subr.mxu0 0.0
  %1219 = vmatpush1.msra.mxu0 0.0
  %1220 = vmatprep.subr.mxu0 0.0
  %1221 = vmatpush1.msra.mxu0 0.0
  %1222 = vmatprep.subr.mxu0 0.0
  %1223 = vmatpush1.msra.mxu0 0.0
  %1224 = vmatprep.subr.mxu0 0.0
  %1225 = vmatpush1.msra.mxu0 0.0
  %1226 = vmatprep.subr.mxu0 0.0
  %1227 = vmatpush1.msra.mxu0 0.0
  %1228 = vmatprep.mubr.f32.mxu0 0.0
  %1229 = vmatmul.mubr.f32.gmra.mrb[0].mxu0 %v1087
  %v1230 = vpop.f32.mrb[0].mxu0
  %v1231 = vadd.f32 0.0, %v1230
  %v1232 = vpop.f32.mrb[0].mxu0
  %v1233 = vadd.f32 0.0, %v1232
  %1234 = vmatprep.mubr.f32.mxu0 0.0
  %1235 = vmatmul.mubr.f32.gmra.mrb[0].mxu0 %v1090
  %v1236 = vpop.f32.mrb[0].mxu0
  %v1237 = vadd.f32 0.0, %v1236
  %v1238 = vpop.f32.mrb[0].mxu0
  %v1239 = vadd.f32 0.0, %v1238
  %1240 = vmatprep.mubr.f32.mxu0 0.0
  %1241 = vmatmul.mubr.f32.gmra.mrb[0].mxu0 %v1093
  %v1242 = vpop.f32.mrb[0].mxu0
  %v1243 = vadd.f32 0.0, %v1242
  %v1244 = vpop.f32.mrb[0].mxu0
  %v1245 = vadd.f32 0.0, %v1244
  %1246 = vmatprep.mubr.f32.mxu0 0.0
  %1247 = vmatmul.mubr.f32.gmra.mrb[0].mxu0 %v1096
  %v1248 = vpop.f32.mrb[0].mxu0
  %v1249 = vadd.f32 0.0, %v1248
  %v1250 = vpop.f32.mrb[0].mxu0
  %v1251 = vadd.f32 0.0, %v1250
  %1252 = vmatprep.mubr.f32.mxu0 0.0
  %1253 = vmatmul.mubr.f32.gmra.mrb[0].mxu0 %v1099
  %v1254 = vpop.f32.mrb[0].mxu0
  %v1255 = vadd.f32 0.0, %v1254
  %v1256 = vpop.f32.mrb[0].mxu0
  %v1257 = vadd.f32 0.0, %v1256
  %1258 = vmatprep.mubr.f32.mxu0 0.0
  %1259 = vmatmul.mubr.f32.gmra.mrb[0].mxu0 %v1102
  %v1260 = vpop.f32.mrb[0].mxu0
  %v1261 = vadd.f32 0.0, %v1260
  %v1262 = vpop.f32.mrb[0].mxu0
  %v1263 = vadd.f32 0.0, %v1262
  %1264 = vmatprep.mubr.f32.mxu0 0.0
  %1265 = vmatmul.mubr.f32.gmra.mrb[0].mxu0 %v1105
  %v1266 = vpop.f32.mrb[0].mxu0
  %v1267 = vadd.f32 0.0, %v1266
  %v1268 = vpop.f32.mrb[0].mxu0
  %v1269 = vadd.f32 0.0, %v1268
  %1270 = vmatprep.mubr.f32.mxu0 0.0
  %1271 = vmatmul.mubr.f32.gmra.mrb[0].mxu0 %v1108
  %v1272 = vpop.f32.mrb[0].mxu0
  %v1273 = vadd.f32 0.0, %v1272
  %v1274 = vpop.f32.mrb[0].mxu0
  %v1275 = vadd.f32 0.0, %v1274
  %1276 = vmatprep.mubr.f32.mxu0 0.0
  %1277 = vmatmul.mubr.f32.gmra.mrb[0].mxu0 %v1111
  %v1278 = vpop.f32.mrb[0].mxu0
  %v1279 = vadd.f32 0.0, %v1278
  %v1280 = vpop.f32.mrb[0].mxu0
  %v1281 = vadd.f32 0.0, %v1280
  %1282 = vmatprep.mubr.f32.mxu0 0.0
  %1283 = vmatmul.mubr.f32.gmra.mrb[0].mxu0 %v1114
  %v1284 = vpop.f32.mrb[0].mxu0
  %v1285 = vadd.f32 0.0, %v1284
  %v1286 = vpop.f32.mrb[0].mxu0
  %v1287 = vadd.f32 0.0, %v1286
  %1288 = vmatprep.mubr.f32.mxu0 0.0
  %1289 = vmatmul.mubr.f32.gmra.mrb[0].mxu0 %v1117
  %v1290 = vpop.f32.mrb[0].mxu0
  %v1291 = vadd.f32 0.0, %v1290
  %v1292 = vpop.f32.mrb[0].mxu0
  %v1293 = vadd.f32 0.0, %v1292
  %1294 = vmatprep.mubr.f32.mxu0 0.0
  %1295 = vmatmul.mubr.f32.gmra.mrb[0].mxu0 %v1120
  %v1296 = vpop.f32.mrb[0].mxu0
  %v1297 = vadd.f32 0.0, %v1296
  %v1298 = vpop.f32.mrb[0].mxu0
  %v1299 = vadd.f32 0.0, %v1298
  %1300 = vmatprep.mubr.f32.mxu0 0.0
  %1301 = vmatmul.mubr.f32.gmra.mrb[0].mxu0 %v1123
  %v1302 = vpop.f32.mrb[0].mxu0
  %v1303 = vadd.f32 0.0, %v1302
  %v1304 = vpop.f32.mrb[0].mxu0
  %v1305 = vadd.f32 0.0, %v1304
  %1306 = vmatprep.mubr.f32.mxu0 0.0
  %1307 = vmatmul.mubr.f32.gmra.mrb[0].mxu0 %v1126
  %v1308 = vpop.f32.mrb[0].mxu0
  %v1309 = vadd.f32 0.0, %v1308
  %v1310 = vpop.f32.mrb[0].mxu0
  %v1311 = vadd.f32 0.0, %v1310
  %1312 = vmatprep.mubr.f32.mxu0 0.0
  %1313 = vmatmul.mubr.f32.gmra.mrb[0].mxu0 %v1129
  %v1314 = vpop.f32.mrb[0].mxu0
  %v1315 = vadd.f32 0.0, %v1314
  %v1316 = vpop.f32.mrb[0].mxu0
  %v1317 = vadd.f32 0.0, %v1316
  %1318 = vmatprep.mubr.f32.mxu0 0.0
  %1319 = vmatmul.mubr.f32.gmra.mrb[0].mxu0 %v1132
  %v1320 = vpop.f32.mrb[0].mxu0
  %v1321 = vadd.f32 0.0, %v1320
  %v1322 = vpop.f32.mrb[0].mxu0
  %v1323 = vadd.f32 0.0, %v1322
  %1324 = vmatprep.mubr.f32.mxu0 0.0
  %1325 = vmatmul.mubr.f32.gmra.mrb[0].mxu0 %v1135
  %v1326 = vpop.f32.mrb[0].mxu0
  %v1327 = vadd.f32 0.0, %v1326
  %v1328 = vpop.f32.mrb[0].mxu0
  %v1329 = vadd.f32 0.0, %v1328
  %1330 = vmatprep.mubr.f32.mxu0 0.0
  %1331 = vmatmul.mubr.f32.gmra.mrb[0].mxu0 %v1138
  %v1332 = vpop.f32.mrb[0].mxu0
  %v1333 = vadd.f32 0.0, %v1332
  %v1334 = vpop.f32.mrb[0].mxu0
  %v1335 = vadd.f32 0.0, %v1334
  %1336 = vmatprep.mubr.f32.mxu0 0.0
  %1337 = vmatmul.mubr.f32.gmra.mrb[0].mxu0 %v1141
  %v1338 = vpop.f32.mrb[0].mxu0
  %v1339 = vadd.f32 0.0, %v1338
  %v1340 = vpop.f32.mrb[0].mxu0
  %v1341 = vadd.f32 0.0, %v1340
  %1342 = vmatprep.mubr.f32.mxu0 0.0
  %1343 = vmatmul.mubr.f32.gmra.mrb[0].mxu0 %v1144
  %v1344 = vpop.f32.mrb[0].mxu0
  %v1345 = vadd.f32 0.0, %v1344
  %v1346 = vpop.f32.mrb[0].mxu0
  %v1347 = vadd.f32 0.0, %v1346
  %1348 = vmatprep.mubr.f32.mxu0 0.0
  %1349 = vmatmul.mubr.f32.gmra.mrb[0].mxu0 %v1147
  %v1350 = vpop.f32.mrb[0].mxu0
  %v1351 = vadd.f32 0.0, %v1350
  %v1352 = vpop.f32.mrb[0].mxu0
  %v1353 = vadd.f32 0.0, %v1352
  %1354 = vmatprep.mubr.f32.mxu0 0.0
  %1355 = vmatmul.mubr.f32.gmra.mrb[0].mxu0 %v1150
  %v1356 = vpop.f32.mrb[0].mxu0
  %v1357 = vadd.f32 0.0, %v1356
  %v1358 = vpop.f32.mrb[0].mxu0
  %v1359 = vadd.f32 0.0, %v1358
  %1360 = vmatprep.mubr.f32.mxu0 0.0
  %1361 = vmatmul.mubr.f32.gmra.mrb[0].mxu0 %v1153
  %v1362 = vpop.f32.mrb[0].mxu0
  %v1363 = vadd.f32 0.0, %v1362
  %v1364 = vpop.f32.mrb[0].mxu0
  %v1365 = vadd.f32 0.0, %v1364
  %1366 = vmatprep.mubr.f32.mxu0 0.0
  %1367 = vmatmul.mubr.f32.gmra.mrb[0].mxu0 %v1156
  %v1368 = vpop.f32.mrb[0].mxu0
  %v1369 = vadd.f32 0.0, %v1368
  %v1370 = vpop.f32.mrb[0].mxu0
  %v1371 = vadd.f32 0.0, %v1370
  %1372 = vdwg.mxu0
  %v1373 = vadd.f32 %v1005, %v1231
  %v1374 = vadd.f32 %v1006, %v1233
  %v1375 = vadd.f32 %v1007, %v1237
  %v1376 = vadd.f32 %v1008, %v1239
  %v1377 = vadd.f32 %v1009, %v1243
  %v1378 = vadd.f32 %v1010, %v1245
  %v1379 = vadd.f32 %v1011, %v1249
  %v1380 = vadd.f32 %v1012, %v1251
  %v1381 = vadd.f32 %v1013, %v1255
  %v1382 = vadd.f32 %v1014, %v1257
  %v1383 = vadd.f32 %v1015, %v1261
  %v1384 = vadd.f32 %v1016, %v1263
  %v1385 = vadd.f32 %v1017, %v1267
  %v1386 = vadd.f32 %v1018, %v1269
  %v1387 = vadd.f32 %v1019, %v1273
  %v1388 = vadd.f32 %v1020, %v1275
  %v1389 = vadd.f32 %v1021, %v1279
  %v1390 = vadd.f32 %v1022, %v1281
  %v1391 = vadd.f32 %v1023, %v1285
  %v1392 = vadd.f32 %v1024, %v1287
  %v1393 = vadd.f32 %v1025, %v1291
  %v1394 = vadd.f32 %v1026, %v1293
  %v1395 = vadd.f32 %v1027, %v1297
  %v1396 = vadd.f32 %v1028, %v1299
  %v1397 = vadd.f32 %v1029, %v1303
  %v1398 = vadd.f32 %v1030, %v1305
  %v1399 = vadd.f32 %v1031, %v1309
  %v1400 = vadd.f32 %v1032, %v1311
  %v1401 = vadd.f32 %v1033, %v1315
  %v1402 = vadd.f32 %v1034, %v1317
  %v1403 = vadd.f32 %v1035, %v1321
  %v1404 = vadd.f32 %v1036, %v1323
  %v1405 = vadd.f32 %v1037, %v1327
  %v1406 = vadd.f32 %v1038, %v1329
  %v1407 = vadd.f32 %v1039, %v1333
  %v1408 = vadd.f32 %v1040, %v1335
  %v1409 = vadd.f32 %v1041, %v1339
  %v1410 = vadd.f32 %v1042, %v1341
  %v1411 = vadd.f32 %v1043, %v1345
  %v1412 = vadd.f32 %v1044, %v1347
  %v1413 = vadd.f32 %v1045, %v1351
  %v1414 = vadd.f32 %v1046, %v1353
  %v1415 = vadd.f32 %v1047, %v1357
  %v1416 = vadd.f32 %v1048, %v1359
  %v1417 = vadd.f32 %v1049, %v1363
  %v1418 = vadd.f32 %v1050, %v1365
  %v1419 = vadd.f32 %v1051, %v1369
  %v1420 = vadd.f32 %v1052, %v1371
  %v1421 = vld [vmem:[%s0 + $0x4] sm:$0xff]
  %v1422 = vld [vmem:[%s0 + $0xc] sm:$0xff]
  %v1423 = vld [vmem:[%s0 + $0x14] sm:$0xff]
  %v1424 = vld [vmem:[%s0 + $0x24] sm:$0xff]
  %v1425 = vld [vmem:[%s0 + $0x2c] sm:$0xff]
  %v1426 = vld [vmem:[%s0 + $0x34] sm:$0xff]
  %v1427 = vld [vmem:[%s0 + $0x44] sm:$0xff]
  %v1428 = vld [vmem:[%s0 + $0x4c] sm:$0xff]
  %v1429 = vld [vmem:[%s0 + $0x54] sm:$0xff]
  %v1430 = vld [vmem:[%s0 + $0x64] sm:$0xff]
  %v1431 = vld [vmem:[%s0 + $0x6c] sm:$0xff]
  %v1432 = vld [vmem:[%s0 + $0x74] sm:$0xff]
  %v1433 = vld [vmem:[%s0 + $0x84] sm:$0xff]
  %v1434 = vld [vmem:[%s0 + $0x8c] sm:$0xff]
  %v1435 = vld [vmem:[%s0 + $0x94] sm:$0xff]
  %v1436 = vld [vmem:[%s0 + $0xa4] sm:$0xff]
  %v1437 = vld [vmem:[%s0 + $0xac] sm:$0xff]
  %v1438 = vld [vmem:[%s0 + $0xb4] sm:$0xff]
  %v1439 = vld [vmem:[%s0 + $0xc4] sm:$0xff]
  %v1440 = vld [vmem:[%s0 + $0xcc] sm:$0xff]
  %v1441 = vld [vmem:[%s0 + $0xd4] sm:$0xff]
  %v1442 = vld [vmem:[%s0 + $0xe4] sm:$0xff]
  %v1443 = vld [vmem:[%s0 + $0xec] sm:$0xff]
  %v1444 = vld [vmem:[%s0 + $0xf4] sm:$0xff]
  %s1445 = scalar_lea.vmem %s1, 256
  %v1446 = vld [vmem:[%s1445] sm:$0xff]
  %v1447 = vld [vmem:[%s1445 + $0x8] sm:$0xff]
  %v1448 = vld [vmem:[%s1445 + $0x10] sm:$0xff]
  %v1449 = vld [vmem:[%s1445 + $0x18] sm:$0xff]
  %v1450 = vld [vmem:[%s1445 + $0x20] sm:$0xff]
  %v1451 = vld [vmem:[%s1445 + $0x28] sm:$0xff]
  %v1452 = vld [vmem:[%s1445 + $0x30] sm:$0xf]
  %v1453 = vld [vmem:[%s1445 + $0x38] sm:$0xf]
  %v1455 = vsel %vm109, %v1421, 0
  %v1458 = vsel %vm109, %v1422, 0
  %v1461 = vsel %vm109, %v1423, 0
  %v1464 = vsel %vm109, %v1424, 0
  %v1467 = vsel %vm109, %v1425, 0
  %v1470 = vsel %vm109, %v1426, 0
  %v1473 = vsel %vm109, %v1427, 0
  %v1476 = vsel %vm109, %v1428, 0
  %v1479 = vsel %vm109, %v1429, 0
  %v1482 = vsel %vm109, %v1430, 0
  %v1485 = vsel %vm109, %v1431, 0
  %v1488 = vsel %vm109, %v1432, 0
  %v1491 = vsel %vm109, %v1433, 0
  %v1494 = vsel %vm109, %v1434, 0
  %v1497 = vsel %vm109, %v1435, 0
  %v1500 = vsel %vm109, %v1436, 0
  %v1503 = vsel %vm109, %v1437, 0
  %v1506 = vsel %vm109, %v1438, 0
  %v1509 = vsel %vm109, %v1439, 0
  %v1512 = vsel %vm109, %v1440, 0
  %v1515 = vsel %vm109, %v1441, 0
  %v1518 = vsel %vm109, %v1442, 0
  %v1521 = vsel %vm109, %v1443, 0
  %v1524 = vsel %vm109, %v1444, 0
  %v1527 = vsel %vm182, %v1452, 0
  %v1530 = vsel %vm182, %v1453, 0
  %1532 = vmatprep.subr.mxu0 %v1447
  %1533 = vmatpush1.msra.mxu0 %v1446
  %1534 = vmatprep.subr.mxu0 %v1449
  %1535 = vmatpush1.msra.mxu0 %v1448
  %1536 = vmatprep.subr.mxu0 %v1451
  %1537 = vmatpush1.msra.mxu0 %v1450
  %1538 = vmatprep.subr.mxu0 %v1530
  %1539 = vmatpush1.msra.mxu0 %v1527
  %1540 = vmatprep.subr.mxu0 0.0
  %1541 = vmatpush1.msra.mxu0 0.0
  %1542 = vmatprep.subr.mxu0 0.0
  %1543 = vmatpush1.msra.mxu0 0.0
  %1544 = vmatprep.subr.mxu0 0.0
  %1545 = vmatpush1.msra.mxu0 0.0
  %1546 = vmatprep.subr.mxu0 0.0
  %1547 = vmatpush1.msra.mxu0 0.0
  %1548 = vmatprep.subr.mxu0 0.0
  %1549 = vmatpush1.msra.mxu0 0.0
  %1550 = vmatprep.subr.mxu0 0.0
  %1551 = vmatpush1.msra.mxu0 0.0
  %1552 = vmatprep.subr.mxu0 0.0
  %1553 = vmatpush1.msra.mxu0 0.0
  %1554 = vmatprep.subr.mxu0 0.0
  %1555 = vmatpush1.msra.mxu0 0.0
  %1556 = vmatprep.subr.mxu0 0.0
  %1557 = vmatpush1.msra.mxu0 0.0
  %1558 = vmatprep.subr.mxu0 0.0
  %1559 = vmatpush1.msra.mxu0 0.0
  %1560 = vmatprep.subr.mxu0 0.0
  %1561 = vmatpush1.msra.mxu0 0.0
  %1562 = vmatprep.subr.mxu0 0.0
  %1563 = vmatpush1.msra.mxu0 0.0
  %1564 = vmatprep.subr.mxu0 0.0
  %1565 = vmatpush1.msra.mxu0 0.0
  %1566 = vmatprep.subr.mxu0 0.0
  %1567 = vmatpush1.msra.mxu0 0.0
  %1568 = vmatprep.subr.mxu0 0.0
  %1569 = vmatpush1.msra.mxu0 0.0
  %1570 = vmatprep.subr.mxu0 0.0
  %1571 = vmatpush1.msra.mxu0 0.0
  %1572 = vmatprep.subr.mxu0 0.0
  %1573 = vmatpush1.msra.mxu0 0.0
  %1574 = vmatprep.subr.mxu0 0.0
  %1575 = vmatpush1.msra.mxu0 0.0
  %1576 = vmatprep.subr.mxu0 0.0
  %1577 = vmatpush1.msra.mxu0 0.0
  %1578 = vmatprep.subr.mxu0 0.0
  %1579 = vmatpush1.msra.mxu0 0.0
  %1580 = vmatprep.subr.mxu0 0.0
  %1581 = vmatpush1.msra.mxu0 0.0
  %1582 = vmatprep.subr.mxu0 0.0
  %1583 = vmatpush1.msra.mxu0 0.0
  %1584 = vmatprep.subr.mxu0 0.0
  %1585 = vmatpush1.msra.mxu0 0.0
  %1586 = vmatprep.subr.mxu0 0.0
  %1587 = vmatpush1.msra.mxu0 0.0
  %1588 = vmatprep.subr.mxu0 0.0
  %1589 = vmatpush1.msra.mxu0 0.0
  %1590 = vmatprep.subr.mxu0 0.0
  %1591 = vmatpush1.msra.mxu0 0.0
  %1592 = vmatprep.subr.mxu0 0.0
  %1593 = vmatpush1.msra.mxu0 0.0
  %1594 = vmatprep.subr.mxu0 0.0
  %1595 = vmatpush1.msra.mxu0 0.0
  %1596 = vmatprep.mubr.f32.mxu0 0.0
  %1597 = vmatmul.mubr.f32.gmra.mrb[0].mxu0 %v1455
  %v1598 = vpop.f32.mrb[0].mxu0
  %v1599 = vadd.f32 0.0, %v1598
  %v1600 = vpop.f32.mrb[0].mxu0
  %v1601 = vadd.f32 0.0, %v1600
  %1602 = vmatprep.mubr.f32.mxu0 0.0
  %1603 = vmatmul.mubr.f32.gmra.mrb[0].mxu0 %v1458
  %v1604 = vpop.f32.mrb[0].mxu0
  %v1605 = vadd.f32 0.0, %v1604
  %v1606 = vpop.f32.mrb[0].mxu0
  %v1607 = vadd.f32 0.0, %v1606
  %1608 = vmatprep.mubr.f32.mxu0 0.0
  %1609 = vmatmul.mubr.f32.gmra.mrb[0].mxu0 %v1461
  %v1610 = vpop.f32.mrb[0].mxu0
  %v1611 = vadd.f32 0.0, %v1610
  %v1612 = vpop.f32.mrb[0].mxu0
  %v1613 = vadd.f32 0.0, %v1612
  %1614 = vmatprep.mubr.f32.mxu0 0.0
  %1615 = vmatmul.mubr.f32.gmra.mrb[0].mxu0 %v1464
  %v1616 = vpop.f32.mrb[0].mxu0
  %v1617 = vadd.f32 0.0, %v1616
  %v1618 = vpop.f32.mrb[0].mxu0
  %v1619 = vadd.f32 0.0, %v1618
  %1620 = vmatprep.mubr.f32.mxu0 0.0
  %1621 = vmatmul.mubr.f32.gmra.mrb[0].mxu0 %v1467
  %v1622 = vpop.f32.mrb[0].mxu0
  %v1623 = vadd.f32 0.0, %v1622
  %v1624 = vpop.f32.mrb[0].mxu0
  %v1625 = vadd.f32 0.0, %v1624
  %1626 = vmatprep.mubr.f32.mxu0 0.0
  %1627 = vmatmul.mubr.f32.gmra.mrb[0].mxu0 %v1470
  %v1628 = vpop.f32.mrb[0].mxu0
  %v1629 = vadd.f32 0.0, %v1628
  %v1630 = vpop.f32.mrb[0].mxu0
  %v1631 = vadd.f32 0.0, %v1630
  %1632 = vmatprep.mubr.f32.mxu0 0.0
  %1633 = vmatmul.mubr.f32.gmra.mrb[0].mxu0 %v1473
  %v1634 = vpop.f32.mrb[0].mxu0
  %v1635 = vadd.f32 0.0, %v1634
  %v1636 = vpop.f32.mrb[0].mxu0
  %v1637 = vadd.f32 0.0, %v1636
  %1638 = vmatprep.mubr.f32.mxu0 0.0
  %1639 = vmatmul.mubr.f32.gmra.mrb[0].mxu0 %v1476
  %v1640 = vpop.f32.mrb[0].mxu0
  %v1641 = vadd.f32 0.0, %v1640
  %v1642 = vpop.f32.mrb[0].mxu0
  %v1643 = vadd.f32 0.0, %v1642
  %1644 = vmatprep.mubr.f32.mxu0 0.0
  %1645 = vmatmul.mubr.f32.gmra.mrb[0].mxu0 %v1479
  %v1646 = vpop.f32.mrb[0].mxu0
  %v1647 = vadd.f32 0.0, %v1646
  %v1648 = vpop.f32.mrb[0].mxu0
  %v1649 = vadd.f32 0.0, %v1648
  %1650 = vmatprep.mubr.f32.mxu0 0.0
  %1651 = vmatmul.mubr.f32.gmra.mrb[0].mxu0 %v1482
  %v1652 = vpop.f32.mrb[0].mxu0
  %v1653 = vadd.f32 0.0, %v1652
  %v1654 = vpop.f32.mrb[0].mxu0
  %v1655 = vadd.f32 0.0, %v1654
  %1656 = vmatprep.mubr.f32.mxu0 0.0
  %1657 = vmatmul.mubr.f32.gmra.mrb[0].mxu0 %v1485
  %v1658 = vpop.f32.mrb[0].mxu0
  %v1659 = vadd.f32 0.0, %v1658
  %v1660 = vpop.f32.mrb[0].mxu0
  %v1661 = vadd.f32 0.0, %v1660
  %1662 = vmatprep.mubr.f32.mxu0 0.0
  %1663 = vmatmul.mubr.f32.gmra.mrb[0].mxu0 %v1488
  %v1664 = vpop.f32.mrb[0].mxu0
  %v1665 = vadd.f32 0.0, %v1664
  %v1666 = vpop.f32.mrb[0].mxu0
  %v1667 = vadd.f32 0.0, %v1666
  %1668 = vmatprep.mubr.f32.mxu0 0.0
  %1669 = vmatmul.mubr.f32.gmra.mrb[0].mxu0 %v1491
  %v1670 = vpop.f32.mrb[0].mxu0
  %v1671 = vadd.f32 0.0, %v1670
  %v1672 = vpop.f32.mrb[0].mxu0
  %v1673 = vadd.f32 0.0, %v1672
  %1674 = vmatprep.mubr.f32.mxu0 0.0
  %1675 = vmatmul.mubr.f32.gmra.mrb[0].mxu0 %v1494
  %v1676 = vpop.f32.mrb[0].mxu0
  %v1677 = vadd.f32 0.0, %v1676
  %v1678 = vpop.f32.mrb[0].mxu0
  %v1679 = vadd.f32 0.0, %v1678
  %1680 = vmatprep.mubr.f32.mxu0 0.0
  %1681 = vmatmul.mubr.f32.gmra.mrb[0].mxu0 %v1497
  %v1682 = vpop.f32.mrb[0].mxu0
  %v1683 = vadd.f32 0.0, %v1682
  %v1684 = vpop.f32.mrb[0].mxu0
  %v1685 = vadd.f32 0.0, %v1684
  %1686 = vmatprep.mubr.f32.mxu0 0.0
  %1687 = vmatmul.mubr.f32.gmra.mrb[0].mxu0 %v1500
  %v1688 = vpop.f32.mrb[0].mxu0
  %v1689 = vadd.f32 0.0, %v1688
  %v1690 = vpop.f32.mrb[0].mxu0
  %v1691 = vadd.f32 0.0, %v1690
  %1692 = vmatprep.mubr.f32.mxu0 0.0
  %1693 = vmatmul.mubr.f32.gmra.mrb[0].mxu0 %v1503
  %v1694 = vpop.f32.mrb[0].mxu0
  %v1695 = vadd.f32 0.0, %v1694
  %v1696 = vpop.f32.mrb[0].mxu0
  %v1697 = vadd.f32 0.0, %v1696
  %1698 = vmatprep.mubr.f32.mxu0 0.0
  %1699 = vmatmul.mubr.f32.gmra.mrb[0].mxu0 %v1506
  %v1700 = vpop.f32.mrb[0].mxu0
  %v1701 = vadd.f32 0.0, %v1700
  %v1702 = vpop.f32.mrb[0].mxu0
  %v1703 = vadd.f32 0.0, %v1702
  %1704 = vmatprep.mubr.f32.mxu0 0.0
  %1705 = vmatmul.mubr.f32.gmra.mrb[0].mxu0 %v1509
  %v1706 = vpop.f32.mrb[0].mxu0
  %v1707 = vadd.f32 0.0, %v1706
  %v1708 = vpop.f32.mrb[0].mxu0
  %v1709 = vadd.f32 0.0, %v1708
  %1710 = vmatprep.mubr.f32.mxu0 0.0
  %1711 = vmatmul.mubr.f32.gmra.mrb[0].mxu0 %v1512
  %v1712 = vpop.f32.mrb[0].mxu0
  %v1713 = vadd.f32 0.0, %v1712
  %v1714 = vpop.f32.mrb[0].mxu0
  %v1715 = vadd.f32 0.0, %v1714
  %1716 = vmatprep.mubr.f32.mxu0 0.0
  %1717 = vmatmul.mubr.f32.gmra.mrb[0].mxu0 %v1515
  %v1718 = vpop.f32.mrb[0].mxu0
  %v1719 = vadd.f32 0.0, %v1718
  %v1720 = vpop.f32.mrb[0].mxu0
  %v1721 = vadd.f32 0.0, %v1720
  %1722 = vmatprep.mubr.f32.mxu0 0.0
  %1723 = vmatmul.mubr.f32.gmra.mrb[0].mxu0 %v1518
  %v1724 = vpop.f32.mrb[0].mxu0
  %v1725 = vadd.f32 0.0, %v1724
  %v1726 = vpop.f32.mrb[0].mxu0
  %v1727 = vadd.f32 0.0, %v1726
  %1728 = vmatprep.mubr.f32.mxu0 0.0
  %1729 = vmatmul.mubr.f32.gmra.mrb[0].mxu0 %v1521
  %v1730 = vpop.f32.mrb[0].mxu0
  %v1731 = vadd.f32 0.0, %v1730
  %v1732 = vpop.f32.mrb[0].mxu0
  %v1733 = vadd.f32 0.0, %v1732
  %1734 = vmatprep.mubr.f32.mxu0 0.0
  %1735 = vmatmul.mubr.f32.gmra.mrb[0].mxu0 %v1524
  %v1736 = vpop.f32.mrb[0].mxu0
  %v1737 = vadd.f32 0.0, %v1736
  %v1738 = vpop.f32.mrb[0].mxu0
  %v1739 = vadd.f32 0.0, %v1738
  %1740 = vdwg.mxu0
  %v1741 = vadd.f32 %v1373, %v1599
  %v1742 = vadd.f32 %v1374, %v1601
  %v1743 = vadd.f32 %v1375, %v1605
  %v1744 = vadd.f32 %v1376, %v1607
  %v1745 = vadd.f32 %v1377, %v1611
  %v1746 = vadd.f32 %v1378, %v1613
  %v1747 = vadd.f32 %v1379, %v1617
  %v1748 = vadd.f32 %v1380, %v1619
  %v1749 = vadd.f32 %v1381, %v1623
  %v1750 = vadd.f32 %v1382, %v1625
  %v1751 = vadd.f32 %v1383, %v1629
  %v1752 = vadd.f32 %v1384, %v1631
  %v1753 = vadd.f32 %v1385, %v1635
  %v1754 = vadd.f32 %v1386, %v1637
  %v1755 = vadd.f32 %v1387, %v1641
  %v1756 = vadd.f32 %v1388, %v1643
  %v1757 = vadd.f32 %v1389, %v1647
  %v1758 = vadd.f32 %v1390, %v1649
  %v1759 = vadd.f32 %v1391, %v1653
  %v1760 = vadd.f32 %v1392, %v1655
  %v1761 = vadd.f32 %v1393, %v1659
  %v1762 = vadd.f32 %v1394, %v1661
  %v1763 = vadd.f32 %v1395, %v1665
  %v1764 = vadd.f32 %v1396, %v1667
  %v1765 = vadd.f32 %v1397, %v1671
  %v1766 = vadd.f32 %v1398, %v1673
  %v1767 = vadd.f32 %v1399, %v1677
  %v1768 = vadd.f32 %v1400, %v1679
  %v1769 = vadd.f32 %v1401, %v1683
  %v1770 = vadd.f32 %v1402, %v1685
  %v1771 = vadd.f32 %v1403, %v1689
  %v1772 = vadd.f32 %v1404, %v1691
  %v1773 = vadd.f32 %v1405, %v1695
  %v1774 = vadd.f32 %v1406, %v1697
  %v1775 = vadd.f32 %v1407, %v1701
  %v1776 = vadd.f32 %v1408, %v1703
  %v1777 = vadd.f32 %v1409, %v1707
  %v1778 = vadd.f32 %v1410, %v1709
  %v1779 = vadd.f32 %v1411, %v1713
  %v1780 = vadd.f32 %v1412, %v1715
  %v1781 = vadd.f32 %v1413, %v1719
  %v1782 = vadd.f32 %v1414, %v1721
  %v1783 = vadd.f32 %v1415, %v1725
  %v1784 = vadd.f32 %v1416, %v1727
  %v1785 = vadd.f32 %v1417, %v1731
  %v1786 = vadd.f32 %v1418, %v1733
  %v1787 = vadd.f32 %v1419, %v1737
  %v1788 = vadd.f32 %v1420, %v1739
  %v1789 = vld [vmem:[%s2] sm:$0x3]
  %v1791 = vlaneseq
  %v1792 = vshrl.u32 %v1791, 7
  %v1793 = vsub.s32 0, %v1792
  %v1794 = vrot.slane %v1789, %v1793
  %v1795 = vlaneseq
  %v1796 = vshrl.u32 %v1795, 7
  %v1797 = vsub.s32 1, %v1796
  %v1798 = vrot.slane %v1789, %v1797
  %v1801 = vadd.f32 %v1741, %v1794
  %v1802 = vadd.f32 %v1742, %v1798
  %v1803 = vadd.f32 %v1743, %v1794
  %v1804 = vadd.f32 %v1744, %v1798
  %v1805 = vadd.f32 %v1745, %v1794
  %v1806 = vadd.f32 %v1746, %v1798
  %v1807 = vadd.f32 %v1747, %v1794
  %v1808 = vadd.f32 %v1748, %v1798
  %v1809 = vadd.f32 %v1749, %v1794
  %v1810 = vadd.f32 %v1750, %v1798
  %v1811 = vadd.f32 %v1751, %v1794
  %v1812 = vadd.f32 %v1752, %v1798
  %v1813 = vadd.f32 %v1753, %v1794
  %v1814 = vadd.f32 %v1754, %v1798
  %v1815 = vadd.f32 %v1755, %v1794
  %v1816 = vadd.f32 %v1756, %v1798
  %v1817 = vadd.f32 %v1757, %v1794
  %v1818 = vadd.f32 %v1758, %v1798
  %v1819 = vadd.f32 %v1759, %v1794
  %v1820 = vadd.f32 %v1760, %v1798
  %v1821 = vadd.f32 %v1761, %v1794
  %v1822 = vadd.f32 %v1762, %v1798
  %v1823 = vadd.f32 %v1763, %v1794
  %v1824 = vadd.f32 %v1764, %v1798
  %v1825 = vadd.f32 %v1765, %v1794
  %v1826 = vadd.f32 %v1766, %v1798
  %v1827 = vadd.f32 %v1767, %v1794
  %v1828 = vadd.f32 %v1768, %v1798
  %v1829 = vadd.f32 %v1769, %v1794
  %v1830 = vadd.f32 %v1770, %v1798
  %v1831 = vadd.f32 %v1771, %v1794
  %v1832 = vadd.f32 %v1772, %v1798
  %v1833 = vadd.f32 %v1773, %v1794
  %v1834 = vadd.f32 %v1774, %v1798
  %v1835 = vadd.f32 %v1775, %v1794
  %v1836 = vadd.f32 %v1776, %v1798
  %v1837 = vadd.f32 %v1777, %v1794
  %v1838 = vadd.f32 %v1778, %v1798
  %v1839 = vadd.f32 %v1779, %v1794
  %v1840 = vadd.f32 %v1780, %v1798
  %v1841 = vadd.f32 %v1781, %v1794
  %v1842 = vadd.f32 %v1782, %v1798
  %v1843 = vadd.f32 %v1783, %v1794
  %v1844 = vadd.f32 %v1784, %v1798
  %v1845 = vadd.f32 %v1785, %v1794
  %v1846 = vadd.f32 %v1786, %v1798
  %v1847 = vadd.f32 %v1787, %v1794
  %v1848 = vadd.f32 %v1788, %v1798
  %v1849 = vld [vmem:[%s5] sm:$0xff]
  %v1850 = vld [vmem:[%s5 + $0x8] sm:$0xff]
  %v1851 = vld [vmem:[%s5 + $0x10] sm:$0xff]
  %v1852 = vld [vmem:[%s5 + $0x18] sm:$0xff]
  %v1853 = vld [vmem:[%s5 + $0x20] sm:$0xff]
  %v1854 = vld [vmem:[%s5 + $0x28] sm:$0xff]
  %v1855 = vld [vmem:[%s5 + $0x30] sm:$0xff]
  %v1856 = vld [vmem:[%s5 + $0x38] sm:$0xff]
  %v1857 = vld [vmem:[%s5 + $0x40] sm:$0xff]
  %v1858 = vld [vmem:[%s5 + $0x48] sm:$0xff]
  %v1859 = vld [vmem:[%s5 + $0x50] sm:$0xff]
  %v1860 = vld [vmem:[%s5 + $0x58] sm:$0xff]
  %v1861 = vld [vmem:[%s5 + $0x60] sm:$0xff]
  %v1862 = vld [vmem:[%s5 + $0x68] sm:$0xff]
  %v1863 = vld [vmem:[%s5 + $0x70] sm:$0xff]
  %v1864 = vld [vmem:[%s5 + $0x78] sm:$0xff]
  %v1865 = vld [vmem:[%s5 + $0x80] sm:$0xff]
  %v1866 = vld [vmem:[%s5 + $0x88] sm:$0xff]
  %v1867 = vld [vmem:[%s5 + $0x90] sm:$0xff]
  %v1868 = vld [vmem:[%s5 + $0x98] sm:$0xff]
  %v1869 = vld [vmem:[%s5 + $0xa0] sm:$0xff]
  %v1870 = vld [vmem:[%s5 + $0xa8] sm:$0xff]
  %v1871 = vld [vmem:[%s5 + $0xb0] sm:$0xff]
  %v1872 = vld [vmem:[%s5 + $0xb8] sm:$0xff]
  %v1873 = vld [vmem:[%s5 + $0xc0] sm:$0xff]
  %v1874 = vld [vmem:[%s5 + $0xc8] sm:$0xff]
  %v1875 = vld [vmem:[%s5 + $0xd0] sm:$0xff]
  %v1876 = vld [vmem:[%s5 + $0xd8] sm:$0xff]
  %v1877 = vld [vmem:[%s5 + $0xe0] sm:$0xff]
  %v1878 = vld [vmem:[%s5 + $0xe8] sm:$0xff]
  %vm1879 = vcmask 916480
  %v1881 = vsel %vm1879, %v1802, 0
  %v1884 = vsel %vm1879, %v1804, 0
  %v1887 = vsel %vm1879, %v1806, 0
  %v1890 = vsel %vm1879, %v1808, 0
  %v1893 = vsel %vm1879, %v1810, 0
  %v1896 = vsel %vm1879, %v1812, 0
  %v1899 = vsel %vm1879, %v1814, 0
  %v1902 = vsel %vm1879, %v1816, 0
  %v1905 = vsel %vm1879, %v1818, 0
  %v1908 = vsel %vm1879, %v1820, 0
  %v1911 = vsel %vm1879, %v1822, 0
  %v1914 = vsel %vm1879, %v1824, 0
  %v1917 = vsel %vm1879, %v1826, 0
  %v1920 = vsel %vm1879, %v1828, 0
  %v1923 = vsel %vm1879, %v1830, 0
  %v1926 = vsel %vm1879, %v1832, 0
  %v1929 = vsel %vm1879, %v1834, 0
  %v1932 = vsel %vm1879, %v1836, 0
  %v1935 = vsel %vm1879, %v1838, 0
  %v1938 = vsel %vm1879, %v1840, 0
  %v1941 = vsel %vm1879, %v1842, 0
  %v1944 = vsel %vm1879, %v1844, 0
  %v1947 = vsel %vm1879, %v1846, 0
  %v1950 = vsel %vm1879, %v1848, 0
  %1952 = vmatprep.subr.mxu0 0.0
  %1953 = vmatpush1.msra.mxu0 %v1849
  %1954 = vmatprep.subr.mxu0 0.0
  %1955 = vmatpush1.msra.mxu0 %v1850
  %1956 = vmatprep.subr.mxu0 0.0
  %1957 = vmatpush1.msra.mxu0 %v1851
  %1958 = vmatprep.subr.mxu0 0.0
  %1959 = vmatpush1.msra.mxu0 %v1852
  %1960 = vmatprep.subr.mxu0 0.0
  %1961 = vmatpush1.msra.mxu0 %v1853
  %1962 = vmatprep.subr.mxu0 0.0
  %1963 = vmatpush1.msra.mxu0 %v1854
  %1964 = vmatprep.subr.mxu0 0.0
  %1965 = vmatpush1.msra.mxu0 %v1855
  %1966 = vmatprep.subr.mxu0 0.0
  %1967 = vmatpush1.msra.mxu0 %v1856
  %1968 = vmatprep.subr.mxu0 0.0
  %1969 = vmatpush1.msra.mxu0 %v1857
  %1970 = vmatprep.subr.mxu0 0.0
  %1971 = vmatpush1.msra.mxu0 %v1858
  %1972 = vmatprep.subr.mxu0 0.0
  %1973 = vmatpush1.msra.mxu0 %v1859
  %1974 = vmatprep.subr.mxu0 0.0
  %1975 = vmatpush1.msra.mxu0 %v1860
  %1976 = vmatprep.subr.mxu0 0.0
  %1977 = vmatpush1.msra.mxu0 %v1861
  %1978 = vmatprep.subr.mxu0 0.0
  %1979 = vmatpush1.msra.mxu0 %v1862
  %1980 = vmatprep.subr.mxu0 0.0
  %1981 = vmatpush1.msra.mxu0 %v1863
  %1982 = vmatprep.subr.mxu0 0.0
  %1983 = vmatpush1.msra.mxu0 %v1864
  %1984 = vmatprep.subr.mxu0 0.0
  %1985 = vmatpush1.msra.mxu0 %v1865
  %1986 = vmatprep.subr.mxu0 0.0
  %1987 = vmatpush1.msra.mxu0 %v1866
  %1988 = vmatprep.subr.mxu0 0.0
  %1989 = vmatpush1.msra.mxu0 %v1867
  %1990 = vmatprep.subr.mxu0 0.0
  %1991 = vmatpush1.msra.mxu0 %v1868
  %1992 = vmatprep.subr.mxu0 0.0
  %1993 = vmatpush1.msra.mxu0 %v1869
  %1994 = vmatprep.subr.mxu0 0.0
  %1995 = vmatpush1.msra.mxu0 %v1870
  %1996 = vmatprep.subr.mxu0 0.0
  %1997 = vmatpush1.msra.mxu0 %v1871
  %1998 = vmatprep.subr.mxu0 0.0
  %1999 = vmatpush1.msra.mxu0 %v1872
  %2000 = vmatprep.subr.mxu0 0.0
  %2001 = vmatpush1.msra.mxu0 %v1873
  %2002 = vmatprep.subr.mxu0 0.0
  %2003 = vmatpush1.msra.mxu0 %v1874
  %2004 = vmatprep.subr.mxu0 0.0
  %2005 = vmatpush1.msra.mxu0 %v1875
  %2006 = vmatprep.subr.mxu0 0.0
  %2007 = vmatpush1.msra.mxu0 %v1876
  %2008 = vmatprep.subr.mxu0 0.0
  %2009 = vmatpush1.msra.mxu0 %v1877
  %2010 = vmatprep.subr.mxu0 0.0
  %2011 = vmatpush1.msra.mxu0 %v1878
  %2012 = vmatprep.subr.mxu0 0.0
  %2013 = vmatpush1.msra.mxu0 0.0
  %2014 = vmatprep.subr.mxu0 0.0
  %2015 = vmatpush1.msra.mxu0 0.0
  %2016 = vmatprep.mubr.f32.mxu0 %v1881
  %2017 = vmatmul.mubr.f32.gmra.mrb[0].mxu0 %v1801
  %v2018 = vpop.f32.mrb[0].mxu0
  %v2019 = vadd.f32 0.0, %v2018
  %v2020 = vpop.f32.mrb[0].mxu0
  %2021 = vmatprep.mubr.f32.mxu0 %v1884
  %2022 = vmatmul.mubr.f32.gmra.mrb[0].mxu0 %v1803
  %v2023 = vpop.f32.mrb[0].mxu0
  %v2024 = vadd.f32 0.0, %v2023
  %v2025 = vpop.f32.mrb[0].mxu0
  %2026 = vmatprep.mubr.f32.mxu0 %v1887
  %2027 = vmatmul.mubr.f32.gmra.mrb[0].mxu0 %v1805
  %v2028 = vpop.f32.mrb[0].mxu0
  %v2029 = vadd.f32 0.0, %v2028
  %v2030 = vpop.f32.mrb[0].mxu0
  %2031 = vmatprep.mubr.f32.mxu0 %v1890
  %2032 = vmatmul.mubr.f32.gmra.mrb[0].mxu0 %v1807
  %v2033 = vpop.f32.mrb[0].mxu0
  %v2034 = vadd.f32 0.0, %v2033
  %v2035 = vpop.f32.mrb[0].mxu0
  %2036 = vmatprep.mubr.f32.mxu0 %v1893
  %2037 = vmatmul.mubr.f32.gmra.mrb[0].mxu0 %v1809
  %v2038 = vpop.f32.mrb[0].mxu0
  %v2039 = vadd.f32 0.0, %v2038
  %v2040 = vpop.f32.mrb[0].mxu0
  %2041 = vmatprep.mubr.f32.mxu0 %v1896
  %2042 = vmatmul.mubr.f32.gmra.mrb[0].mxu0 %v1811
  %v2043 = vpop.f32.mrb[0].mxu0
  %v2044 = vadd.f32 0.0, %v2043
  %v2045 = vpop.f32.mrb[0].mxu0
  %2046 = vmatprep.mubr.f32.mxu0 %v1899
  %2047 = vmatmul.mubr.f32.gmra.mrb[0].mxu0 %v1813
  %v2048 = vpop.f32.mrb[0].mxu0
  %v2049 = vadd.f32 0.0, %v2048
  %v2050 = vpop.f32.mrb[0].mxu0
  %2051 = vmatprep.mubr.f32.mxu0 %v1902
  %2052 = vmatmul.mubr.f32.gmra.mrb[0].mxu0 %v1815
  %v2053 = vpop.f32.mrb[0].mxu0
  %v2054 = vadd.f32 0.0, %v2053
  %v2055 = vpop.f32.mrb[0].mxu0
  %2056 = vmatprep.mubr.f32.mxu0 %v1905
  %2057 = vmatmul.mubr.f32.gmra.mrb[0].mxu0 %v1817
  %v2058 = vpop.f32.mrb[0].mxu0
  %v2059 = vadd.f32 0.0, %v2058
  %v2060 = vpop.f32.mrb[0].mxu0
  %2061 = vmatprep.mubr.f32.mxu0 %v1908
  %2062 = vmatmul.mubr.f32.gmra.mrb[0].mxu0 %v1819
  %v2063 = vpop.f32.mrb[0].mxu0
  %v2064 = vadd.f32 0.0, %v2063
  %v2065 = vpop.f32.mrb[0].mxu0
  %2066 = vmatprep.mubr.f32.mxu0 %v1911
  %2067 = vmatmul.mubr.f32.gmra.mrb[0].mxu0 %v1821
  %v2068 = vpop.f32.mrb[0].mxu0
  %v2069 = vadd.f32 0.0, %v2068
  %v2070 = vpop.f32.mrb[0].mxu0
  %2071 = vmatprep.mubr.f32.mxu0 %v1914
  %2072 = vmatmul.mubr.f32.gmra.mrb[0].mxu0 %v1823
  %v2073 = vpop.f32.mrb[0].mxu0
  %v2074 = vadd.f32 0.0, %v2073
  %v2075 = vpop.f32.mrb[0].mxu0
  %2076 = vmatprep.mubr.f32.mxu0 %v1917
  %2077 = vmatmul.mubr.f32.gmra.mrb[0].mxu0 %v1825
  %v2078 = vpop.f32.mrb[0].mxu0
  %v2079 = vadd.f32 0.0, %v2078
  %v2080 = vpop.f32.mrb[0].mxu0
  %2081 = vmatprep.mubr.f32.mxu0 %v1920
  %2082 = vmatmul.mubr.f32.gmra.mrb[0].mxu0 %v1827
  %v2083 = vpop.f32.mrb[0].mxu0
  %v2084 = vadd.f32 0.0, %v2083
  %v2085 = vpop.f32.mrb[0].mxu0
  %2086 = vmatprep.mubr.f32.mxu0 %v1923
  %2087 = vmatmul.mubr.f32.gmra.mrb[0].mxu0 %v1829
  %v2088 = vpop.f32.mrb[0].mxu0
  %v2089 = vadd.f32 0.0, %v2088
  %v2090 = vpop.f32.mrb[0].mxu0
  %2091 = vmatprep.mubr.f32.mxu0 %v1926
  %2092 = vmatmul.mubr.f32.gmra.mrb[0].mxu0 %v1831
  %v2093 = vpop.f32.mrb[0].mxu0
  %v2094 = vadd.f32 0.0, %v2093
  %v2095 = vpop.f32.mrb[0].mxu0
  %2096 = vmatprep.mubr.f32.mxu0 %v1929
  %2097 = vmatmul.mubr.f32.gmra.mrb[0].mxu0 %v1833
  %v2098 = vpop.f32.mrb[0].mxu0
  %v2099 = vadd.f32 0.0, %v2098
  %v2100 = vpop.f32.mrb[0].mxu0
  %2101 = vmatprep.mubr.f32.mxu0 %v1932
  %2102 = vmatmul.mubr.f32.gmra.mrb[0].mxu0 %v1835
  %v2103 = vpop.f32.mrb[0].mxu0
  %v2104 = vadd.f32 0.0, %v2103
  %v2105 = vpop.f32.mrb[0].mxu0
  %2106 = vmatprep.mubr.f32.mxu0 %v1935
  %2107 = vmatmul.mubr.f32.gmra.mrb[0].mxu0 %v1837
  %v2108 = vpop.f32.mrb[0].mxu0
  %v2109 = vadd.f32 0.0, %v2108
  %v2110 = vpop.f32.mrb[0].mxu0
  %2111 = vmatprep.mubr.f32.mxu0 %v1938
  %2112 = vmatmul.mubr.f32.gmra.mrb[0].mxu0 %v1839
  %v2113 = vpop.f32.mrb[0].mxu0
  %v2114 = vadd.f32 0.0, %v2113
  %v2115 = vpop.f32.mrb[0].mxu0
  %2116 = vmatprep.mubr.f32.mxu0 %v1941
  %2117 = vmatmul.mubr.f32.gmra.mrb[0].mxu0 %v1841
  %v2118 = vpop.f32.mrb[0].mxu0
  %v2119 = vadd.f32 0.0, %v2118
  %v2120 = vpop.f32.mrb[0].mxu0
  %2121 = vmatprep.mubr.f32.mxu0 %v1944
  %2122 = vmatmul.mubr.f32.gmra.mrb[0].mxu0 %v1843
  %v2123 = vpop.f32.mrb[0].mxu0
  %v2124 = vadd.f32 0.0, %v2123
  %v2125 = vpop.f32.mrb[0].mxu0
  %2126 = vmatprep.mubr.f32.mxu0 %v1947
  %2127 = vmatmul.mubr.f32.gmra.mrb[0].mxu0 %v1845
  %v2128 = vpop.f32.mrb[0].mxu0
  %v2129 = vadd.f32 0.0, %v2128
  %v2130 = vpop.f32.mrb[0].mxu0
  %2131 = vmatprep.mubr.f32.mxu0 %v1950
  %2132 = vmatmul.mubr.f32.gmra.mrb[0].mxu0 %v1847
  %v2133 = vpop.f32.mrb[0].mxu0
  %v2134 = vadd.f32 0.0, %v2133
  %v2135 = vpop.f32.mrb[0].mxu0
  %2136 = vdwg.mxu0
  %s2137 = scalar_lea.vmem %s5, 240
  %v2138 = vld [vmem:[%s2137] sm:$0xff]
  %v2139 = vld [vmem:[%s2137 + $0x8] sm:$0xff]
  %v2140 = vld [vmem:[%s2137 + $0x10] sm:$0xff]
  %v2141 = vld [vmem:[%s2137 + $0x18] sm:$0xff]
  %v2142 = vld [vmem:[%s2137 + $0x20] sm:$0xff]
  %v2143 = vld [vmem:[%s2137 + $0x28] sm:$0xff]
  %v2144 = vld [vmem:[%s2137 + $0x30] sm:$0xff]
  %v2145 = vld [vmem:[%s2137 + $0x38] sm:$0xff]
  %v2146 = vld [vmem:[%s2137 + $0x40] sm:$0xff]
  %v2147 = vld [vmem:[%s2137 + $0x48] sm:$0xff]
  %v2148 = vld [vmem:[%s2137 + $0x50] sm:$0xff]
  %v2149 = vld [vmem:[%s2137 + $0x58] sm:$0xff]
  %v2150 = vld [vmem:[%s2137 + $0x60] sm:$0xff]
  %v2151 = vld [vmem:[%s2137 + $0x68] sm:$0xff]
  %v2152 = vld [vmem:[%s2137 + $0x70] sm:$0xff]
  %v2153 = vld [vmem:[%s2137 + $0x78] sm:$0xff]
  %v2154 = vld [vmem:[%s2137 + $0x80] sm:$0xff]
  %v2155 = vld [vmem:[%s2137 + $0x88] sm:$0xff]
  %v2156 = vld [vmem:[%s2137 + $0x90] sm:$0xff]
  %v2157 = vld [vmem:[%s2137 + $0x98] sm:$0xff]
  %v2158 = vld [vmem:[%s2137 + $0xa0] sm:$0xff]
  %v2159 = vld [vmem:[%s2137 + $0xa8] sm:$0xff]
  %v2160 = vld [vmem:[%s2137 + $0xb0] sm:$0xff]
  %v2161 = vld [vmem:[%s2137 + $0xb8] sm:$0xff]
  %v2162 = vld [vmem:[%s2137 + $0xc0] sm:$0xff]
  %v2163 = vld [vmem:[%s2137 + $0xc8] sm:$0xff]
  %v2164 = vld [vmem:[%s2137 + $0xd0] sm:$0xff]
  %v2165 = vld [vmem:[%s2137 + $0xd8] sm:$0xff]
  %v2166 = vld [vmem:[%s2137 + $0xe0] sm:$0xff]
  %v2167 = vld [vmem:[%s2137 + $0xe8] sm:$0xff]
  %2168 = vmatprep.subr.mxu0 0.0
  %2169 = vmatpush1.msra.mxu0 %v2138
  %2170 = vmatprep.subr.mxu0 0.0
  %2171 = vmatpush1.msra.mxu0 %v2139
  %2172 = vmatprep.subr.mxu0 0.0
  %2173 = vmatpush1.msra.mxu0 %v2140
  %2174 = vmatprep.subr.mxu0 0.0
  %2175 = vmatpush1.msra.mxu0 %v2141
  %2176 = vmatprep.subr.mxu0 0.0
  %2177 = vmatpush1.msra.mxu0 %v2142
  %2178 = vmatprep.subr.mxu0 0.0
  %2179 = vmatpush1.msra.mxu0 %v2143
  %2180 = vmatprep.subr.mxu0 0.0
  %2181 = vmatpush1.msra.mxu0 %v2144
  %2182 = vmatprep.subr.mxu0 0.0
  %2183 = vmatpush1.msra.mxu0 %v2145
  %2184 = vmatprep.subr.mxu0 0.0
  %2185 = vmatpush1.msra.mxu0 %v2146
  %2186 = vmatprep.subr.mxu0 0.0
  %2187 = vmatpush1.msra.mxu0 %v2147
  %2188 = vmatprep.subr.mxu0 0.0
  %2189 = vmatpush1.msra.mxu0 %v2148
  %2190 = vmatprep.subr.mxu0 0.0
  %2191 = vmatpush1.msra.mxu0 %v2149
  %2192 = vmatprep.subr.mxu0 0.0
  %2193 = vmatpush1.msra.mxu0 %v2150
  %2194 = vmatprep.subr.mxu0 0.0
  %2195 = vmatpush1.msra.mxu0 %v2151
  %2196 = vmatprep.subr.mxu0 0.0
  %2197 = vmatpush1.msra.mxu0 %v2152
  %2198 = vmatprep.subr.mxu0 0.0
  %2199 = vmatpush1.msra.mxu0 %v2153
  %2200 = vmatprep.subr.mxu0 0.0
  %2201 = vmatpush1.msra.mxu0 %v2154
  %2202 = vmatprep.subr.mxu0 0.0
  %2203 = vmatpush1.msra.mxu0 %v2155
  %2204 = vmatprep.subr.mxu0 0.0
  %2205 = vmatpush1.msra.mxu0 %v2156
  %2206 = vmatprep.subr.mxu0 0.0
  %2207 = vmatpush1.msra.mxu0 %v2157
  %2208 = vmatprep.subr.mxu0 0.0
  %2209 = vmatpush1.msra.mxu0 %v2158
  %2210 = vmatprep.subr.mxu0 0.0
  %2211 = vmatpush1.msra.mxu0 %v2159
  %2212 = vmatprep.subr.mxu0 0.0
  %2213 = vmatpush1.msra.mxu0 %v2160
  %2214 = vmatprep.subr.mxu0 0.0
  %2215 = vmatpush1.msra.mxu0 %v2161
  %2216 = vmatprep.subr.mxu0 0.0
  %2217 = vmatpush1.msra.mxu0 %v2162
  %2218 = vmatprep.subr.mxu0 0.0
  %2219 = vmatpush1.msra.mxu0 %v2163
  %2220 = vmatprep.subr.mxu0 0.0
  %2221 = vmatpush1.msra.mxu0 %v2164
  %2222 = vmatprep.subr.mxu0 0.0
  %2223 = vmatpush1.msra.mxu0 %v2165
  %2224 = vmatprep.subr.mxu0 0.0
  %2225 = vmatpush1.msra.mxu0 %v2166
  %2226 = vmatprep.subr.mxu0 0.0
  %2227 = vmatpush1.msra.mxu0 %v2167
  %2228 = vmatprep.subr.mxu0 0.0
  %2229 = vmatpush1.msra.mxu0 0.0
  %2230 = vmatprep.subr.mxu0 0.0
  %2231 = vmatpush1.msra.mxu0 0.0
  %2232 = vmatprep.mubr.f32.mxu0 %v1881
  %2233 = vmatmul.mubr.f32.gmra.mrb[0].mxu0 %v1801
  %v2234 = vpop.f32.mrb[0].mxu0
  %v2235 = vadd.f32 0.0, %v2234
  %v2236 = vpop.f32.mrb[0].mxu0
  %2237 = vmatprep.mubr.f32.mxu0 %v1884
  %2238 = vmatmul.mubr.f32.gmra.mrb[0].mxu0 %v1803
  %v2239 = vpop.f32.mrb[0].mxu0
  %v2240 = vadd.f32 0.0, %v2239
  %v2241 = vpop.f32.mrb[0].mxu0
  %2242 = vmatprep.mubr.f32.mxu0 %v1887
  %2243 = vmatmul.mubr.f32.gmra.mrb[0].mxu0 %v1805
  %v2244 = vpop.f32.mrb[0].mxu0
  %v2245 = vadd.f32 0.0, %v2244
  %v2246 = vpop.f32.mrb[0].mxu0
  %2247 = vmatprep.mubr.f32.mxu0 %v1890
  %2248 = vmatmul.mubr.f32.gmra.mrb[0].mxu0 %v1807
  %v2249 = vpop.f32.mrb[0].mxu0
  %v2250 = vadd.f32 0.0, %v2249
  %v2251 = vpop.f32.mrb[0].mxu0
  %2252 = vmatprep.mubr.f32.mxu0 %v1893
  %2253 = vmatmul.mubr.f32.gmra.mrb[0].mxu0 %v1809
  %v2254 = vpop.f32.mrb[0].mxu0
  %v2255 = vadd.f32 0.0, %v2254
  %v2256 = vpop.f32.mrb[0].mxu0
  %2257 = vmatprep.mubr.f32.mxu0 %v1896
  %2258 = vmatmul.mubr.f32.gmra.mrb[0].mxu0 %v1811
  %v2259 = vpop.f32.mrb[0].mxu0
  %v2260 = vadd.f32 0.0, %v2259
  %v2261 = vpop.f32.mrb[0].mxu0
  %2262 = vmatprep.mubr.f32.mxu0 %v1899
  %2263 = vmatmul.mubr.f32.gmra.mrb[0].mxu0 %v1813
  %v2264 = vpop.f32.mrb[0].mxu0
  %v2265 = vadd.f32 0.0, %v2264
  %v2266 = vpop.f32.mrb[0].mxu0
  %2267 = vmatprep.mubr.f32.mxu0 %v1902
  %2268 = vmatmul.mubr.f32.gmra.mrb[0].mxu0 %v1815
  %v2269 = vpop.f32.mrb[0].mxu0
  %v2270 = vadd.f32 0.0, %v2269
  %v2271 = vpop.f32.mrb[0].mxu0
  %2272 = vmatprep.mubr.f32.mxu0 %v1905
  %2273 = vmatmul.mubr.f32.gmra.mrb[0].mxu0 %v1817
  %v2274 = vpop.f32.mrb[0].mxu0
  %v2275 = vadd.f32 0.0, %v2274
  %v2276 = vpop.f32.mrb[0].mxu0
  %2277 = vmatprep.mubr.f32.mxu0 %v1908
  %2278 = vmatmul.mubr.f32.gmra.mrb[0].mxu0 %v1819
  %v2279 = vpop.f32.mrb[0].mxu0
  %v2280 = vadd.f32 0.0, %v2279
  %v2281 = vpop.f32.mrb[0].mxu0
  %2282 = vmatprep.mubr.f32.mxu0 %v1911
  %2283 = vmatmul.mubr.f32.gmra.mrb[0].mxu0 %v1821
  %v2284 = vpop.f32.mrb[0].mxu0
  %v2285 = vadd.f32 0.0, %v2284
  %v2286 = vpop.f32.mrb[0].mxu0
  %2287 = vmatprep.mubr.f32.mxu0 %v1914
  %2288 = vmatmul.mubr.f32.gmra.mrb[0].mxu0 %v1823
  %v2289 = vpop.f32.mrb[0].mxu0
  %v2290 = vadd.f32 0.0, %v2289
  %v2291 = vpop.f32.mrb[0].mxu0
  %2292 = vmatprep.mubr.f32.mxu0 %v1917
  %2293 = vmatmul.mubr.f32.gmra.mrb[0].mxu0 %v1825
  %v2294 = vpop.f32.mrb[0].mxu0
  %v2295 = vadd.f32 0.0, %v2294
  %v2296 = vpop.f32.mrb[0].mxu0
  %2297 = vmatprep.mubr.f32.mxu0 %v1920
  %2298 = vmatmul.mubr.f32.gmra.mrb[0].mxu0 %v1827
  %v2299 = vpop.f32.mrb[0].mxu0
  %v2300 = vadd.f32 0.0, %v2299
  %v2301 = vpop.f32.mrb[0].mxu0
  %2302 = vmatprep.mubr.f32.mxu0 %v1923
  %2303 = vmatmul.mubr.f32.gmra.mrb[0].mxu0 %v1829
  %v2304 = vpop.f32.mrb[0].mxu0
  %v2305 = vadd.f32 0.0, %v2304
  %v2306 = vpop.f32.mrb[0].mxu0
  %2307 = vmatprep.mubr.f32.mxu0 %v1926
  %2308 = vmatmul.mubr.f32.gmra.mrb[0].mxu0 %v1831
  %v2309 = vpop.f32.mrb[0].mxu0
  %v2310 = vadd.f32 0.0, %v2309
  %v2311 = vpop.f32.mrb[0].mxu0
  %2312 = vmatprep.mubr.f32.mxu0 %v1929
  %2313 = vmatmul.mubr.f32.gmra.mrb[0].mxu0 %v1833
  %v2314 = vpop.f32.mrb[0].mxu0
  %v2315 = vadd.f32 0.0, %v2314
  %v2316 = vpop.f32.mrb[0].mxu0
  %2317 = vmatprep.mubr.f32.mxu0 %v1932
  %2318 = vmatmul.mubr.f32.gmra.mrb[0].mxu0 %v1835
  %v2319 = vpop.f32.mrb[0].mxu0
  %v2320 = vadd.f32 0.0, %v2319
  %v2321 = vpop.f32.mrb[0].mxu0
  %2322 = vmatprep.mubr.f32.mxu0 %v1935
  %2323 = vmatmul.mubr.f32.gmra.mrb[0].mxu0 %v1837
  %v2324 = vpop.f32.mrb[0].mxu0
  %v2325 = vadd.f32 0.0, %v2324
  %v2326 = vpop.f32.mrb[0].mxu0
  %2327 = vmatprep.mubr.f32.mxu0 %v1938
  %2328 = vmatmul.mubr.f32.gmra.mrb[0].mxu0 %v1839
  %v2329 = vpop.f32.mrb[0].mxu0
  %v2330 = vadd.f32 0.0, %v2329
  %v2331 = vpop.f32.mrb[0].mxu0
  %2332 = vmatprep.mubr.f32.mxu0 %v1941
  %2333 = vmatmul.mubr.f32.gmra.mrb[0].mxu0 %v1841
  %v2334 = vpop.f32.mrb[0].mxu0
  %v2335 = vadd.f32 0.0, %v2334
  %v2336 = vpop.f32.mrb[0].mxu0
  %2337 = vmatprep.mubr.f32.mxu0 %v1944
  %2338 = vmatmul.mubr.f32.gmra.mrb[0].mxu0 %v1843
  %v2339 = vpop.f32.mrb[0].mxu0
  %v2340 = vadd.f32 0.0, %v2339
  %v2341 = vpop.f32.mrb[0].mxu0
  %2342 = vmatprep.mubr.f32.mxu0 %v1947
  %2343 = vmatmul.mubr.f32.gmra.mrb[0].mxu0 %v1845
  %v2344 = vpop.f32.mrb[0].mxu0
  %v2345 = vadd.f32 0.0, %v2344
  %v2346 = vpop.f32.mrb[0].mxu0
  %2347 = vmatprep.mubr.f32.mxu0 %v1950
  %2348 = vmatmul.mubr.f32.gmra.mrb[0].mxu0 %v1847
  %v2349 = vpop.f32.mrb[0].mxu0
  %v2350 = vadd.f32 0.0, %v2349
  %v2351 = vpop.f32.mrb[0].mxu0
  %2352 = vdwg.mxu0
  %v2353 = vmax.f32 %v2019, %v2235
  %v2354 = vmax.f32 %v2024, %v2240
  %v2355 = vmax.f32 %v2029, %v2245
  %v2356 = vmax.f32 %v2034, %v2250
  %v2357 = vmax.f32 %v2039, %v2255
  %v2358 = vmax.f32 %v2044, %v2260
  %v2359 = vmax.f32 %v2049, %v2265
  %v2360 = vmax.f32 %v2054, %v2270
  %v2361 = vmax.f32 %v2059, %v2275
  %v2362 = vmax.f32 %v2064, %v2280
  %v2363 = vmax.f32 %v2069, %v2285
  %v2364 = vmax.f32 %v2074, %v2290
  %v2365 = vmax.f32 %v2079, %v2295
  %v2366 = vmax.f32 %v2084, %v2300
  %v2367 = vmax.f32 %v2089, %v2305
  %v2368 = vmax.f32 %v2094, %v2310
  %v2369 = vmax.f32 %v2099, %v2315
  %v2370 = vmax.f32 %v2104, %v2320
  %v2371 = vmax.f32 %v2109, %v2325
  %v2372 = vmax.f32 %v2114, %v2330
  %v2373 = vmax.f32 %v2119, %v2335
  %v2374 = vmax.f32 %v2124, %v2340
  %v2375 = vmax.f32 %v2129, %v2345
  %v2376 = vmax.f32 %v2134, %v2350
  %v2377 = vld [vmem:[%s6] sm:$0xff]
  %v2378 = vld [vmem:[%s6 + $0x8] sm:$0xff]
  %v2379 = vld [vmem:[%s6 + $0x10] sm:$0xff]
  %v2380 = vld [vmem:[%s6 + $0x18] sm:$0xff]
  %v2381 = vld [vmem:[%s6 + $0x20] sm:$0xff]
  %v2382 = vld [vmem:[%s6 + $0x28] sm:$0xff]
  %v2383 = vld [vmem:[%s6 + $0x30] sm:$0xff]
  %v2384 = vld [vmem:[%s6 + $0x38] sm:$0xff]
  %v2385 = vld [vmem:[%s6 + $0x40] sm:$0xff]
  %v2386 = vld [vmem:[%s6 + $0x48] sm:$0xff]
  %v2387 = vld [vmem:[%s6 + $0x50] sm:$0xff]
  %v2388 = vld [vmem:[%s6 + $0x58] sm:$0xff]
  %v2389 = vld [vmem:[%s6 + $0x60] sm:$0xff]
  %v2390 = vld [vmem:[%s6 + $0x68] sm:$0xff]
  %v2391 = vld [vmem:[%s6 + $0x70] sm:$0xff]
  %v2392 = vld [vmem:[%s6 + $0x78] sm:$0xff]
  %v2393 = vld [vmem:[%s6 + $0x80] sm:$0xff]
  %v2394 = vld [vmem:[%s6 + $0x88] sm:$0xff]
  %v2395 = vld [vmem:[%s6 + $0x90] sm:$0xff]
  %v2396 = vld [vmem:[%s6 + $0x98] sm:$0xff]
  %v2397 = vld [vmem:[%s6 + $0xa0] sm:$0xff]
  %v2398 = vld [vmem:[%s6 + $0xa8] sm:$0xff]
  %v2399 = vld [vmem:[%s6 + $0xb0] sm:$0xff]
  %v2400 = vld [vmem:[%s6 + $0xb8] sm:$0xff]
  %v2401 = vld [vmem:[%s6 + $0xc0] sm:$0xff]
  %v2402 = vld [vmem:[%s6 + $0xc8] sm:$0xff]
  %v2403 = vld [vmem:[%s6 + $0xd0] sm:$0xff]
  %v2404 = vld [vmem:[%s6 + $0xd8] sm:$0xff]
  %v2405 = vld [vmem:[%s6 + $0xe0] sm:$0xff]
  %v2406 = vld [vmem:[%s6 + $0xe8] sm:$0xff]
  %v2407 = vld [vmem:[%s6 + $0xf0] sm:$0xff]
  %v2408 = vld [vmem:[%s6 + $0xf8] sm:$0xff]
  %vm2409 = vcmask 523264
  %v2411 = vsel %vm2409, %v2378, 0
  %v2414 = vsel %vm2409, %v2380, 0
  %v2417 = vsel %vm2409, %v2382, 0
  %v2420 = vsel %vm2409, %v2384, 0
  %v2423 = vsel %vm2409, %v2386, 0
  %v2426 = vsel %vm2409, %v2388, 0
  %v2429 = vsel %vm2409, %v2390, 0
  %v2432 = vsel %vm2409, %v2392, 0
  %v2435 = vsel %vm2409, %v2394, 0
  %v2438 = vsel %vm2409, %v2396, 0
  %v2441 = vsel %vm2409, %v2398, 0
  %v2444 = vsel %vm2409, %v2400, 0
  %v2447 = vsel %vm2409, %v2402, 0
  %v2450 = vsel %vm2409, %v2404, 0
  %v2453 = vsel %vm2409, %v2406, 0
  %v2456 = vsel %vm2409, %v2408, 0
  %2458 = vmatprep.subr.mxu0 0.0
  %2459 = vmatpush1.msra.mxu0 %v2353
  %2460 = vmatprep.subr.mxu0 0.0
  %2461 = vmatpush1.msra.mxu0 %v2354
  %2462 = vmatprep.subr.mxu0 0.0
  %2463 = vmatpush1.msra.mxu0 %v2355
  %2464 = vmatprep.subr.mxu0 0.0
  %2465 = vmatpush1.msra.mxu0 %v2356
  %2466 = vmatprep.subr.mxu0 0.0
  %2467 = vmatpush1.msra.mxu0 %v2357
  %2468 = vmatprep.subr.mxu0 0.0
  %2469 = vmatpush1.msra.mxu0 %v2358
  %2470 = vmatprep.subr.mxu0 0.0
  %2471 = vmatpush1.msra.mxu0 %v2359
  %2472 = vmatprep.subr.mxu0 0.0
  %2473 = vmatpush1.msra.mxu0 %v2360
  %2474 = vmatprep.subr.mxu0 0.0
  %2475 = vmatpush1.msra.mxu0 %v2361
  %2476 = vmatprep.subr.mxu0 0.0
  %2477 = vmatpush1.msra.mxu0 %v2362
  %2478 = vmatprep.subr.mxu0 0.0
  %2479 = vmatpush1.msra.mxu0 %v2363
  %2480 = vmatprep.subr.mxu0 0.0
  %2481 = vmatpush1.msra.mxu0 %v2364
  %2482 = vmatprep.subr.mxu0 0.0
  %2483 = vmatpush1.msra.mxu0 %v2365
  %2484 = vmatprep.subr.mxu0 0.0
  %2485 = vmatpush1.msra.mxu0 %v2366
  %2486 = vmatprep.subr.mxu0 0.0
  %2487 = vmatpush1.msra.mxu0 %v2367
  %2488 = vmatprep.subr.mxu0 0.0
  %2489 = vmatpush1.msra.mxu0 %v2368
  %2490 = vmatprep.subr.mxu0 0.0
  %2491 = vmatpush1.msra.mxu0 %v2369
  %2492 = vmatprep.subr.mxu0 0.0
  %2493 = vmatpush1.msra.mxu0 %v2370
  %2494 = vmatprep.subr.mxu0 0.0
  %2495 = vmatpush1.msra.mxu0 %v2371
  %2496 = vmatprep.subr.mxu0 0.0
  %2497 = vmatpush1.msra.mxu0 %v2372
  %2498 = vmatprep.subr.mxu0 0.0
  %2499 = vmatpush1.msra.mxu0 %v2373
  %2500 = vmatprep.subr.mxu0 0.0
  %2501 = vmatpush1.msra.mxu0 %v2374
  %2502 = vmatprep.subr.mxu0 0.0
  %2503 = vmatpush1.msra.mxu0 %v2375
  %2504 = vmatprep.subr.mxu0 0.0
  %2505 = vmatpush1.msra.mxu0 %v2376
  %2506 = vmatprep.subr.mxu0 0.0
  %2507 = vmatpush1.msra.mxu0 0.0
  %2508 = vmatprep.subr.mxu0 0.0
  %2509 = vmatpush1.msra.mxu0 0.0
  %2510 = vmatprep.subr.mxu0 0.0
  %2511 = vmatpush1.msra.mxu0 0.0
  %2512 = vmatprep.subr.mxu0 0.0
  %2513 = vmatpush1.msra.mxu0 0.0
  %2514 = vmatprep.subr.mxu0 0.0
  %2515 = vmatpush1.msra.mxu0 0.0
  %2516 = vmatprep.subr.mxu0 0.0
  %2517 = vmatpush1.msra.mxu0 0.0
  %2518 = vmatprep.subr.mxu0 0.0
  %2519 = vmatpush1.msra.mxu0 0.0
  %2520 = vmatprep.subr.mxu0 0.0
  %2521 = vmatpush1.msra.mxu0 0.0
  %2522 = vmatprep.mubr.f32.mxu0 %v2411
  %2523 = vmatmul.mubr.f32.gmra.mrb[0].mxu0 %v2377
  %v2524 = vpop.f32.mrb[0].mxu0
  %v2525 = vadd.f32 0.0, %v2524
  %v2526 = vpop.f32.mrb[0].mxu0
  %2527 = vmatprep.mubr.f32.mxu0 %v2414
  %2528 = vmatmul.mubr.f32.gmra.mrb[0].mxu0 %v2379
  %v2529 = vpop.f32.mrb[0].mxu0
  %v2530 = vadd.f32 0.0, %v2529
  %v2531 = vpop.f32.mrb[0].mxu0
  %2532 = vmatprep.mubr.f32.mxu0 %v2417
  %2533 = vmatmul.mubr.f32.gmra.mrb[0].mxu0 %v2381
  %v2534 = vpop.f32.mrb[0].mxu0
  %v2535 = vadd.f32 0.0, %v2534
  %v2536 = vpop.f32.mrb[0].mxu0
  %2537 = vmatprep.mubr.f32.mxu0 %v2420
  %2538 = vmatmul.mubr.f32.gmra.mrb[0].mxu0 %v2383
  %v2539 = vpop.f32.mrb[0].mxu0
  %v2540 = vadd.f32 0.0, %v2539
  %v2541 = vpop.f32.mrb[0].mxu0
  %2542 = vmatprep.mubr.f32.mxu0 %v2423
  %2543 = vmatmul.mubr.f32.gmra.mrb[0].mxu0 %v2385
  %v2544 = vpop.f32.mrb[0].mxu0
  %v2545 = vadd.f32 0.0, %v2544
  %v2546 = vpop.f32.mrb[0].mxu0
  %2547 = vmatprep.mubr.f32.mxu0 %v2426
  %2548 = vmatmul.mubr.f32.gmra.mrb[0].mxu0 %v2387
  %v2549 = vpop.f32.mrb[0].mxu0
  %v2550 = vadd.f32 0.0, %v2549
  %v2551 = vpop.f32.mrb[0].mxu0
  %2552 = vmatprep.mubr.f32.mxu0 %v2429
  %2553 = vmatmul.mubr.f32.gmra.mrb[0].mxu0 %v2389
  %v2554 = vpop.f32.mrb[0].mxu0
  %v2555 = vadd.f32 0.0, %v2554
  %v2556 = vpop.f32.mrb[0].mxu0
  %2557 = vmatprep.mubr.f32.mxu0 %v2432
  %2558 = vmatmul.mubr.f32.gmra.mrb[0].mxu0 %v2391
  %v2559 = vpop.f32.mrb[0].mxu0
  %v2560 = vadd.f32 0.0, %v2559
  %v2561 = vpop.f32.mrb[0].mxu0
  %2562 = vmatprep.mubr.f32.mxu0 %v2435
  %2563 = vmatmul.mubr.f32.gmra.mrb[0].mxu0 %v2393
  %v2564 = vpop.f32.mrb[0].mxu0
  %v2565 = vadd.f32 0.0, %v2564
  %v2566 = vpop.f32.mrb[0].mxu0
  %2567 = vmatprep.mubr.f32.mxu0 %v2438
  %2568 = vmatmul.mubr.f32.gmra.mrb[0].mxu0 %v2395
  %v2569 = vpop.f32.mrb[0].mxu0
  %v2570 = vadd.f32 0.0, %v2569
  %v2571 = vpop.f32.mrb[0].mxu0
  %2572 = vmatprep.mubr.f32.mxu0 %v2441
  %2573 = vmatmul.mubr.f32.gmra.mrb[0].mxu0 %v2397
  %v2574 = vpop.f32.mrb[0].mxu0
  %v2575 = vadd.f32 0.0, %v2574
  %v2576 = vpop.f32.mrb[0].mxu0
  %2577 = vmatprep.mubr.f32.mxu0 %v2444
  %2578 = vmatmul.mubr.f32.gmra.mrb[0].mxu0 %v2399
  %v2579 = vpop.f32.mrb[0].mxu0
  %v2580 = vadd.f32 0.0, %v2579
  %v2581 = vpop.f32.mrb[0].mxu0
  %2582 = vmatprep.mubr.f32.mxu0 %v2447
  %2583 = vmatmul.mubr.f32.gmra.mrb[0].mxu0 %v2401
  %v2584 = vpop.f32.mrb[0].mxu0
  %v2585 = vadd.f32 0.0, %v2584
  %v2586 = vpop.f32.mrb[0].mxu0
  %2587 = vmatprep.mubr.f32.mxu0 %v2450
  %2588 = vmatmul.mubr.f32.gmra.mrb[0].mxu0 %v2403
  %v2589 = vpop.f32.mrb[0].mxu0
  %v2590 = vadd.f32 0.0, %v2589
  %v2591 = vpop.f32.mrb[0].mxu0
  %2592 = vmatprep.mubr.f32.mxu0 %v2453
  %2593 = vmatmul.mubr.f32.gmra.mrb[0].mxu0 %v2405
  %v2594 = vpop.f32.mrb[0].mxu0
  %v2595 = vadd.f32 0.0, %v2594
  %v2596 = vpop.f32.mrb[0].mxu0
  %2597 = vmatprep.mubr.f32.mxu0 %v2456
  %2598 = vmatmul.mubr.f32.gmra.mrb[0].mxu0 %v2407
  %v2599 = vpop.f32.mrb[0].mxu0
  %v2600 = vadd.f32 0.0, %v2599
  %v2601 = vpop.f32.mrb[0].mxu0
  %2602 = vdwg.mxu0
  %s2603 = scalar_lea.vmem %s6, 256
  %v2604 = vld [vmem:[%s2603] sm:$0xff]
  %v2605 = vld [vmem:[%s2603 + $0x8] sm:$0xff]
  %v2606 = vld [vmem:[%s2603 + $0x10] sm:$0xff]
  %v2607 = vld [vmem:[%s2603 + $0x18] sm:$0xff]
  %v2608 = vld [vmem:[%s2603 + $0x20] sm:$0xff]
  %v2609 = vld [vmem:[%s2603 + $0x28] sm:$0xff]
  %v2610 = vld [vmem:[%s2603 + $0x30] sm:$0xff]
  %v2611 = vld [vmem:[%s2603 + $0x38] sm:$0xff]
  %v2612 = vld [vmem:[%s2603 + $0x40] sm:$0xff]
  %v2613 = vld [vmem:[%s2603 + $0x48] sm:$0xff]
  %v2614 = vld [vmem:[%s2603 + $0x50] sm:$0xff]
  %v2615 = vld [vmem:[%s2603 + $0x58] sm:$0xff]
  %v2616 = vld [vmem:[%s2603 + $0x60] sm:$0xff]
  %v2617 = vld [vmem:[%s2603 + $0x68] sm:$0xff]
  %v2618 = vld [vmem:[%s2603 + $0x70] sm:$0xff]
  %v2619 = vld [vmem:[%s2603 + $0x78] sm:$0xff]
  %v2620 = vld [vmem:[%s2603 + $0x80] sm:$0xff]
  %v2621 = vld [vmem:[%s2603 + $0x88] sm:$0xff]
  %v2622 = vld [vmem:[%s2603 + $0x90] sm:$0xff]
  %v2623 = vld [vmem:[%s2603 + $0x98] sm:$0xff]
  %v2624 = vld [vmem:[%s2603 + $0xa0] sm:$0xff]
  %v2625 = vld [vmem:[%s2603 + $0xa8] sm:$0xff]
  %v2626 = vld [vmem:[%s2603 + $0xb0] sm:$0xff]
  %v2627 = vld [vmem:[%s2603 + $0xb8] sm:$0xff]
  %v2628 = vld [vmem:[%s2603 + $0xc0] sm:$0xff]
  %v2629 = vld [vmem:[%s2603 + $0xc8] sm:$0xff]
  %v2630 = vld [vmem:[%s2603 + $0xd0] sm:$0xff]
  %v2631 = vld [vmem:[%s2603 + $0xd8] sm:$0xff]
  %v2632 = vld [vmem:[%s2603 + $0xe0] sm:$0xff]
  %v2633 = vld [vmem:[%s2603 + $0xe8] sm:$0xff]
  %v2634 = vld [vmem:[%s2603 + $0xf0] sm:$0xff]
  %v2635 = vld [vmem:[%s2603 + $0xf8] sm:$0xff]
  %v2637 = vsel %vm2409, %v2605, 0
  %v2640 = vsel %vm2409, %v2607, 0
  %v2643 = vsel %vm2409, %v2609, 0
  %v2646 = vsel %vm2409, %v2611, 0
  %v2649 = vsel %vm2409, %v2613, 0
  %v2652 = vsel %vm2409, %v2615, 0
  %v2655 = vsel %vm2409, %v2617, 0
  %v2658 = vsel %vm2409, %v2619, 0
  %v2661 = vsel %vm2409, %v2621, 0
  %v2664 = vsel %vm2409, %v2623, 0
  %v2667 = vsel %vm2409, %v2625, 0
  %v2670 = vsel %vm2409, %v2627, 0
  %v2673 = vsel %vm2409, %v2629, 0
  %v2676 = vsel %vm2409, %v2631, 0
  %v2679 = vsel %vm2409, %v2633, 0
  %v2682 = vsel %vm2409, %v2635, 0
  %2684 = vmatprep.subr.mxu0 0.0
  %2685 = vmatpush1.msra.mxu0 %v2353
  %2686 = vmatprep.subr.mxu0 0.0
  %2687 = vmatpush1.msra.mxu0 %v2354
  %2688 = vmatprep.subr.mxu0 0.0
  %2689 = vmatpush1.msra.mxu0 %v2355
  %2690 = vmatprep.subr.mxu0 0.0
  %2691 = vmatpush1.msra.mxu0 %v2356
  %2692 = vmatprep.subr.mxu0 0.0
  %2693 = vmatpush1.msra.mxu0 %v2357
  %2694 = vmatprep.subr.mxu0 0.0
  %2695 = vmatpush1.msra.mxu0 %v2358
  %2696 = vmatprep.subr.mxu0 0.0
  %2697 = vmatpush1.msra.mxu0 %v2359
  %2698 = vmatprep.subr.mxu0 0.0
  %2699 = vmatpush1.msra.mxu0 %v2360
  %2700 = vmatprep.subr.mxu0 0.0
  %2701 = vmatpush1.msra.mxu0 %v2361
  %2702 = vmatprep.subr.mxu0 0.0
  %2703 = vmatpush1.msra.mxu0 %v2362
  %2704 = vmatprep.subr.mxu0 0.0
  %2705 = vmatpush1.msra.mxu0 %v2363
  %2706 = vmatprep.subr.mxu0 0.0
  %2707 = vmatpush1.msra.mxu0 %v2364
  %2708 = vmatprep.subr.mxu0 0.0
  %2709 = vmatpush1.msra.mxu0 %v2365
  %2710 = vmatprep.subr.mxu0 0.0
  %2711 = vmatpush1.msra.mxu0 %v2366
  %2712 = vmatprep.subr.mxu0 0.0
  %2713 = vmatpush1.msra.mxu0 %v2367
  %2714 = vmatprep.subr.mxu0 0.0
  %2715 = vmatpush1.msra.mxu0 %v2368
  %2716 = vmatprep.subr.mxu0 0.0
  %2717 = vmatpush1.msra.mxu0 %v2369
  %2718 = vmatprep.subr.mxu0 0.0
  %2719 = vmatpush1.msra.mxu0 %v2370
  %2720 = vmatprep.subr.mxu0 0.0
  %2721 = vmatpush1.msra.mxu0 %v2371
  %2722 = vmatprep.subr.mxu0 0.0
  %2723 = vmatpush1.msra.mxu0 %v2372
  %2724 = vmatprep.subr.mxu0 0.0
  %2725 = vmatpush1.msra.mxu0 %v2373
  %2726 = vmatprep.subr.mxu0 0.0
  %2727 = vmatpush1.msra.mxu0 %v2374
  %2728 = vmatprep.subr.mxu0 0.0
  %2729 = vmatpush1.msra.mxu0 %v2375
  %2730 = vmatprep.subr.mxu0 0.0
  %2731 = vmatpush1.msra.mxu0 %v2376
  %2732 = vmatprep.subr.mxu0 0.0
  %2733 = vmatpush1.msra.mxu0 0.0
  %2734 = vmatprep.subr.mxu0 0.0
  %2735 = vmatpush1.msra.mxu0 0.0
  %2736 = vmatprep.subr.mxu0 0.0
  %2737 = vmatpush1.msra.mxu0 0.0
  %2738 = vmatprep.subr.mxu0 0.0
  %2739 = vmatpush1.msra.mxu0 0.0
  %2740 = vmatprep.subr.mxu0 0.0
  %2741 = vmatpush1.msra.mxu0 0.0
  %2742 = vmatprep.subr.mxu0 0.0
  %2743 = vmatpush1.msra.mxu0 0.0
  %2744 = vmatprep.subr.mxu0 0.0
  %2745 = vmatpush1.msra.mxu0 0.0
  %2746 = vmatprep.subr.mxu0 0.0
  %2747 = vmatpush1.msra.mxu0 0.0
  %2748 = vmatprep.mubr.f32.mxu0 %v2637
  %2749 = vmatmul.mubr.f32.gmra.mrb[0].mxu0 %v2604
  %v2750 = vpop.f32.mrb[0].mxu0
  %v2751 = vadd.f32 0.0, %v2750
  %v2752 = vpop.f32.mrb[0].mxu0
  %2753 = vmatprep.mubr.f32.mxu0 %v2640
  %2754 = vmatmul.mubr.f32.gmra.mrb[0].mxu0 %v2606
  %v2755 = vpop.f32.mrb[0].mxu0
  %v2756 = vadd.f32 0.0, %v2755
  %v2757 = vpop.f32.mrb[0].mxu0
  %2758 = vmatprep.mubr.f32.mxu0 %v2643
  %2759 = vmatmul.mubr.f32.gmra.mrb[0].mxu0 %v2608
  %v2760 = vpop.f32.mrb[0].mxu0
  %v2761 = vadd.f32 0.0, %v2760
  %v2762 = vpop.f32.mrb[0].mxu0
  %2763 = vmatprep.mubr.f32.mxu0 %v2646
  %2764 = vmatmul.mubr.f32.gmra.mrb[0].mxu0 %v2610
  %v2765 = vpop.f32.mrb[0].mxu0
  %v2766 = vadd.f32 0.0, %v2765
  %v2767 = vpop.f32.mrb[0].mxu0
  %2768 = vmatprep.mubr.f32.mxu0 %v2649
  %2769 = vmatmul.mubr.f32.gmra.mrb[0].mxu0 %v2612
  %v2770 = vpop.f32.mrb[0].mxu0
  %v2771 = vadd.f32 0.0, %v2770
  %v2772 = vpop.f32.mrb[0].mxu0
  %2773 = vmatprep.mubr.f32.mxu0 %v2652
  %2774 = vmatmul.mubr.f32.gmra.mrb[0].mxu0 %v2614
  %v2775 = vpop.f32.mrb[0].mxu0
  %v2776 = vadd.f32 0.0, %v2775
  %v2777 = vpop.f32.mrb[0].mxu0
  %2778 = vmatprep.mubr.f32.mxu0 %v2655
  %2779 = vmatmul.mubr.f32.gmra.mrb[0].mxu0 %v2616
  %v2780 = vpop.f32.mrb[0].mxu0
  %v2781 = vadd.f32 0.0, %v2780
  %v2782 = vpop.f32.mrb[0].mxu0
  %2783 = vmatprep.mubr.f32.mxu0 %v2658
  %2784 = vmatmul.mubr.f32.gmra.mrb[0].mxu0 %v2618
  %v2785 = vpop.f32.mrb[0].mxu0
  %v2786 = vadd.f32 0.0, %v2785
  %v2787 = vpop.f32.mrb[0].mxu0
  %2788 = vmatprep.mubr.f32.mxu0 %v2661
  %2789 = vmatmul.mubr.f32.gmra.mrb[0].mxu0 %v2620
  %v2790 = vpop.f32.mrb[0].mxu0
  %v2791 = vadd.f32 0.0, %v2790
  %v2792 = vpop.f32.mrb[0].mxu0
  %2793 = vmatprep.mubr.f32.mxu0 %v2664
  %2794 = vmatmul.mubr.f32.gmra.mrb[0].mxu0 %v2622
  %v2795 = vpop.f32.mrb[0].mxu0
  %v2796 = vadd.f32 0.0, %v2795
  %v2797 = vpop.f32.mrb[0].mxu0
  %2798 = vmatprep.mubr.f32.mxu0 %v2667
  %2799 = vmatmul.mubr.f32.gmra.mrb[0].mxu0 %v2624
  %v2800 = vpop.f32.mrb[0].mxu0
  %v2801 = vadd.f32 0.0, %v2800
  %v2802 = vpop.f32.mrb[0].mxu0
  %2803 = vmatprep.mubr.f32.mxu0 %v2670
  %2804 = vmatmul.mubr.f32.gmra.mrb[0].mxu0 %v2626
  %v2805 = vpop.f32.mrb[0].mxu0
  %v2806 = vadd.f32 0.0, %v2805
  %v2807 = vpop.f32.mrb[0].mxu0
  %2808 = vmatprep.mubr.f32.mxu0 %v2673
  %2809 = vmatmul.mubr.f32.gmra.mrb[0].mxu0 %v2628
  %v2810 = vpop.f32.mrb[0].mxu0
  %v2811 = vadd.f32 0.0, %v2810
  %v2812 = vpop.f32.mrb[0].mxu0
  %2813 = vmatprep.mubr.f32.mxu0 %v2676
  %2814 = vmatmul.mubr.f32.gmra.mrb[0].mxu0 %v2630
  %v2815 = vpop.f32.mrb[0].mxu0
  %v2816 = vadd.f32 0.0, %v2815
  %v2817 = vpop.f32.mrb[0].mxu0
  %2818 = vmatprep.mubr.f32.mxu0 %v2679
  %2819 = vmatmul.mubr.f32.gmra.mrb[0].mxu0 %v2632
  %v2820 = vpop.f32.mrb[0].mxu0
  %v2821 = vadd.f32 0.0, %v2820
  %v2822 = vpop.f32.mrb[0].mxu0
  %2823 = vmatprep.mubr.f32.mxu0 %v2682
  %2824 = vmatmul.mubr.f32.gmra.mrb[0].mxu0 %v2634
  %v2825 = vpop.f32.mrb[0].mxu0
  %v2826 = vadd.f32 0.0, %v2825
  %v2827 = vpop.f32.mrb[0].mxu0
  %2828 = vdwg.mxu0
  %v2829 = vmax.f32 %v2525, %v2751
  %v2830 = vmax.f32 %v2530, %v2756
  %v2831 = vmax.f32 %v2535, %v2761
  %v2832 = vmax.f32 %v2540, %v2766
  %v2833 = vmax.f32 %v2545, %v2771
  %v2834 = vmax.f32 %v2550, %v2776
  %v2835 = vmax.f32 %v2555, %v2781
  %v2836 = vmax.f32 %v2560, %v2786
  %v2837 = vmax.f32 %v2565, %v2791
  %v2838 = vmax.f32 %v2570, %v2796
  %v2839 = vmax.f32 %v2575, %v2801
  %v2840 = vmax.f32 %v2580, %v2806
  %v2841 = vmax.f32 %v2585, %v2811
  %v2842 = vmax.f32 %v2590, %v2816
  %v2843 = vmax.f32 %v2595, %v2821
  %v2844 = vmax.f32 %v2600, %v2826
  %v2845 = vmax.f32 %v2829, 0.0
  %v2846 = vmax.f32 %v2830, 0.0
  %v2847 = vmax.f32 %v2831, 0.0
  %v2848 = vmax.f32 %v2832, 0.0
  %v2849 = vmax.f32 %v2833, 0.0
  %v2850 = vmax.f32 %v2834, 0.0
  %v2851 = vmax.f32 %v2835, 0.0
  %v2852 = vmax.f32 %v2836, 0.0
  %v2853 = vmax.f32 %v2837, 0.0
  %v2854 = vmax.f32 %v2838, 0.0
  %v2855 = vmax.f32 %v2839, 0.0
  %v2856 = vmax.f32 %v2840, 0.0
  %v2857 = vmax.f32 %v2841, 0.0
  %v2858 = vmax.f32 %v2842, 0.0
  %v2859 = vmax.f32 %v2843, 0.0
  %v2860 = vmax.f32 %v2844, 0.0
  %vm2861 = vcmask 982016
  %2862 = vst.msk [vmem:[#allocation2] sm:$0xff] %vm2861, %v2845
  %2863 = vst.msk [vmem:[#allocation2 + $0x8] sm:$0xff] %vm2861, %v2846
  %2864 = vst.msk [vmem:[#allocation2 + $0x10] sm:$0xff] %vm2861, %v2847
  %2865 = vst.msk [vmem:[#allocation2 + $0x18] sm:$0xff] %vm2861, %v2848
  %2866 = vst.msk [vmem:[#allocation2 + $0x20] sm:$0xff] %vm2861, %v2849
  %2867 = vst.msk [vmem:[#allocation2 + $0x28] sm:$0xff] %vm2861, %v2850
  %2868 = vst.msk [vmem:[#allocation2 + $0x30] sm:$0xff] %vm2861, %v2851
  %2869 = vst.msk [vmem:[#allocation2 + $0x38] sm:$0xff] %vm2861, %v2852
  %2870 = vst.msk [vmem:[#allocation2 + $0x40] sm:$0xff] %vm2861, %v2853
  %2871 = vst.msk [vmem:[#allocation2 + $0x48] sm:$0xff] %vm2861, %v2854
  %2872 = vst.msk [vmem:[#allocation2 + $0x50] sm:$0xff] %vm2861, %v2855
  %2873 = vst.msk [vmem:[#allocation2 + $0x58] sm:$0xff] %vm2861, %v2856
  %2874 = vst.msk [vmem:[#allocation2 + $0x60] sm:$0xff] %vm2861, %v2857
  %2875 = vst.msk [vmem:[#allocation2 + $0x68] sm:$0xff] %vm2861, %v2858
  %2876 = vst.msk [vmem:[#allocation2 + $0x70] sm:$0xff] %vm2861, %v2859
  %2877 = vst.msk [vmem:[#allocation2 + $0x78] sm:$0xff] %vm2861, %v2860
  %v2878 = vld [vmem:[#allocation2] sm:$0xff]
  %v2879 = vld [vmem:[#allocation2 + $0x10] sm:$0xff]
  %v2880 = vld [vmem:[#allocation2 + $0x20] sm:$0xff]
  %v2881 = vld [vmem:[#allocation2 + $0x30] sm:$0xff]
  %v2882 = vld [vmem:[#allocation2 + $0x40] sm:$0xff]
  %v2883 = vld [vmem:[#allocation2 + $0x50] sm:$0xff]
  %v2884 = vld [vmem:[#allocation2 + $0x60] sm:$0xff]
  %v2885 = vld [vmem:[#allocation2 + $0x70] sm:$0xff]
  %v2886 = vld [vmem:[%s3] sm:$0xff]
  %v2887 = vld [vmem:[%s3 + $0x8] sm:$0xff]
  %v2888 = vld [vmem:[%s3 + $0x10] sm:$0xff]
  %v2889 = vld [vmem:[%s3 + $0x18] sm:$0xff]
  %v2890 = vld [vmem:[%s3 + $0x20] sm:$0xff]
  %v2891 = vld [vmem:[%s3 + $0x28] sm:$0xff]
  %v2892 = vld [vmem:[%s3 + $0x30] sm:$0xff]
  %v2893 = vld [vmem:[%s3 + $0x38] sm:$0xff]
  %v2894 = vld [vmem:[%s3 + $0x40] sm:$0xff]
  %v2895 = vld [vmem:[%s3 + $0x48] sm:$0xff]
  %v2896 = vld [vmem:[%s3 + $0x50] sm:$0xff]
  %v2897 = vld [vmem:[%s3 + $0x58] sm:$0xff]
  %v2898 = vld [vmem:[%s3 + $0x60] sm:$0xff]
  %v2899 = vld [vmem:[%s3 + $0x68] sm:$0xff]
  %v2900 = vld [vmem:[%s3 + $0x70] sm:$0xff]
  %v2901 = vld [vmem:[%s3 + $0x78] sm:$0xff]
  %v2902 = vld [vmem:[%s3 + $0x80] sm:$0xff]
  %v2903 = vld [vmem:[%s3 + $0x88] sm:$0xff]
  %v2904 = vld [vmem:[%s3 + $0x90] sm:$0xff]
  %v2905 = vld [vmem:[%s3 + $0x98] sm:$0xff]
  %v2906 = vld [vmem:[%s3 + $0xa0] sm:$0xff]
  %v2907 = vld [vmem:[%s3 + $0xa8] sm:$0xff]
  %v2908 = vld [vmem:[%s3 + $0xb0] sm:$0xff]
  %v2909 = vld [vmem:[%s3 + $0xb8] sm:$0xff]
  %v2910 = vld [vmem:[%s3 + $0xc0] sm:$0xff]
  %v2911 = vld [vmem:[%s3 + $0xc8] sm:$0xff]
  %v2912 = vld [vmem:[%s3 + $0xd0] sm:$0xff]
  %v2913 = vld [vmem:[%s3 + $0xd8] sm:$0xff]
  %v2914 = vld [vmem:[%s3 + $0xe0] sm:$0xff]
  %v2915 = vld [vmem:[%s3 + $0xe8] sm:$0xff]
  %v2916 = vld [vmem:[#allocation2 + $0x1] sm:$0xff]
  %v2917 = vld [vmem:[#allocation2 + $0x11] sm:$0xff]
  %v2918 = vld [vmem:[#allocation2 + $0x21] sm:$0xff]
  %v2919 = vld [vmem:[#allocation2 + $0x31] sm:$0xff]
  %v2920 = vld [vmem:[#allocation2 + $0x41] sm:$0xff]
  %v2921 = vld [vmem:[#allocation2 + $0x51] sm:$0xff]
  %v2922 = vld [vmem:[#allocation2 + $0x61] sm:$0xff]
  %v2923 = vld [vmem:[#allocation2 + $0x71] sm:$0xff]
  %s2924 = scalar_lea.vmem %s3, 240
  %v2925 = vld [vmem:[%s2924] sm:$0xff]
  %v2926 = vld [vmem:[%s2924 + $0x8] sm:$0xff]
  %v2927 = vld [vmem:[%s2924 + $0x10] sm:$0xff]
  %v2928 = vld [vmem:[%s2924 + $0x18] sm:$0xff]
  %v2929 = vld [vmem:[%s2924 + $0x20] sm:$0xff]
  %v2930 = vld [vmem:[%s2924 + $0x28] sm:$0xff]
  %v2931 = vld [vmem:[%s2924 + $0x30] sm:$0xff]
  %v2932 = vld [vmem:[%s2924 + $0x38] sm:$0xff]
  %v2933 = vld [vmem:[%s2924 + $0x40] sm:$0xff]
  %v2934 = vld [vmem:[%s2924 + $0x48] sm:$0xff]
  %v2935 = vld [vmem:[%s2924 + $0x50] sm:$0xff]
  %v2936 = vld [vmem:[%s2924 + $0x58] sm:$0xff]
  %v2937 = vld [vmem:[%s2924 + $0x60] sm:$0xff]
  %v2938 = vld [vmem:[%s2924 + $0x68] sm:$0xff]
  %v2939 = vld [vmem:[%s2924 + $0x70] sm:$0xff]
  %v2940 = vld [vmem:[%s2924 + $0x78] sm:$0xff]
  %v2941 = vld [vmem:[%s2924 + $0x80] sm:$0xff]
  %v2942 = vld [vmem:[%s2924 + $0x88] sm:$0xff]
  %v2943 = vld [vmem:[%s2924 + $0x90] sm:$0xff]
  %v2944 = vld [vmem:[%s2924 + $0x98] sm:$0xff]
  %v2945 = vld [vmem:[%s2924 + $0xa0] sm:$0xff]
  %v2946 = vld [vmem:[%s2924 + $0xa8] sm:$0xff]
  %v2947 = vld [vmem:[%s2924 + $0xb0] sm:$0xff]
  %v2948 = vld [vmem:[%s2924 + $0xb8] sm:$0xff]
  %v2949 = vld [vmem:[%s2924 + $0xc0] sm:$0xff]
  %v2950 = vld [vmem:[%s2924 + $0xc8] sm:$0xff]
  %v2951 = vld [vmem:[%s2924 + $0xd0] sm:$0xff]
  %v2952 = vld [vmem:[%s2924 + $0xd8] sm:$0xff]
  %v2953 = vld [vmem:[%s2924 + $0xe0] sm:$0xff]
  %v2954 = vld [vmem:[%s2924 + $0xe8] sm:$0xff]
  %v2956 = vsel %vm2861, %v2916, 0
  %v2959 = vsel %vm2861, %v2917, 0
  %v2962 = vsel %vm2861, %v2918, 0
  %v2965 = vsel %vm2861, %v2919, 0
  %v2968 = vsel %vm2861, %v2920, 0
  %v2971 = vsel %vm2861, %v2921, 0
  %v2974 = vsel %vm2861, %v2922, 0
  %v2977 = vsel %vm2861, %v2923, 0
  %2979 = vmatprep.subr.mxu0 %v2926
  %2980 = vmatpush1.msra.mxu0 %v2925
  %2981 = vmatprep.subr.mxu0 %v2928
  %2982 = vmatpush1.msra.mxu0 %v2927
  %2983 = vmatprep.subr.mxu0 %v2930
  %2984 = vmatpush1.msra.mxu0 %v2929
  %2985 = vmatprep.subr.mxu0 %v2932
  %2986 = vmatpush1.msra.mxu0 %v2931
  %2987 = vmatprep.subr.mxu0 %v2934
  %2988 = vmatpush1.msra.mxu0 %v2933
  %2989 = vmatprep.subr.mxu0 %v2936
  %2990 = vmatpush1.msra.mxu0 %v2935
  %2991 = vmatprep.subr.mxu0 %v2938
  %2992 = vmatpush1.msra.mxu0 %v2937
  %2993 = vmatprep.subr.mxu0 %v2940
  %2994 = vmatpush1.msra.mxu0 %v2939
  %2995 = vmatprep.subr.mxu0 %v2942
  %2996 = vmatpush1.msra.mxu0 %v2941
  %2997 = vmatprep.subr.mxu0 %v2944
  %2998 = vmatpush1.msra.mxu0 %v2943
  %2999 = vmatprep.subr.mxu0 %v2946
  %3000 = vmatpush1.msra.mxu0 %v2945
  %3001 = vmatprep.subr.mxu0 %v2948
  %3002 = vmatpush1.msra.mxu0 %v2947
  %3003 = vmatprep.subr.mxu0 %v2950
  %3004 = vmatpush1.msra.mxu0 %v2949
  %3005 = vmatprep.subr.mxu0 %v2952
  %3006 = vmatpush1.msra.mxu0 %v2951
  %3007 = vmatprep.subr.mxu0 %v2954
  %3008 = vmatpush1.msra.mxu0 %v2953
  %3009 = vmatprep.subr.mxu0 0.0
  %3010 = vmatpush1.msra.mxu0 0.0
  %3011 = vmatprep.subr.mxu0 0.0
  %3012 = vmatpush1.msra.mxu0 0.0
  %3013 = vmatprep.subr.mxu0 0.0
  %3014 = vmatpush1.msra.mxu0 0.0
  %3015 = vmatprep.subr.mxu0 0.0
  %3016 = vmatpush1.msra.mxu0 0.0
  %3017 = vmatprep.subr.mxu0 0.0
  %3018 = vmatpush1.msra.mxu0 0.0
  %3019 = vmatprep.subr.mxu0 0.0
  %3020 = vmatpush1.msra.mxu0 0.0
  %3021 = vmatprep.subr.mxu0 0.0
  %3022 = vmatpush1.msra.mxu0 0.0
  %3023 = vmatprep.subr.mxu0 0.0
  %3024 = vmatpush1.msra.mxu0 0.0
  %3025 = vmatprep.subr.mxu0 0.0
  %3026 = vmatpush1.msra.mxu0 0.0
  %3027 = vmatprep.subr.mxu0 0.0
  %3028 = vmatpush1.msra.mxu0 0.0
  %3029 = vmatprep.subr.mxu0 0.0
  %3030 = vmatpush1.msra.mxu0 0.0
  %3031 = vmatprep.subr.mxu0 0.0
  %3032 = vmatpush1.msra.mxu0 0.0
  %3033 = vmatprep.subr.mxu0 0.0
  %3034 = vmatpush1.msra.mxu0 0.0
  %3035 = vmatprep.subr.mxu0 0.0
  %3036 = vmatpush1.msra.mxu0 0.0
  %3037 = vmatprep.subr.mxu0 0.0
  %3038 = vmatpush1.msra.mxu0 0.0
  %3039 = vmatprep.subr.mxu0 0.0
  %3040 = vmatpush1.msra.mxu0 0.0
  %3041 = vmatprep.subr.mxu0 0.0
  %3042 = vmatpush1.msra.mxu0 0.0
  %3043 = vmatprep.mubr.f32.mxu0 0.0
  %3044 = vmatmul.mubr.f32.gmra.mrb[0].mxu0 %v2956
  %v3045 = vpop.f32.mrb[0].mxu0
  %v3046 = vadd.f32 0.0, %v3045
  %v3047 = vpop.f32.mrb[0].mxu0
  %v3048 = vadd.f32 0.0, %v3047
  %3049 = vmatprep.mubr.f32.mxu0 0.0
  %3050 = vmatmul.mubr.f32.gmra.mrb[0].mxu0 %v2959
  %v3051 = vpop.f32.mrb[0].mxu0
  %v3052 = vadd.f32 0.0, %v3051
  %v3053 = vpop.f32.mrb[0].mxu0
  %v3054 = vadd.f32 0.0, %v3053
  %3055 = vmatprep.mubr.f32.mxu0 0.0
  %3056 = vmatmul.mubr.f32.gmra.mrb[0].mxu0 %v2962
  %v3057 = vpop.f32.mrb[0].mxu0
  %v3058 = vadd.f32 0.0, %v3057
  %v3059 = vpop.f32.mrb[0].mxu0
  %v3060 = vadd.f32 0.0, %v3059
  %3061 = vmatprep.mubr.f32.mxu0 0.0
  %3062 = vmatmul.mubr.f32.gmra.mrb[0].mxu0 %v2965
  %v3063 = vpop.f32.mrb[0].mxu0
  %v3064 = vadd.f32 0.0, %v3063
  %v3065 = vpop.f32.mrb[0].mxu0
  %v3066 = vadd.f32 0.0, %v3065
  %3067 = vmatprep.mubr.f32.mxu0 0.0
  %3068 = vmatmul.mubr.f32.gmra.mrb[0].mxu0 %v2968
  %v3069 = vpop.f32.mrb[0].mxu0
  %v3070 = vadd.f32 0.0, %v3069
  %v3071 = vpop.f32.mrb[0].mxu0
  %v3072 = vadd.f32 0.0, %v3071
  %3073 = vmatprep.mubr.f32.mxu0 0.0
  %3074 = vmatmul.mubr.f32.gmra.mrb[0].mxu0 %v2971
  %v3075 = vpop.f32.mrb[0].mxu0
  %v3076 = vadd.f32 0.0, %v3075
  %v3077 = vpop.f32.mrb[0].mxu0
  %v3078 = vadd.f32 0.0, %v3077
  %3079 = vmatprep.mubr.f32.mxu0 0.0
  %3080 = vmatmul.mubr.f32.gmra.mrb[0].mxu0 %v2974
  %v3081 = vpop.f32.mrb[0].mxu0
  %v3082 = vadd.f32 0.0, %v3081
  %v3083 = vpop.f32.mrb[0].mxu0
  %v3084 = vadd.f32 0.0, %v3083
  %3085 = vmatprep.mubr.f32.mxu0 0.0
  %3086 = vmatmul.mubr.f32.gmra.mrb[0].mxu0 %v2977
  %v3087 = vpop.f32.mrb[0].mxu0
  %v3088 = vadd.f32 0.0, %v3087
  %v3089 = vpop.f32.mrb[0].mxu0
  %v3090 = vadd.f32 0.0, %v3089
  %3091 = vdwg.mxu0
  %v3093 = vsel %vm2861, %v2878, 0
  %v3096 = vsel %vm2861, %v2879, 0
  %v3099 = vsel %vm2861, %v2880, 0
  %v3102 = vsel %vm2861, %v2881, 0
  %v3105 = vsel %vm2861, %v2882, 0
  %v3108 = vsel %vm2861, %v2883, 0
  %v3111 = vsel %vm2861, %v2884, 0
  %v3114 = vsel %vm2861, %v2885, 0
  %3116 = vmatprep.subr.mxu0 %v2887
  %3117 = vmatpush1.msra.mxu0 %v2886
  %3118 = vmatprep.subr.mxu0 %v2889
  %3119 = vmatpush1.msra.mxu0 %v2888
  %3120 = vmatprep.subr.mxu0 %v2891
  %3121 = vmatpush1.msra.mxu0 %v2890
  %3122 = vmatprep.subr.mxu0 %v2893
  %3123 = vmatpush1.msra.mxu0 %v2892
  %3124 = vmatprep.subr.mxu0 %v2895
  %3125 = vmatpush1.msra.mxu0 %v2894
  %3126 = vmatprep.subr.mxu0 %v2897
  %3127 = vmatpush1.msra.mxu0 %v2896
  %3128 = vmatprep.subr.mxu0 %v2899
  %3129 = vmatpush1.msra.mxu0 %v2898
  %3130 = vmatprep.subr.mxu0 %v2901
  %3131 = vmatpush1.msra.mxu0 %v2900
  %3132 = vmatprep.subr.mxu0 %v2903
  %3133 = vmatpush1.msra.mxu0 %v2902
  %3134 = vmatprep.subr.mxu0 %v2905
  %3135 = vmatpush1.msra.mxu0 %v2904
  %3136 = vmatprep.subr.mxu0 %v2907
  %3137 = vmatpush1.msra.mxu0 %v2906
  %3138 = vmatprep.subr.mxu0 %v2909
  %3139 = vmatpush1.msra.mxu0 %v2908
  %3140 = vmatprep.subr.mxu0 %v2911
  %3141 = vmatpush1.msra.mxu0 %v2910
  %3142 = vmatprep.subr.mxu0 %v2913
  %3143 = vmatpush1.msra.mxu0 %v2912
  %3144 = vmatprep.subr.mxu0 %v2915
  %3145 = vmatpush1.msra.mxu0 %v2914
  %3146 = vmatprep.subr.mxu0 0.0
  %3147 = vmatpush1.msra.mxu0 0.0
  %3148 = vmatprep.subr.mxu0 0.0
  %3149 = vmatpush1.msra.mxu0 0.0
  %3150 = vmatprep.subr.mxu0 0.0
  %3151 = vmatpush1.msra.mxu0 0.0
  %3152 = vmatprep.subr.mxu0 0.0
  %3153 = vmatpush1.msra.mxu0 0.0
  %3154 = vmatprep.subr.mxu0 0.0
  %3155 = vmatpush1.msra.mxu0 0.0
  %3156 = vmatprep.subr.mxu0 0.0
  %3157 = vmatpush1.msra.mxu0 0.0
  %3158 = vmatprep.subr.mxu0 0.0
  %3159 = vmatpush1.msra.mxu0 0.0
  %3160 = vmatprep.subr.mxu0 0.0
  %3161 = vmatpush1.msra.mxu0 0.0
  %3162 = vmatprep.subr.mxu0 0.0
  %3163 = vmatpush1.msra.mxu0 0.0
  %3164 = vmatprep.subr.mxu0 0.0
  %3165 = vmatpush1.msra.mxu0 0.0
  %3166 = vmatprep.subr.mxu0 0.0
  %3167 = vmatpush1.msra.mxu0 0.0
  %3168 = vmatprep.subr.mxu0 0.0
  %3169 = vmatpush1.msra.mxu0 0.0
  %3170 = vmatprep.subr.mxu0 0.0
  %3171 = vmatpush1.msra.mxu0 0.0
  %3172 = vmatprep.subr.mxu0 0.0
  %3173 = vmatpush1.msra.mxu0 0.0
  %3174 = vmatprep.subr.mxu0 0.0
  %3175 = vmatpush1.msra.mxu0 0.0
  %3176 = vmatprep.subr.mxu0 0.0
  %3177 = vmatpush1.msra.mxu0 0.0
  %3178 = vmatprep.subr.mxu0 0.0
  %3179 = vmatpush1.msra.mxu0 0.0
  %3180 = vmatprep.mubr.f32.mxu0 0.0
  %3181 = vmatmul.mubr.f32.gmra.mrb[0].mxu0 %v3093
  %v3182 = vpop.f32.mrb[0].mxu0
  %v3183 = vadd.f32 %v3046, %v3182
  %v3184 = vpop.f32.mrb[0].mxu0
  %v3185 = vadd.f32 %v3048, %v3184
  %3186 = vmatprep.mubr.f32.mxu0 0.0
  %3187 = vmatmul.mubr.f32.gmra.mrb[0].mxu0 %v3096
  %v3188 = vpop.f32.mrb[0].mxu0
  %v3189 = vadd.f32 %v3052, %v3188
  %v3190 = vpop.f32.mrb[0].mxu0
  %v3191 = vadd.f32 %v3054, %v3190
  %3192 = vmatprep.mubr.f32.mxu0 0.0
  %3193 = vmatmul.mubr.f32.gmra.mrb[0].mxu0 %v3099
  %v3194 = vpop.f32.mrb[0].mxu0
  %v3195 = vadd.f32 %v3058, %v3194
  %v3196 = vpop.f32.mrb[0].mxu0
  %v3197 = vadd.f32 %v3060, %v3196
  %3198 = vmatprep.mubr.f32.mxu0 0.0
  %3199 = vmatmul.mubr.f32.gmra.mrb[0].mxu0 %v3102
  %v3200 = vpop.f32.mrb[0].mxu0
  %v3201 = vadd.f32 %v3064, %v3200
  %v3202 = vpop.f32.mrb[0].mxu0
  %v3203 = vadd.f32 %v3066, %v3202
  %3204 = vmatprep.mubr.f32.mxu0 0.0
  %3205 = vmatmul.mubr.f32.gmra.mrb[0].mxu0 %v3105
  %v3206 = vpop.f32.mrb[0].mxu0
  %v3207 = vadd.f32 %v3070, %v3206
  %v3208 = vpop.f32.mrb[0].mxu0
  %v3209 = vadd.f32 %v3072, %v3208
  %3210 = vmatprep.mubr.f32.mxu0 0.0
  %3211 = vmatmul.mubr.f32.gmra.mrb[0].mxu0 %v3108
  %v3212 = vpop.f32.mrb[0].mxu0
  %v3213 = vadd.f32 %v3076, %v3212
  %v3214 = vpop.f32.mrb[0].mxu0
  %v3215 = vadd.f32 %v3078, %v3214
  %3216 = vmatprep.mubr.f32.mxu0 0.0
  %3217 = vmatmul.mubr.f32.gmra.mrb[0].mxu0 %v3111
  %v3218 = vpop.f32.mrb[0].mxu0
  %v3219 = vadd.f32 %v3082, %v3218
  %v3220 = vpop.f32.mrb[0].mxu0
  %v3221 = vadd.f32 %v3084, %v3220
  %3222 = vmatprep.mubr.f32.mxu0 0.0
  %3223 = vmatmul.mubr.f32.gmra.mrb[0].mxu0 %v3114
  %v3224 = vpop.f32.mrb[0].mxu0
  %v3225 = vadd.f32 %v3088, %v3224
  %v3226 = vpop.f32.mrb[0].mxu0
  %v3227 = vadd.f32 %v3090, %v3226
  %3228 = vdwg.mxu0
  %v3229 = vld [vmem:[#allocation2 + $0x2] sm:$0xff]
  %v3230 = vld [vmem:[#allocation2 + $0x12] sm:$0xff]
  %v3231 = vld [vmem:[#allocation2 + $0x22] sm:$0xff]
  %v3232 = vld [vmem:[#allocation2 + $0x32] sm:$0xff]
  %v3233 = vld [vmem:[#allocation2 + $0x42] sm:$0xff]
  %v3234 = vld [vmem:[#allocation2 + $0x52] sm:$0xff]
  %v3235 = vld [vmem:[#allocation2 + $0x62] sm:$0xff]
  %v3236 = vld [vmem:[#allocation2 + $0x72] sm:$0xff]
  %s3237 = scalar_lea.vmem %s3, 480
  %v3238 = vld [vmem:[%s3237] sm:$0xff]
  %v3239 = vld [vmem:[%s3237 + $0x8] sm:$0xff]
  %v3240 = vld [vmem:[%s3237 + $0x10] sm:$0xff]
  %v3241 = vld [vmem:[%s3237 + $0x18] sm:$0xff]
  %v3242 = vld [vmem:[%s3237 + $0x20] sm:$0xff]
  %v3243 = vld [vmem:[%s3237 + $0x28] sm:$0xff]
  %v3244 = vld [vmem:[%s3237 + $0x30] sm:$0xff]
  %v3245 = vld [vmem:[%s3237 + $0x38] sm:$0xff]
  %v3246 = vld [vmem:[%s3237 + $0x40] sm:$0xff]
  %v3247 = vld [vmem:[%s3237 + $0x48] sm:$0xff]
  %v3248 = vld [vmem:[%s3237 + $0x50] sm:$0xff]
  %v3249 = vld [vmem:[%s3237 + $0x58] sm:$0xff]
  %v3250 = vld [vmem:[%s3237 + $0x60] sm:$0xff]
  %v3251 = vld [vmem:[%s3237 + $0x68] sm:$0xff]
  %v3252 = vld [vmem:[%s3237 + $0x70] sm:$0xff]
  %v3253 = vld [vmem:[%s3237 + $0x78] sm:$0xff]
  %v3254 = vld [vmem:[%s3237 + $0x80] sm:$0xff]
  %v3255 = vld [vmem:[%s3237 + $0x88] sm:$0xff]
  %v3256 = vld [vmem:[%s3237 + $0x90] sm:$0xff]
  %v3257 = vld [vmem:[%s3237 + $0x98] sm:$0xff]
  %v3258 = vld [vmem:[%s3237 + $0xa0] sm:$0xff]
  %v3259 = vld [vmem:[%s3237 + $0xa8] sm:$0xff]
  %v3260 = vld [vmem:[%s3237 + $0xb0] sm:$0xff]
  %v3261 = vld [vmem:[%s3237 + $0xb8] sm:$0xff]
  %v3262 = vld [vmem:[%s3237 + $0xc0] sm:$0xff]
  %v3263 = vld [vmem:[%s3237 + $0xc8] sm:$0xff]
  %v3264 = vld [vmem:[%s3237 + $0xd0] sm:$0xff]
  %v3265 = vld [vmem:[%s3237 + $0xd8] sm:$0xff]
  %v3266 = vld [vmem:[%s3237 + $0xe0] sm:$0xff]
  %v3267 = vld [vmem:[%s3237 + $0xe8] sm:$0xff]
  %v3269 = vsel %vm2861, %v3229, 0
  %v3272 = vsel %vm2861, %v3230, 0
  %v3275 = vsel %vm2861, %v3231, 0
  %v3278 = vsel %vm2861, %v3232, 0
  %v3281 = vsel %vm2861, %v3233, 0
  %v3284 = vsel %vm2861, %v3234, 0
  %v3287 = vsel %vm2861, %v3235, 0
  %v3290 = vsel %vm2861, %v3236, 0
  %3292 = vmatprep.subr.mxu0 %v3239
  %3293 = vmatpush1.msra.mxu0 %v3238
  %3294 = vmatprep.subr.mxu0 %v3241
  %3295 = vmatpush1.msra.mxu0 %v3240
  %3296 = vmatprep.subr.mxu0 %v3243
  %3297 = vmatpush1.msra.mxu0 %v3242
  %3298 = vmatprep.subr.mxu0 %v3245
  %3299 = vmatpush1.msra.mxu0 %v3244
  %3300 = vmatprep.subr.mxu0 %v3247
  %3301 = vmatpush1.msra.mxu0 %v3246
  %3302 = vmatprep.subr.mxu0 %v3249
  %3303 = vmatpush1.msra.mxu0 %v3248
  %3304 = vmatprep.subr.mxu0 %v3251
  %3305 = vmatpush1.msra.mxu0 %v3250
  %3306 = vmatprep.subr.mxu0 %v3253
  %3307 = vmatpush1.msra.mxu0 %v3252
  %3308 = vmatprep.subr.mxu0 %v3255
  %3309 = vmatpush1.msra.mxu0 %v3254
  %3310 = vmatprep.subr.mxu0 %v3257
  %3311 = vmatpush1.msra.mxu0 %v3256
  %3312 = vmatprep.subr.mxu0 %v3259
  %3313 = vmatpush1.msra.mxu0 %v3258
  %3314 = vmatprep.subr.mxu0 %v3261
  %3315 = vmatpush1.msra.mxu0 %v3260
  %3316 = vmatprep.subr.mxu0 %v3263
  %3317 = vmatpush1.msra.mxu0 %v3262
  %3318 = vmatprep.subr.mxu0 %v3265
  %3319 = vmatpush1.msra.mxu0 %v3264
  %3320 = vmatprep.subr.mxu0 %v3267
  %3321 = vmatpush1.msra.mxu0 %v3266
  %3322 = vmatprep.subr.mxu0 0.0
  %3323 = vmatpush1.msra.mxu0 0.0
  %3324 = vmatprep.subr.mxu0 0.0
  %3325 = vmatpush1.msra.mxu0 0.0
  %3326 = vmatprep.subr.mxu0 0.0
  %3327 = vmatpush1.msra.mxu0 0.0
  %3328 = vmatprep.subr.mxu0 0.0
  %3329 = vmatpush1.msra.mxu0 0.0
  %3330 = vmatprep.subr.mxu0 0.0
  %3331 = vmatpush1.msra.mxu0 0.0
  %3332 = vmatprep.subr.mxu0 0.0
  %3333 = vmatpush1.msra.mxu0 0.0
  %3334 = vmatprep.subr.mxu0 0.0
  %3335 = vmatpush1.msra.mxu0 0.0
  %3336 = vmatprep.subr.mxu0 0.0
  %3337 = vmatpush1.msra.mxu0 0.0
  %3338 = vmatprep.subr.mxu0 0.0
  %3339 = vmatpush1.msra.mxu0 0.0
  %3340 = vmatprep.subr.mxu0 0.0
  %3341 = vmatpush1.msra.mxu0 0.0
  %3342 = vmatprep.subr.mxu0 0.0
  %3343 = vmatpush1.msra.mxu0 0.0
  %3344 = vmatprep.subr.mxu0 0.0
  %3345 = vmatpush1.msra.mxu0 0.0
  %3346 = vmatprep.subr.mxu0 0.0
  %3347 = vmatpush1.msra.mxu0 0.0
  %3348 = vmatprep.subr.mxu0 0.0
  %3349 = vmatpush1.msra.mxu0 0.0
  %3350 = vmatprep.subr.mxu0 0.0
  %3351 = vmatpush1.msra.mxu0 0.0
  %3352 = vmatprep.subr.mxu0 0.0
  %3353 = vmatpush1.msra.mxu0 0.0
  %3354 = vmatprep.subr.mxu0 0.0
  %3355 = vmatpush1.msra.mxu0 0.0
  %3356 = vmatprep.mubr.f32.mxu0 0.0
  %3357 = vmatmul.mubr.f32.gmra.mrb[0].mxu0 %v3269
  %v3358 = vpop.f32.mrb[0].mxu0
  %v3359 = vadd.f32 0.0, %v3358
  %v3360 = vpop.f32.mrb[0].mxu0
  %v3361 = vadd.f32 0.0, %v3360
  %3362 = vmatprep.mubr.f32.mxu0 0.0
  %3363 = vmatmul.mubr.f32.gmra.mrb[0].mxu0 %v3272
  %v3364 = vpop.f32.mrb[0].mxu0
  %v3365 = vadd.f32 0.0, %v3364
  %v3366 = vpop.f32.mrb[0].mxu0
  %v3367 = vadd.f32 0.0, %v3366
  %3368 = vmatprep.mubr.f32.mxu0 0.0
  %3369 = vmatmul.mubr.f32.gmra.mrb[0].mxu0 %v3275
  %v3370 = vpop.f32.mrb[0].mxu0
  %v3371 = vadd.f32 0.0, %v3370
  %v3372 = vpop.f32.mrb[0].mxu0
  %v3373 = vadd.f32 0.0, %v3372
  %3374 = vmatprep.mubr.f32.mxu0 0.0
  %3375 = vmatmul.mubr.f32.gmra.mrb[0].mxu0 %v3278
  %v3376 = vpop.f32.mrb[0].mxu0
  %v3377 = vadd.f32 0.0, %v3376
  %v3378 = vpop.f32.mrb[0].mxu0
  %v3379 = vadd.f32 0.0, %v3378
  %3380 = vmatprep.mubr.f32.mxu0 0.0
  %3381 = vmatmul.mubr.f32.gmra.mrb[0].mxu0 %v3281
  %v3382 = vpop.f32.mrb[0].mxu0
  %v3383 = vadd.f32 0.0, %v3382
  %v3384 = vpop.f32.mrb[0].mxu0
  %v3385 = vadd.f32 0.0, %v3384
  %3386 = vmatprep.mubr.f32.mxu0 0.0
  %3387 = vmatmul.mubr.f32.gmra.mrb[0].mxu0 %v3284
  %v3388 = vpop.f32.mrb[0].mxu0
  %v3389 = vadd.f32 0.0, %v3388
  %v3390 = vpop.f32.mrb[0].mxu0
  %v3391 = vadd.f32 0.0, %v3390
  %3392 = vmatprep.mubr.f32.mxu0 0.0
  %3393 = vmatmul.mubr.f32.gmra.mrb[0].mxu0 %v3287
  %v3394 = vpop.f32.mrb[0].mxu0
  %v3395 = vadd.f32 0.0, %v3394
  %v3396 = vpop.f32.mrb[0].mxu0
  %v3397 = vadd.f32 0.0, %v3396
  %3398 = vmatprep.mubr.f32.mxu0 0.0
  %3399 = vmatmul.mubr.f32.gmra.mrb[0].mxu0 %v3290
  %v3400 = vpop.f32.mrb[0].mxu0
  %v3401 = vadd.f32 0.0, %v3400
  %v3402 = vpop.f32.mrb[0].mxu0
  %v3403 = vadd.f32 0.0, %v3402
  %3404 = vdwg.mxu0
  %v3405 = vadd.f32 %v3183, %v3359
  %v3406 = vadd.f32 %v3185, %v3361
  %v3407 = vadd.f32 %v3189, %v3365
  %v3408 = vadd.f32 %v3191, %v3367
  %v3409 = vadd.f32 %v3195, %v3371
  %v3410 = vadd.f32 %v3197, %v3373
  %v3411 = vadd.f32 %v3201, %v3377
  %v3412 = vadd.f32 %v3203, %v3379
  %v3413 = vadd.f32 %v3207, %v3383
  %v3414 = vadd.f32 %v3209, %v3385
  %v3415 = vadd.f32 %v3213, %v3389
  %v3416 = vadd.f32 %v3215, %v3391
  %v3417 = vadd.f32 %v3219, %v3395
  %v3418 = vadd.f32 %v3221, %v3397
  %v3419 = vadd.f32 %v3225, %v3401
  %v3420 = vadd.f32 %v3227, %v3403
  %v3421 = vld [vmem:[#allocation2 + $0x3] sm:$0xff]
  %v3422 = vld [vmem:[#allocation2 + $0x13] sm:$0xff]
  %v3423 = vld [vmem:[#allocation2 + $0x23] sm:$0xff]
  %v3424 = vld [vmem:[#allocation2 + $0x33] sm:$0xff]
  %v3425 = vld [vmem:[#allocation2 + $0x43] sm:$0xff]
  %v3426 = vld [vmem:[#allocation2 + $0x53] sm:$0xff]
  %v3427 = vld [vmem:[#allocation2 + $0x63] sm:$0xff]
  %v3428 = vld [vmem:[#allocation2 + $0x73] sm:$0xff]
  %s3429 = scalar_lea.vmem %s3, 720
  %v3430 = vld [vmem:[%s3429] sm:$0xff]
  %v3431 = vld [vmem:[%s3429 + $0x8] sm:$0xff]
  %v3432 = vld [vmem:[%s3429 + $0x10] sm:$0xff]
  %v3433 = vld [vmem:[%s3429 + $0x18] sm:$0xff]
  %v3434 = vld [vmem:[%s3429 + $0x20] sm:$0xff]
  %v3435 = vld [vmem:[%s3429 + $0x28] sm:$0xff]
  %v3436 = vld [vmem:[%s3429 + $0x30] sm:$0xff]
  %v3437 = vld [vmem:[%s3429 + $0x38] sm:$0xff]
  %v3438 = vld [vmem:[%s3429 + $0x40] sm:$0xff]
  %v3439 = vld [vmem:[%s3429 + $0x48] sm:$0xff]
  %v3440 = vld [vmem:[%s3429 + $0x50] sm:$0xff]
  %v3441 = vld [vmem:[%s3429 + $0x58] sm:$0xff]
  %v3442 = vld [vmem:[%s3429 + $0x60] sm:$0xff]
  %v3443 = vld [vmem:[%s3429 + $0x68] sm:$0xff]
  %v3444 = vld [vmem:[%s3429 + $0x70] sm:$0xff]
  %v3445 = vld [vmem:[%s3429 + $0x78] sm:$0xff]
  %v3446 = vld [vmem:[%s3429 + $0x80] sm:$0xff]
  %v3447 = vld [vmem:[%s3429 + $0x88] sm:$0xff]
  %v3448 = vld [vmem:[%s3429 + $0x90] sm:$0xff]
  %v3449 = vld [vmem:[%s3429 + $0x98] sm:$0xff]
  %v3450 = vld [vmem:[%s3429 + $0xa0] sm:$0xff]
  %v3451 = vld [vmem:[%s3429 + $0xa8] sm:$0xff]
  %v3452 = vld [vmem:[%s3429 + $0xb0] sm:$0xff]
  %v3453 = vld [vmem:[%s3429 + $0xb8] sm:$0xff]
  %v3454 = vld [vmem:[%s3429 + $0xc0] sm:$0xff]
  %v3455 = vld [vmem:[%s3429 + $0xc8] sm:$0xff]
  %v3456 = vld [vmem:[%s3429 + $0xd0] sm:$0xff]
  %v3457 = vld [vmem:[%s3429 + $0xd8] sm:$0xff]
  %v3458 = vld [vmem:[%s3429 + $0xe0] sm:$0xff]
  %v3459 = vld [vmem:[%s3429 + $0xe8] sm:$0xff]
  %v3461 = vsel %vm2861, %v3421, 0
  %v3464 = vsel %vm2861, %v3422, 0
  %v3467 = vsel %vm2861, %v3423, 0
  %v3470 = vsel %vm2861, %v3424, 0
  %v3473 = vsel %vm2861, %v3425, 0
  %v3476 = vsel %vm2861, %v3426, 0
  %v3479 = vsel %vm2861, %v3427, 0
  %v3482 = vsel %vm2861, %v3428, 0
  %3484 = vmatprep.subr.mxu0 %v3431
  %3485 = vmatpush1.msra.mxu0 %v3430
  %3486 = vmatprep.subr.mxu0 %v3433
  %3487 = vmatpush1.msra.mxu0 %v3432
  %3488 = vmatprep.subr.mxu0 %v3435
  %3489 = vmatpush1.msra.mxu0 %v3434
  %3490 = vmatprep.subr.mxu0 %v3437
  %3491 = vmatpush1.msra.mxu0 %v3436
  %3492 = vmatprep.subr.mxu0 %v3439
  %3493 = vmatpush1.msra.mxu0 %v3438
  %3494 = vmatprep.subr.mxu0 %v3441
  %3495 = vmatpush1.msra.mxu0 %v3440
  %3496 = vmatprep.subr.mxu0 %v3443
  %3497 = vmatpush1.msra.mxu0 %v3442
  %3498 = vmatprep.subr.mxu0 %v3445
  %3499 = vmatpush1.msra.mxu0 %v3444
  %3500 = vmatprep.subr.mxu0 %v3447
  %3501 = vmatpush1.msra.mxu0 %v3446
  %3502 = vmatprep.subr.mxu0 %v3449
  %3503 = vmatpush1.msra.mxu0 %v3448
  %3504 = vmatprep.subr.mxu0 %v3451
  %3505 = vmatpush1.msra.mxu0 %v3450
  %3506 = vmatprep.subr.mxu0 %v3453
  %3507 = vmatpush1.msra.mxu0 %v3452
  %3508 = vmatprep.subr.mxu0 %v3455
  %3509 = vmatpush1.msra.mxu0 %v3454
  %3510 = vmatprep.subr.mxu0 %v3457
  %3511 = vmatpush1.msra.mxu0 %v3456
  %3512 = vmatprep.subr.mxu0 %v3459
  %3513 = vmatpush1.msra.mxu0 %v3458
  %3514 = vmatprep.subr.mxu0 0.0
  %3515 = vmatpush1.msra.mxu0 0.0
  %3516 = vmatprep.subr.mxu0 0.0
  %3517 = vmatpush1.msra.mxu0 0.0
  %3518 = vmatprep.subr.mxu0 0.0
  %3519 = vmatpush1.msra.mxu0 0.0
  %3520 = vmatprep.subr.mxu0 0.0
  %3521 = vmatpush1.msra.mxu0 0.0
  %3522 = vmatprep.subr.mxu0 0.0
  %3523 = vmatpush1.msra.mxu0 0.0
  %3524 = vmatprep.subr.mxu0 0.0
  %3525 = vmatpush1.msra.mxu0 0.0
  %3526 = vmatprep.subr.mxu0 0.0
  %3527 = vmatpush1.msra.mxu0 0.0
  %3528 = vmatprep.subr.mxu0 0.0
  %3529 = vmatpush1.msra.mxu0 0.0
  %3530 = vmatprep.subr.mxu0 0.0
  %3531 = vmatpush1.msra.mxu0 0.0
  %3532 = vmatprep.subr.mxu0 0.0
  %3533 = vmatpush1.msra.mxu0 0.0
  %3534 = vmatprep.subr.mxu0 0.0
  %3535 = vmatpush1.msra.mxu0 0.0
  %3536 = vmatprep.subr.mxu0 0.0
  %3537 = vmatpush1.msra.mxu0 0.0
  %3538 = vmatprep.subr.mxu0 0.0
  %3539 = vmatpush1.msra.mxu0 0.0
  %3540 = vmatprep.subr.mxu0 0.0
  %3541 = vmatpush1.msra.mxu0 0.0
  %3542 = vmatprep.subr.mxu0 0.0
  %3543 = vmatpush1.msra.mxu0 0.0
  %3544 = vmatprep.subr.mxu0 0.0
  %3545 = vmatpush1.msra.mxu0 0.0
  %3546 = vmatprep.subr.mxu0 0.0
  %3547 = vmatpush1.msra.mxu0 0.0
  %3548 = vmatprep.mubr.f32.mxu0 0.0
  %3549 = vmatmul.mubr.f32.gmra.mrb[0].mxu0 %v3461
  %v3550 = vpop.f32.mrb[0].mxu0
  %v3551 = vadd.f32 0.0, %v3550
  %v3552 = vpop.f32.mrb[0].mxu0
  %v3553 = vadd.f32 0.0, %v3552
  %3554 = vmatprep.mubr.f32.mxu0 0.0
  %3555 = vmatmul.mubr.f32.gmra.mrb[0].mxu0 %v3464
  %v3556 = vpop.f32.mrb[0].mxu0
  %v3557 = vadd.f32 0.0, %v3556
  %v3558 = vpop.f32.mrb[0].mxu0
  %v3559 = vadd.f32 0.0, %v3558
  %3560 = vmatprep.mubr.f32.mxu0 0.0
  %3561 = vmatmul.mubr.f32.gmra.mrb[0].mxu0 %v3467
  %v3562 = vpop.f32.mrb[0].mxu0
  %v3563 = vadd.f32 0.0, %v3562
  %v3564 = vpop.f32.mrb[0].mxu0
  %v3565 = vadd.f32 0.0, %v3564
  %3566 = vmatprep.mubr.f32.mxu0 0.0
  %3567 = vmatmul.mubr.f32.gmra.mrb[0].mxu0 %v3470
  %v3568 = vpop.f32.mrb[0].mxu0
  %v3569 = vadd.f32 0.0, %v3568
  %v3570 = vpop.f32.mrb[0].mxu0
  %v3571 = vadd.f32 0.0, %v3570
  %3572 = vmatprep.mubr.f32.mxu0 0.0
  %3573 = vmatmul.mubr.f32.gmra.mrb[0].mxu0 %v3473
  %v3574 = vpop.f32.mrb[0].mxu0
  %v3575 = vadd.f32 0.0, %v3574
  %v3576 = vpop.f32.mrb[0].mxu0
  %v3577 = vadd.f32 0.0, %v3576
  %3578 = vmatprep.mubr.f32.mxu0 0.0
  %3579 = vmatmul.mubr.f32.gmra.mrb[0].mxu0 %v3476
  %v3580 = vpop.f32.mrb[0].mxu0
  %v3581 = vadd.f32 0.0, %v3580
  %v3582 = vpop.f32.mrb[0].mxu0
  %v3583 = vadd.f32 0.0, %v3582
  %3584 = vmatprep.mubr.f32.mxu0 0.0
  %3585 = vmatmul.mubr.f32.gmra.mrb[0].mxu0 %v3479
  %v3586 = vpop.f32.mrb[0].mxu0
  %v3587 = vadd.f32 0.0, %v3586
  %v3588 = vpop.f32.mrb[0].mxu0
  %v3589 = vadd.f32 0.0, %v3588
  %3590 = vmatprep.mubr.f32.mxu0 0.0
  %3591 = vmatmul.mubr.f32.gmra.mrb[0].mxu0 %v3482
  %v3592 = vpop.f32.mrb[0].mxu0
  %v3593 = vadd.f32 0.0, %v3592
  %v3594 = vpop.f32.mrb[0].mxu0
  %v3595 = vadd.f32 0.0, %v3594
  %3596 = vdwg.mxu0
  %v3597 = vadd.f32 %v3405, %v3551
  %v3598 = vadd.f32 %v3406, %v3553
  %v3599 = vadd.f32 %v3407, %v3557
  %v3600 = vadd.f32 %v3408, %v3559
  %v3601 = vadd.f32 %v3409, %v3563
  %v3602 = vadd.f32 %v3410, %v3565
  %v3603 = vadd.f32 %v3411, %v3569
  %v3604 = vadd.f32 %v3412, %v3571
  %v3605 = vadd.f32 %v3413, %v3575
  %v3606 = vadd.f32 %v3414, %v3577
  %v3607 = vadd.f32 %v3415, %v3581
  %v3608 = vadd.f32 %v3416, %v3583
  %v3609 = vadd.f32 %v3417, %v3587
  %v3610 = vadd.f32 %v3418, %v3589
  %v3611 = vadd.f32 %v3419, %v3593
  %v3612 = vadd.f32 %v3420, %v3595
  %v3613 = vld [vmem:[#allocation2 + $0x4] sm:$0xff]
  %v3614 = vld [vmem:[#allocation2 + $0x14] sm:$0xff]
  %v3615 = vld [vmem:[#allocation2 + $0x24] sm:$0xff]
  %v3616 = vld [vmem:[#allocation2 + $0x34] sm:$0xff]
  %v3617 = vld [vmem:[#allocation2 + $0x44] sm:$0xff]
  %v3618 = vld [vmem:[#allocation2 + $0x54] sm:$0xff]
  %v3619 = vld [vmem:[#allocation2 + $0x64] sm:$0xff]
  %v3620 = vld [vmem:[#allocation2 + $0x74] sm:$0xff]
  %s3621 = scalar_lea.vmem %s3, 960
  %v3622 = vld [vmem:[%s3621] sm:$0xff]
  %v3623 = vld [vmem:[%s3621 + $0x8] sm:$0xff]
  %v3624 = vld [vmem:[%s3621 + $0x10] sm:$0xff]
  %v3625 = vld [vmem:[%s3621 + $0x18] sm:$0xff]
  %v3626 = vld [vmem:[%s3621 + $0x20] sm:$0xff]
  %v3627 = vld [vmem:[%s3621 + $0x28] sm:$0xff]
  %v3628 = vld [vmem:[%s3621 + $0x30] sm:$0xff]
  %v3629 = vld [vmem:[%s3621 + $0x38] sm:$0xff]
  %v3630 = vld [vmem:[%s3621 + $0x40] sm:$0xff]
  %v3631 = vld [vmem:[%s3621 + $0x48] sm:$0xff]
  %v3632 = vld [vmem:[%s3621 + $0x50] sm:$0xff]
  %v3633 = vld [vmem:[%s3621 + $0x58] sm:$0xff]
  %v3634 = vld [vmem:[%s3621 + $0x60] sm:$0xff]
  %v3635 = vld [vmem:[%s3621 + $0x68] sm:$0xff]
  %v3636 = vld [vmem:[%s3621 + $0x70] sm:$0xff]
  %v3637 = vld [vmem:[%s3621 + $0x78] sm:$0xff]
  %v3638 = vld [vmem:[%s3621 + $0x80] sm:$0xff]
  %v3639 = vld [vmem:[%s3621 + $0x88] sm:$0xff]
  %v3640 = vld [vmem:[%s3621 + $0x90] sm:$0xff]
  %v3641 = vld [vmem:[%s3621 + $0x98] sm:$0xff]
  %v3642 = vld [vmem:[%s3621 + $0xa0] sm:$0xff]
  %v3643 = vld [vmem:[%s3621 + $0xa8] sm:$0xff]
  %v3644 = vld [vmem:[%s3621 + $0xb0] sm:$0xff]
  %v3645 = vld [vmem:[%s3621 + $0xb8] sm:$0xff]
  %v3646 = vld [vmem:[%s3621 + $0xc0] sm:$0xff]
  %v3647 = vld [vmem:[%s3621 + $0xc8] sm:$0xff]
  %v3648 = vld [vmem:[%s3621 + $0xd0] sm:$0xff]
  %v3649 = vld [vmem:[%s3621 + $0xd8] sm:$0xff]
  %v3650 = vld [vmem:[%s3621 + $0xe0] sm:$0xff]
  %v3651 = vld [vmem:[%s3621 + $0xe8] sm:$0xff]
  %v3653 = vsel %vm2861, %v3613, 0
  %v3656 = vsel %vm2861, %v3614, 0
  %v3659 = vsel %vm2861, %v3615, 0
  %v3662 = vsel %vm2861, %v3616, 0
  %v3665 = vsel %vm2861, %v3617, 0
  %v3668 = vsel %vm2861, %v3618, 0
  %v3671 = vsel %vm2861, %v3619, 0
  %v3674 = vsel %vm2861, %v3620, 0
  %3676 = vmatprep.subr.mxu0 %v3623
  %3677 = vmatpush1.msra.mxu0 %v3622
  %3678 = vmatprep.subr.mxu0 %v3625
  %3679 = vmatpush1.msra.mxu0 %v3624
  %3680 = vmatprep.subr.mxu0 %v3627
  %3681 = vmatpush1.msra.mxu0 %v3626
  %3682 = vmatprep.subr.mxu0 %v3629
  %3683 = vmatpush1.msra.mxu0 %v3628
  %3684 = vmatprep.subr.mxu0 %v3631
  %3685 = vmatpush1.msra.mxu0 %v3630
  %3686 = vmatprep.subr.mxu0 %v3633
  %3687 = vmatpush1.msra.mxu0 %v3632
  %3688 = vmatprep.subr.mxu0 %v3635
  %3689 = vmatpush1.msra.mxu0 %v3634
  %3690 = vmatprep.subr.mxu0 %v3637
  %3691 = vmatpush1.msra.mxu0 %v3636
  %3692 = vmatprep.subr.mxu0 %v3639
  %3693 = vmatpush1.msra.mxu0 %v3638
  %3694 = vmatprep.subr.mxu0 %v3641
  %3695 = vmatpush1.msra.mxu0 %v3640
  %3696 = vmatprep.subr.mxu0 %v3643
  %3697 = vmatpush1.msra.mxu0 %v3642
  %3698 = vmatprep.subr.mxu0 %v3645
  %3699 = vmatpush1.msra.mxu0 %v3644
  %3700 = vmatprep.subr.mxu0 %v3647
  %3701 = vmatpush1.msra.mxu0 %v3646
  %3702 = vmatprep.subr.mxu0 %v3649
  %3703 = vmatpush1.msra.mxu0 %v3648
  %3704 = vmatprep.subr.mxu0 %v3651
  %3705 = vmatpush1.msra.mxu0 %v3650
  %3706 = vmatprep.subr.mxu0 0.0
  %3707 = vmatpush1.msra.mxu0 0.0
  %3708 = vmatprep.subr.mxu0 0.0
  %3709 = vmatpush1.msra.mxu0 0.0
  %3710 = vmatprep.subr.mxu0 0.0
  %3711 = vmatpush1.msra.mxu0 0.0
  %3712 = vmatprep.subr.mxu0 0.0
  %3713 = vmatpush1.msra.mxu0 0.0
  %3714 = vmatprep.subr.mxu0 0.0
  %3715 = vmatpush1.msra.mxu0 0.0
  %3716 = vmatprep.subr.mxu0 0.0
  %3717 = vmatpush1.msra.mxu0 0.0
  %3718 = vmatprep.subr.mxu0 0.0
  %3719 = vmatpush1.msra.mxu0 0.0
  %3720 = vmatprep.subr.mxu0 0.0
  %3721 = vmatpush1.msra.mxu0 0.0
  %3722 = vmatprep.subr.mxu0 0.0
  %3723 = vmatpush1.msra.mxu0 0.0
  %3724 = vmatprep.subr.mxu0 0.0
  %3725 = vmatpush1.msra.mxu0 0.0
  %3726 = vmatprep.subr.mxu0 0.0
  %3727 = vmatpush1.msra.mxu0 0.0
  %3728 = vmatprep.subr.mxu0 0.0
  %3729 = vmatpush1.msra.mxu0 0.0
  %3730 = vmatprep.subr.mxu0 0.0
  %3731 = vmatpush1.msra.mxu0 0.0
  %3732 = vmatprep.subr.mxu0 0.0
  %3733 = vmatpush1.msra.mxu0 0.0
  %3734 = vmatprep.subr.mxu0 0.0
  %3735 = vmatpush1.msra.mxu0 0.0
  %3736 = vmatprep.subr.mxu0 0.0
  %3737 = vmatpush1.msra.mxu0 0.0
  %3738 = vmatprep.subr.mxu0 0.0
  %3739 = vmatpush1.msra.mxu0 0.0
  %3740 = vmatprep.mubr.f32.mxu0 0.0
  %3741 = vmatmul.mubr.f32.gmra.mrb[0].mxu0 %v3653
  %v3742 = vpop.f32.mrb[0].mxu0
  %v3743 = vadd.f32 0.0, %v3742
  %v3744 = vpop.f32.mrb[0].mxu0
  %v3745 = vadd.f32 0.0, %v3744
  %3746 = vmatprep.mubr.f32.mxu0 0.0
  %3747 = vmatmul.mubr.f32.gmra.mrb[0].mxu0 %v3656
  %v3748 = vpop.f32.mrb[0].mxu0
  %v3749 = vadd.f32 0.0, %v3748
  %v3750 = vpop.f32.mrb[0].mxu0
  %v3751 = vadd.f32 0.0, %v3750
  %3752 = vmatprep.mubr.f32.mxu0 0.0
  %3753 = vmatmul.mubr.f32.gmra.mrb[0].mxu0 %v3659
  %v3754 = vpop.f32.mrb[0].mxu0
  %v3755 = vadd.f32 0.0, %v3754
  %v3756 = vpop.f32.mrb[0].mxu0
  %v3757 = vadd.f32 0.0, %v3756
  %3758 = vmatprep.mubr.f32.mxu0 0.0
  %3759 = vmatmul.mubr.f32.gmra.mrb[0].mxu0 %v3662
  %v3760 = vpop.f32.mrb[0].mxu0
  %v3761 = vadd.f32 0.0, %v3760
  %v3762 = vpop.f32.mrb[0].mxu0
  %v3763 = vadd.f32 0.0, %v3762
  %3764 = vmatprep.mubr.f32.mxu0 0.0
  %3765 = vmatmul.mubr.f32.gmra.mrb[0].mxu0 %v3665
  %v3766 = vpop.f32.mrb[0].mxu0
  %v3767 = vadd.f32 0.0, %v3766
  %v3768 = vpop.f32.mrb[0].mxu0
  %v3769 = vadd.f32 0.0, %v3768
  %3770 = vmatprep.mubr.f32.mxu0 0.0
  %3771 = vmatmul.mubr.f32.gmra.mrb[0].mxu0 %v3668
  %v3772 = vpop.f32.mrb[0].mxu0
  %v3773 = vadd.f32 0.0, %v3772
  %v3774 = vpop.f32.mrb[0].mxu0
  %v3775 = vadd.f32 0.0, %v3774
  %3776 = vmatprep.mubr.f32.mxu0 0.0
  %3777 = vmatmul.mubr.f32.gmra.mrb[0].mxu0 %v3671
  %v3778 = vpop.f32.mrb[0].mxu0
  %v3779 = vadd.f32 0.0, %v3778
  %v3780 = vpop.f32.mrb[0].mxu0
  %v3781 = vadd.f32 0.0, %v3780
  %3782 = vmatprep.mubr.f32.mxu0 0.0
  %3783 = vmatmul.mubr.f32.gmra.mrb[0].mxu0 %v3674
  %v3784 = vpop.f32.mrb[0].mxu0
  %v3785 = vadd.f32 0.0, %v3784
  %v3786 = vpop.f32.mrb[0].mxu0
  %v3787 = vadd.f32 0.0, %v3786
  %3788 = vdwg.mxu0
  %v3789 = vadd.f32 %v3597, %v3743
  %v3790 = vadd.f32 %v3598, %v3745
  %v3791 = vadd.f32 %v3599, %v3749
  %v3792 = vadd.f32 %v3600, %v3751
  %v3793 = vadd.f32 %v3601, %v3755
  %v3794 = vadd.f32 %v3602, %v3757
  %v3795 = vadd.f32 %v3603, %v3761
  %v3796 = vadd.f32 %v3604, %v3763
  %v3797 = vadd.f32 %v3605, %v3767
  %v3798 = vadd.f32 %v3606, %v3769
  %v3799 = vadd.f32 %v3607, %v3773
  %v3800 = vadd.f32 %v3608, %v3775
  %v3801 = vadd.f32 %v3609, %v3779
  %v3802 = vadd.f32 %v3610, %v3781
  %v3803 = vadd.f32 %v3611, %v3785
  %v3804 = vadd.f32 %v3612, %v3787
  %v3805 = vld [vmem:[%s4] sm:$0x3]
  %v3807 = vlaneseq
  %v3808 = vshrl.u32 %v3807, 7
  %v3809 = vsub.s32 0, %v3808
  %v3810 = vrot.slane %v3805, %v3809
  %v3811 = vlaneseq
  %v3812 = vshrl.u32 %v3811, 7
  %v3813 = vsub.s32 1, %v3812
  %v3814 = vrot.slane %v3805, %v3813
  %v3817 = vadd.f32 %v3789, %v3810
  %v3818 = vadd.f32 %v3790, %v3814
  %v3819 = vadd.f32 %v3791, %v3810
  %v3820 = vadd.f32 %v3792, %v3814
  %v3821 = vadd.f32 %v3793, %v3810
  %v3822 = vadd.f32 %v3794, %v3814
  %v3823 = vadd.f32 %v3795, %v3810
  %v3824 = vadd.f32 %v3796, %v3814
  %v3825 = vadd.f32 %v3797, %v3810
  %v3826 = vadd.f32 %v3798, %v3814
  %v3827 = vadd.f32 %v3799, %v3810
  %v3828 = vadd.f32 %v3800, %v3814
  %v3829 = vadd.f32 %v3801, %v3810
  %v3830 = vadd.f32 %v3802, %v3814
  %v3831 = vadd.f32 %v3803, %v3810
  %v3832 = vadd.f32 %v3804, %v3814
  %v3833 = vld [vmem:[%s7] sm:$0xff]
  %v3834 = vld [vmem:[%s7 + $0x8] sm:$0xff]
  %v3835 = vld [vmem:[%s7 + $0x10] sm:$0xff]
  %v3836 = vld [vmem:[%s7 + $0x18] sm:$0xff]
  %v3837 = vld [vmem:[%s7 + $0x20] sm:$0xff]
  %v3838 = vld [vmem:[%s7 + $0x28] sm:$0xff]
  %v3839 = vld [vmem:[%s7 + $0x30] sm:$0xff]
  %v3840 = vld [vmem:[%s7 + $0x38] sm:$0xff]
  %v3841 = vld [vmem:[%s7 + $0x40] sm:$0xff]
  %v3842 = vld [vmem:[%s7 + $0x48] sm:$0xff]
  %v3843 = vld [vmem:[%s7 + $0x50] sm:$0xff]
  %v3844 = vld [vmem:[%s7 + $0x58] sm:$0xff]
  %v3845 = vld [vmem:[%s7 + $0x60] sm:$0xff]
  %v3846 = vld [vmem:[%s7 + $0x68] sm:$0xff]
  %v3847 = vld [vmem:[%s7 + $0x70] sm:$0xff]
  %v3848 = vld [vmem:[%s7 + $0x78] sm:$0xff]
  %v3849 = vld [vmem:[%s7 + $0x80] sm:$0xff]
  %v3850 = vld [vmem:[%s7 + $0x88] sm:$0xff]
  %v3851 = vld [vmem:[%s7 + $0x90] sm:$0xff]
  %v3852 = vld [vmem:[%s7 + $0x98] sm:$0xff]
  %vm3853 = vcmask 261120
  %v3855 = vsel %vm3853, %v3818, 0
  %v3858 = vsel %vm3853, %v3820, 0
  %v3861 = vsel %vm3853, %v3822, 0
  %v3864 = vsel %vm3853, %v3824, 0
  %v3867 = vsel %vm3853, %v3826, 0
  %v3870 = vsel %vm3853, %v3828, 0
  %v3873 = vsel %vm3853, %v3830, 0
  %v3876 = vsel %vm3853, %v3832, 0
  %3878 = vmatprep.subr.mxu0 0.0
  %3879 = vmatpush1.msra.mxu0 %v3833
  %3880 = vmatprep.subr.mxu0 0.0
  %3881 = vmatpush1.msra.mxu0 %v3834
  %3882 = vmatprep.subr.mxu0 0.0
  %3883 = vmatpush1.msra.mxu0 %v3835
  %3884 = vmatprep.subr.mxu0 0.0
  %3885 = vmatpush1.msra.mxu0 %v3836
  %3886 = vmatprep.subr.mxu0 0.0
  %3887 = vmatpush1.msra.mxu0 %v3837
  %3888 = vmatprep.subr.mxu0 0.0
  %3889 = vmatpush1.msra.mxu0 %v3838
  %3890 = vmatprep.subr.mxu0 0.0
  %3891 = vmatpush1.msra.mxu0 %v3839
  %3892 = vmatprep.subr.mxu0 0.0
  %3893 = vmatpush1.msra.mxu0 %v3840
  %3894 = vmatprep.subr.mxu0 0.0
  %3895 = vmatpush1.msra.mxu0 %v3841
  %3896 = vmatprep.subr.mxu0 0.0
  %3897 = vmatpush1.msra.mxu0 %v3842
  %3898 = vmatprep.subr.mxu0 0.0
  %3899 = vmatpush1.msra.mxu0 %v3843
  %3900 = vmatprep.subr.mxu0 0.0
  %3901 = vmatpush1.msra.mxu0 %v3844
  %3902 = vmatprep.subr.mxu0 0.0
  %3903 = vmatpush1.msra.mxu0 %v3845
  %3904 = vmatprep.subr.mxu0 0.0
  %3905 = vmatpush1.msra.mxu0 %v3846
  %3906 = vmatprep.subr.mxu0 0.0
  %3907 = vmatpush1.msra.mxu0 %v3847
  %3908 = vmatprep.subr.mxu0 0.0
  %3909 = vmatpush1.msra.mxu0 %v3848
  %3910 = vmatprep.subr.mxu0 0.0
  %3911 = vmatpush1.msra.mxu0 %v3849
  %3912 = vmatprep.subr.mxu0 0.0
  %3913 = vmatpush1.msra.mxu0 %v3850
  %3914 = vmatprep.subr.mxu0 0.0
  %3915 = vmatpush1.msra.mxu0 %v3851
  %3916 = vmatprep.subr.mxu0 0.0
  %3917 = vmatpush1.msra.mxu0 %v3852
  %3918 = vmatprep.subr.mxu0 0.0
  %3919 = vmatpush1.msra.mxu0 0.0
  %3920 = vmatprep.subr.mxu0 0.0
  %3921 = vmatpush1.msra.mxu0 0.0
  %3922 = vmatprep.subr.mxu0 0.0
  %3923 = vmatpush1.msra.mxu0 0.0
  %3924 = vmatprep.subr.mxu0 0.0
  %3925 = vmatpush1.msra.mxu0 0.0
  %3926 = vmatprep.subr.mxu0 0.0
  %3927 = vmatpush1.msra.mxu0 0.0
  %3928 = vmatprep.subr.mxu0 0.0
  %3929 = vmatpush1.msra.mxu0 0.0
  %3930 = vmatprep.subr.mxu0 0.0
  %3931 = vmatpush1.msra.mxu0 0.0
  %3932 = vmatprep.subr.mxu0 0.0
  %3933 = vmatpush1.msra.mxu0 0.0
  %3934 = vmatprep.subr.mxu0 0.0
  %3935 = vmatpush1.msra.mxu0 0.0
  %3936 = vmatprep.subr.mxu0 0.0
  %3937 = vmatpush1.msra.mxu0 0.0
  %3938 = vmatprep.subr.mxu0 0.0
  %3939 = vmatpush1.msra.mxu0 0.0
  %3940 = vmatprep.subr.mxu0 0.0
  %3941 = vmatpush1.msra.mxu0 0.0
  %3942 = vmatprep.mubr.f32.mxu0 %v3855
  %3943 = vmatmul.mubr.f32.gmra.mrb[0].mxu0 %v3817
  %v3944 = vpop.f32.mrb[0].mxu0
  %v3945 = vadd.f32 0.0, %v3944
  %v3946 = vpop.f32.mrb[0].mxu0
  %3947 = vmatprep.mubr.f32.mxu0 %v3858
  %3948 = vmatmul.mubr.f32.gmra.mrb[0].mxu0 %v3819
  %v3949 = vpop.f32.mrb[0].mxu0
  %v3950 = vadd.f32 0.0, %v3949
  %v3951 = vpop.f32.mrb[0].mxu0
  %3952 = vmatprep.mubr.f32.mxu0 %v3861
  %3953 = vmatmul.mubr.f32.gmra.mrb[0].mxu0 %v3821
  %v3954 = vpop.f32.mrb[0].mxu0
  %v3955 = vadd.f32 0.0, %v3954
  %v3956 = vpop.f32.mrb[0].mxu0
  %3957 = vmatprep.mubr.f32.mxu0 %v3864
  %3958 = vmatmul.mubr.f32.gmra.mrb[0].mxu0 %v3823
  %v3959 = vpop.f32.mrb[0].mxu0
  %v3960 = vadd.f32 0.0, %v3959
  %v3961 = vpop.f32.mrb[0].mxu0
  %3962 = vmatprep.mubr.f32.mxu0 %v3867
  %3963 = vmatmul.mubr.f32.gmra.mrb[0].mxu0 %v3825
  %v3964 = vpop.f32.mrb[0].mxu0
  %v3965 = vadd.f32 0.0, %v3964
  %v3966 = vpop.f32.mrb[0].mxu0
  %3967 = vmatprep.mubr.f32.mxu0 %v3870
  %3968 = vmatmul.mubr.f32.gmra.mrb[0].mxu0 %v3827
  %v3969 = vpop.f32.mrb[0].mxu0
  %v3970 = vadd.f32 0.0, %v3969
  %v3971 = vpop.f32.mrb[0].mxu0
  %3972 = vmatprep.mubr.f32.mxu0 %v3873
  %3973 = vmatmul.mubr.f32.gmra.mrb[0].mxu0 %v3829
  %v3974 = vpop.f32.mrb[0].mxu0
  %v3975 = vadd.f32 0.0, %v3974
  %v3976 = vpop.f32.mrb[0].mxu0
  %3977 = vmatprep.mubr.f32.mxu0 %v3876
  %3978 = vmatmul.mubr.f32.gmra.mrb[0].mxu0 %v3831
  %v3979 = vpop.f32.mrb[0].mxu0
  %v3980 = vadd.f32 0.0, %v3979
  %v3981 = vpop.f32.mrb[0].mxu0
  %3982 = vdwg.mxu0
  %s3983 = scalar_lea.vmem %s7, 160
  %v3984 = vld [vmem:[%s3983] sm:$0xff]
  %v3985 = vld [vmem:[%s3983 + $0x8] sm:$0xff]
  %v3986 = vld [vmem:[%s3983 + $0x10] sm:$0xff]
  %v3987 = vld [vmem:[%s3983 + $0x18] sm:$0xff]
  %v3988 = vld [vmem:[%s3983 + $0x20] sm:$0xff]
  %v3989 = vld [vmem:[%s3983 + $0x28] sm:$0xff]
  %v3990 = vld [vmem:[%s3983 + $0x30] sm:$0xff]
  %v3991 = vld [vmem:[%s3983 + $0x38] sm:$0xff]
  %v3992 = vld [vmem:[%s3983 + $0x40] sm:$0xff]
  %v3993 = vld [vmem:[%s3983 + $0x48] sm:$0xff]
  %v3994 = vld [vmem:[%s3983 + $0x50] sm:$0xff]
  %v3995 = vld [vmem:[%s3983 + $0x58] sm:$0xff]
  %v3996 = vld [vmem:[%s3983 + $0x60] sm:$0xff]
  %v3997 = vld [vmem:[%s3983 + $0x68] sm:$0xff]
  %v3998 = vld [vmem:[%s3983 + $0x70] sm:$0xff]
  %v3999 = vld [vmem:[%s3983 + $0x78] sm:$0xff]
  %v4000 = vld [vmem:[%s3983 + $0x80] sm:$0xff]
  %v4001 = vld [vmem:[%s3983 + $0x88] sm:$0xff]
  %v4002 = vld [vmem:[%s3983 + $0x90] sm:$0xff]
  %v4003 = vld [vmem:[%s3983 + $0x98] sm:$0xff]
  %4004 = vmatprep.subr.mxu0 0.0
  %4005 = vmatpush1.msra.mxu0 %v3984
  %4006 = vmatprep.subr.mxu0 0.0
  %4007 = vmatpush1.msra.mxu0 %v3985
  %4008 = vmatprep.subr.mxu0 0.0
  %4009 = vmatpush1.msra.mxu0 %v3986
  %4010 = vmatprep.subr.mxu0 0.0
  %4011 = vmatpush1.msra.mxu0 %v3987
  %4012 = vmatprep.subr.mxu0 0.0
  %4013 = vmatpush1.msra.mxu0 %v3988
  %4014 = vmatprep.subr.mxu0 0.0
  %4015 = vmatpush1.msra.mxu0 %v3989
  %4016 = vmatprep.subr.mxu0 0.0
  %4017 = vmatpush1.msra.mxu0 %v3990
  %4018 = vmatprep.subr.mxu0 0.0
  %4019 = vmatpush1.msra.mxu0 %v3991
  %4020 = vmatprep.subr.mxu0 0.0
  %4021 = vmatpush1.msra.mxu0 %v3992
  %4022 = vmatprep.subr.mxu0 0.0
  %4023 = vmatpush1.msra.mxu0 %v3993
  %4024 = vmatprep.subr.mxu0 0.0
  %4025 = vmatpush1.msra.mxu0 %v3994
  %4026 = vmatprep.subr.mxu0 0.0
  %4027 = vmatpush1.msra.mxu0 %v3995
  %4028 = vmatprep.subr.mxu0 0.0
  %4029 = vmatpush1.msra.mxu0 %v3996
  %4030 = vmatprep.subr.mxu0 0.0
  %4031 = vmatpush1.msra.mxu0 %v3997
  %4032 = vmatprep.subr.mxu0 0.0
  %4033 = vmatpush1.msra.mxu0 %v3998
  %4034 = vmatprep.subr.mxu0 0.0
  %4035 = vmatpush1.msra.mxu0 %v3999
  %4036 = vmatprep.subr.mxu0 0.0
  %4037 = vmatpush1.msra.mxu0 %v4000
  %4038 = vmatprep.subr.mxu0 0.0
  %4039 = vmatpush1.msra.mxu0 %v4001
  %4040 = vmatprep.subr.mxu0 0.0
  %4041 = vmatpush1.msra.mxu0 %v4002
  %4042 = vmatprep.subr.mxu0 0.0
  %4043 = vmatpush1.msra.mxu0 %v4003
  %4044 = vmatprep.subr.mxu0 0.0
  %4045 = vmatpush1.msra.mxu0 0.0
  %4046 = vmatprep.subr.mxu0 0.0
  %4047 = vmatpush1.msra.mxu0 0.0
  %4048 = vmatprep.subr.mxu0 0.0
  %4049 = vmatpush1.msra.mxu0 0.0
  %4050 = vmatprep.subr.mxu0 0.0
  %4051 = vmatpush1.msra.mxu0 0.0
  %4052 = vmatprep.subr.mxu0 0.0
  %4053 = vmatpush1.msra.mxu0 0.0
  %4054 = vmatprep.subr.mxu0 0.0
  %4055 = vmatpush1.msra.mxu0 0.0
  %4056 = vmatprep.subr.mxu0 0.0
  %4057 = vmatpush1.msra.mxu0 0.0
  %4058 = vmatprep.subr.mxu0 0.0
  %4059 = vmatpush1.msra.mxu0 0.0
  %4060 = vmatprep.subr.mxu0 0.0
  %4061 = vmatpush1.msra.mxu0 0.0
  %4062 = vmatprep.subr.mxu0 0.0
  %4063 = vmatpush1.msra.mxu0 0.0
  %4064 = vmatprep.subr.mxu0 0.0
  %4065 = vmatpush1.msra.mxu0 0.0
  %4066 = vmatprep.subr.mxu0 0.0
  %4067 = vmatpush1.msra.mxu0 0.0
  %4068 = vmatprep.mubr.f32.mxu0 %v3855
  %4069 = vmatmul.mubr.f32.gmra.mrb[0].mxu0 %v3817
  %v4070 = vpop.f32.mrb[0].mxu0
  %v4071 = vadd.f32 0.0, %v4070
  %v4072 = vpop.f32.mrb[0].mxu0
  %4073 = vmatprep.mubr.f32.mxu0 %v3858
  %4074 = vmatmul.mubr.f32.gmra.mrb[0].mxu0 %v3819
  %v4075 = vpop.f32.mrb[0].mxu0
  %v4076 = vadd.f32 0.0, %v4075
  %v4077 = vpop.f32.mrb[0].mxu0
  %4078 = vmatprep.mubr.f32.mxu0 %v3861
  %4079 = vmatmul.mubr.f32.gmra.mrb[0].mxu0 %v3821
  %v4080 = vpop.f32.mrb[0].mxu0
  %v4081 = vadd.f32 0.0, %v4080
  %v4082 = vpop.f32.mrb[0].mxu0
  %4083 = vmatprep.mubr.f32.mxu0 %v3864
  %4084 = vmatmul.mubr.f32.gmra.mrb[0].mxu0 %v3823
  %v4085 = vpop.f32.mrb[0].mxu0
  %v4086 = vadd.f32 0.0, %v4085
  %v4087 = vpop.f32.mrb[0].mxu0
  %4088 = vmatprep.mubr.f32.mxu0 %v3867
  %4089 = vmatmul.mubr.f32.gmra.mrb[0].mxu0 %v3825
  %v4090 = vpop.f32.mrb[0].mxu0
  %v4091 = vadd.f32 0.0, %v4090
  %v4092 = vpop.f32.mrb[0].mxu0
  %4093 = vmatprep.mubr.f32.mxu0 %v3870
  %4094 = vmatmul.mubr.f32.gmra.mrb[0].mxu0 %v3827
  %v4095 = vpop.f32.mrb[0].mxu0
  %v4096 = vadd.f32 0.0, %v4095
  %v4097 = vpop.f32.mrb[0].mxu0
  %4098 = vmatprep.mubr.f32.mxu0 %v3873
  %4099 = vmatmul.mubr.f32.gmra.mrb[0].mxu0 %v3829
  %v4100 = vpop.f32.mrb[0].mxu0
  %v4101 = vadd.f32 0.0, %v4100
  %v4102 = vpop.f32.mrb[0].mxu0
  %4103 = vmatprep.mubr.f32.mxu0 %v3876
  %4104 = vmatmul.mubr.f32.gmra.mrb[0].mxu0 %v3831
  %v4105 = vpop.f32.mrb[0].mxu0
  %v4106 = vadd.f32 0.0, %v4105
  %v4107 = vpop.f32.mrb[0].mxu0
  %4108 = vdwg.mxu0
  %v4109 = vmax.f32 %v3945, %v4071
  %v4110 = vmax.f32 %v3950, %v4076
  %v4111 = vmax.f32 %v3955, %v4081
  %v4112 = vmax.f32 %v3960, %v4086
  %v4113 = vmax.f32 %v3965, %v4091
  %v4114 = vmax.f32 %v3970, %v4096
  %v4115 = vmax.f32 %v3975, %v4101
  %v4116 = vmax.f32 %v3980, %v4106
  %v4117 = vld [vmem:[%s8] sm:$0xff]
  %v4118 = vld [vmem:[%s8 + $0x8] sm:$0xff]
  %v4119 = vld [vmem:[%s8 + $0x10] sm:$0xff]
  %v4120 = vld [vmem:[%s8 + $0x18] sm:$0xff]
  %v4121 = vld [vmem:[%s8 + $0x20] sm:$0xff]
  %v4122 = vld [vmem:[%s8 + $0x28] sm:$0xff]
  %v4123 = vld [vmem:[%s8 + $0x30] sm:$0xff]
  %v4124 = vld [vmem:[%s8 + $0x38] sm:$0xff]
  %v4126 = vsel %vm2409, %v4117, 0
  %v4129 = vsel %vm2409, %v4118, 0
  %v4132 = vsel %vm2409, %v4119, 0
  %v4135 = vsel %vm2409, %v4120, 0
  %v4138 = vsel %vm2409, %v4121, 0
  %v4141 = vsel %vm2409, %v4122, 0
  %v4144 = vsel %vm2409, %v4123, 0
  %v4147 = vsel %vm2409, %v4124, 0
  %4149 = vmatprep.subr.mxu0 0.0
  %4150 = vmatpush1.msra.mxu0 %v4109
  %4151 = vmatprep.subr.mxu0 0.0
  %4152 = vmatpush1.msra.mxu0 %v4110
  %4153 = vmatprep.subr.mxu0 0.0
  %4154 = vmatpush1.msra.mxu0 %v4111
  %4155 = vmatprep.subr.mxu0 0.0
  %4156 = vmatpush1.msra.mxu0 %v4112
  %4157 = vmatprep.subr.mxu0 0.0
  %4158 = vmatpush1.msra.mxu0 %v4113
  %4159 = vmatprep.subr.mxu0 0.0
  %4160 = vmatpush1.msra.mxu0 %v4114
  %4161 = vmatprep.subr.mxu0 0.0
  %4162 = vmatpush1.msra.mxu0 %v4115
  %4163 = vmatprep.subr.mxu0 0.0
  %4164 = vmatpush1.msra.mxu0 %v4116
  %4165 = vmatprep.subr.mxu0 0.0
  %4166 = vmatpush1.msra.mxu0 0.0
  %4167 = vmatprep.subr.mxu0 0.0
  %4168 = vmatpush1.msra.mxu0 0.0
  %4169 = vmatprep.subr.mxu0 0.0
  %4170 = vmatpush1.msra.mxu0 0.0
  %4171 = vmatprep.subr.mxu0 0.0
  %4172 = vmatpush1.msra.mxu0 0.0
  %4173 = vmatprep.subr.mxu0 0.0
  %4174 = vmatpush1.msra.mxu0 0.0
  %4175 = vmatprep.subr.mxu0 0.0
  %4176 = vmatpush1.msra.mxu0 0.0
  %4177 = vmatprep.subr.mxu0 0.0
  %4178 = vmatpush1.msra.mxu0 0.0
  %4179 = vmatprep.subr.mxu0 0.0
  %4180 = vmatpush1.msra.mxu0 0.0
  %4181 = vmatprep.subr.mxu0 0.0
  %4182 = vmatpush1.msra.mxu0 0.0
  %4183 = vmatprep.subr.mxu0 0.0
  %4184 = vmatpush1.msra.mxu0 0.0
  %4185 = vmatprep.subr.mxu0 0.0
  %4186 = vmatpush1.msra.mxu0 0.0
  %4187 = vmatprep.subr.mxu0 0.0
  %4188 = vmatpush1.msra.mxu0 0.0
  %4189 = vmatprep.subr.mxu0 0.0
  %4190 = vmatpush1.msra.mxu0 0.0
  %4191 = vmatprep.subr.mxu0 0.0
  %4192 = vmatpush1.msra.mxu0 0.0
  %4193 = vmatprep.subr.mxu0 0.0
  %4194 = vmatpush1.msra.mxu0 0.0
  %4195 = vmatprep.subr.mxu0 0.0
  %4196 = vmatpush1.msra.mxu0 0.0
  %4197 = vmatprep.subr.mxu0 0.0
  %4198 = vmatpush1.msra.mxu0 0.0
  %4199 = vmatprep.subr.mxu0 0.0
  %4200 = vmatpush1.msra.mxu0 0.0
  %4201 = vmatprep.subr.mxu0 0.0
  %4202 = vmatpush1.msra.mxu0 0.0
  %4203 = vmatprep.subr.mxu0 0.0
  %4204 = vmatpush1.msra.mxu0 0.0
  %4205 = vmatprep.subr.mxu0 0.0
  %4206 = vmatpush1.msra.mxu0 0.0
  %4207 = vmatprep.subr.mxu0 0.0
  %4208 = vmatpush1.msra.mxu0 0.0
  %4209 = vmatprep.subr.mxu0 0.0
  %4210 = vmatpush1.msra.mxu0 0.0
  %4211 = vmatprep.subr.mxu0 0.0
  %4212 = vmatpush1.msra.mxu0 0.0
  %4213 = vmatprep.mubr.f32.mxu0 0.0
  %4214 = vmatmul.mubr.f32.gmra.mrb[0].mxu0 %v4126
  %v4215 = vpop.f32.mrb[0].mxu0
  %v4216 = vadd.f32 0.0, %v4215
  %v4217 = vpop.f32.mrb[0].mxu0
  %4218 = vmatprep.mubr.f32.mxu0 0.0
  %4219 = vmatmul.mubr.f32.gmra.mrb[0].mxu0 %v4129
  %v4220 = vpop.f32.mrb[0].mxu0
  %v4221 = vadd.f32 0.0, %v4220
  %v4222 = vpop.f32.mrb[0].mxu0
  %4223 = vmatprep.mubr.f32.mxu0 0.0
  %4224 = vmatmul.mubr.f32.gmra.mrb[0].mxu0 %v4132
  %v4225 = vpop.f32.mrb[0].mxu0
  %v4226 = vadd.f32 0.0, %v4225
  %v4227 = vpop.f32.mrb[0].mxu0
  %4228 = vmatprep.mubr.f32.mxu0 0.0
  %4229 = vmatmul.mubr.f32.gmra.mrb[0].mxu0 %v4135
  %v4230 = vpop.f32.mrb[0].mxu0
  %v4231 = vadd.f32 0.0, %v4230
  %v4232 = vpop.f32.mrb[0].mxu0
  %4233 = vmatprep.mubr.f32.mxu0 0.0
  %4234 = vmatmul.mubr.f32.gmra.mrb[0].mxu0 %v4138
  %v4235 = vpop.f32.mrb[0].mxu0
  %v4236 = vadd.f32 0.0, %v4235
  %v4237 = vpop.f32.mrb[0].mxu0
  %4238 = vmatprep.mubr.f32.mxu0 0.0
  %4239 = vmatmul.mubr.f32.gmra.mrb[0].mxu0 %v4141
  %v4240 = vpop.f32.mrb[0].mxu0
  %v4241 = vadd.f32 0.0, %v4240
  %v4242 = vpop.f32.mrb[0].mxu0
  %4243 = vmatprep.mubr.f32.mxu0 0.0
  %4244 = vmatmul.mubr.f32.gmra.mrb[0].mxu0 %v4144
  %v4245 = vpop.f32.mrb[0].mxu0
  %v4246 = vadd.f32 0.0, %v4245
  %v4247 = vpop.f32.mrb[0].mxu0
  %4248 = vmatprep.mubr.f32.mxu0 0.0
  %4249 = vmatmul.mubr.f32.gmra.mrb[0].mxu0 %v4147
  %v4250 = vpop.f32.mrb[0].mxu0
  %v4251 = vadd.f32 0.0, %v4250
  %v4252 = vpop.f32.mrb[0].mxu0
  %4253 = vdwg.mxu0
  %s4254 = scalar_lea.vmem %s8, 64
  %v4255 = vld [vmem:[%s4254] sm:$0xff]
  %v4256 = vld [vmem:[%s4254 + $0x8] sm:$0xff]
  %v4257 = vld [vmem:[%s4254 + $0x10] sm:$0xff]
  %v4258 = vld [vmem:[%s4254 + $0x18] sm:$0xff]
  %v4259 = vld [vmem:[%s4254 + $0x20] sm:$0xff]
  %v4260 = vld [vmem:[%s4254 + $0x28] sm:$0xff]
  %v4261 = vld [vmem:[%s4254 + $0x30] sm:$0xff]
  %v4262 = vld [vmem:[%s4254 + $0x38] sm:$0xff]
  %v4264 = vsel %vm2409, %v4255, 0
  %v4267 = vsel %vm2409, %v4256, 0
  %v4270 = vsel %vm2409, %v4257, 0
  %v4273 = vsel %vm2409, %v4258, 0
  %v4276 = vsel %vm2409, %v4259, 0
  %v4279 = vsel %vm2409, %v4260, 0
  %v4282 = vsel %vm2409, %v4261, 0
  %v4285 = vsel %vm2409, %v4262, 0
  %4287 = vmatprep.subr.mxu0 0.0
  %4288 = vmatpush1.msra.mxu0 %v4109
  %4289 = vmatprep.subr.mxu0 0.0
  %4290 = vmatpush1.msra.mxu0 %v4110
  %4291 = vmatprep.subr.mxu0 0.0
  %4292 = vmatpush1.msra.mxu0 %v4111
  %4293 = vmatprep.subr.mxu0 0.0
  %4294 = vmatpush1.msra.mxu0 %v4112
  %4295 = vmatprep.subr.mxu0 0.0
  %4296 = vmatpush1.msra.mxu0 %v4113
  %4297 = vmatprep.subr.mxu0 0.0
  %4298 = vmatpush1.msra.mxu0 %v4114
  %4299 = vmatprep.subr.mxu0 0.0
  %4300 = vmatpush1.msra.mxu0 %v4115
  %4301 = vmatprep.subr.mxu0 0.0
  %4302 = vmatpush1.msra.mxu0 %v4116
  %4303 = vmatprep.subr.mxu0 0.0
  %4304 = vmatpush1.msra.mxu0 0.0
  %4305 = vmatprep.subr.mxu0 0.0
  %4306 = vmatpush1.msra.mxu0 0.0
  %4307 = vmatprep.subr.mxu0 0.0
  %4308 = vmatpush1.msra.mxu0 0.0
  %4309 = vmatprep.subr.mxu0 0.0
  %4310 = vmatpush1.msra.mxu0 0.0
  %4311 = vmatprep.subr.mxu0 0.0
  %4312 = vmatpush1.msra.mxu0 0.0
  %4313 = vmatprep.subr.mxu0 0.0
  %4314 = vmatpush1.msra.mxu0 0.0
  %4315 = vmatprep.subr.mxu0 0.0
  %4316 = vmatpush1.msra.mxu0 0.0
  %4317 = vmatprep.subr.mxu0 0.0
  %4318 = vmatpush1.msra.mxu0 0.0
  %4319 = vmatprep.subr.mxu0 0.0
  %4320 = vmatpush1.msra.mxu0 0.0
  %4321 = vmatprep.subr.mxu0 0.0
  %4322 = vmatpush1.msra.mxu0 0.0
  %4323 = vmatprep.subr.mxu0 0.0
  %4324 = vmatpush1.msra.mxu0 0.0
  %4325 = vmatprep.subr.mxu0 0.0
  %4326 = vmatpush1.msra.mxu0 0.0
  %4327 = vmatprep.subr.mxu0 0.0
  %4328 = vmatpush1.msra.mxu0 0.0
  %4329 = vmatprep.subr.mxu0 0.0
  %4330 = vmatpush1.msra.mxu0 0.0
  %4331 = vmatprep.subr.mxu0 0.0
  %4332 = vmatpush1.msra.mxu0 0.0
  %4333 = vmatprep.subr.mxu0 0.0
  %4334 = vmatpush1.msra.mxu0 0.0
  %4335 = vmatprep.subr.mxu0 0.0
  %4336 = vmatpush1.msra.mxu0 0.0
  %4337 = vmatprep.subr.mxu0 0.0
  %4338 = vmatpush1.msra.mxu0 0.0
  %4339 = vmatprep.subr.mxu0 0.0
  %4340 = vmatpush1.msra.mxu0 0.0
  %4341 = vmatprep.subr.mxu0 0.0
  %4342 = vmatpush1.msra.mxu0 0.0
  %4343 = vmatprep.subr.mxu0 0.0
  %4344 = vmatpush1.msra.mxu0 0.0
  %4345 = vmatprep.subr.mxu0 0.0
  %4346 = vmatpush1.msra.mxu0 0.0
  %4347 = vmatprep.subr.mxu0 0.0
  %4348 = vmatpush1.msra.mxu0 0.0
  %4349 = vmatprep.subr.mxu0 0.0
  %4350 = vmatpush1.msra.mxu0 0.0
  %4351 = vmatprep.mubr.f32.mxu0 0.0
  %4352 = vmatmul.mubr.f32.gmra.mrb[0].mxu0 %v4264
  %v4353 = vpop.f32.mrb[0].mxu0
  %v4354 = vadd.f32 0.0, %v4353
  %v4355 = vpop.f32.mrb[0].mxu0
  %4356 = vmatprep.mubr.f32.mxu0 0.0
  %4357 = vmatmul.mubr.f32.gmra.mrb[0].mxu0 %v4267
  %v4358 = vpop.f32.mrb[0].mxu0
  %v4359 = vadd.f32 0.0, %v4358
  %v4360 = vpop.f32.mrb[0].mxu0
  %4361 = vmatprep.mubr.f32.mxu0 0.0
  %4362 = vmatmul.mubr.f32.gmra.mrb[0].mxu0 %v4270
  %v4363 = vpop.f32.mrb[0].mxu0
  %v4364 = vadd.f32 0.0, %v4363
  %v4365 = vpop.f32.mrb[0].mxu0
  %4366 = vmatprep.mubr.f32.mxu0 0.0
  %4367 = vmatmul.mubr.f32.gmra.mrb[0].mxu0 %v4273
  %v4368 = vpop.f32.mrb[0].mxu0
  %v4369 = vadd.f32 0.0, %v4368
  %v4370 = vpop.f32.mrb[0].mxu0
  %4371 = vmatprep.mubr.f32.mxu0 0.0
  %4372 = vmatmul.mubr.f32.gmra.mrb[0].mxu0 %v4276
  %v4373 = vpop.f32.mrb[0].mxu0
  %v4374 = vadd.f32 0.0, %v4373
  %v4375 = vpop.f32.mrb[0].mxu0
  %4376 = vmatprep.mubr.f32.mxu0 0.0
  %4377 = vmatmul.mubr.f32.gmra.mrb[0].mxu0 %v4279
  %v4378 = vpop.f32.mrb[0].mxu0
  %v4379 = vadd.f32 0.0, %v4378
  %v4380 = vpop.f32.mrb[0].mxu0
  %4381 = vmatprep.mubr.f32.mxu0 0.0
  %4382 = vmatmul.mubr.f32.gmra.mrb[0].mxu0 %v4282
  %v4383 = vpop.f32.mrb[0].mxu0
  %v4384 = vadd.f32 0.0, %v4383
  %v4385 = vpop.f32.mrb[0].mxu0
  %4386 = vmatprep.mubr.f32.mxu0 0.0
  %4387 = vmatmul.mubr.f32.gmra.mrb[0].mxu0 %v4285
  %v4388 = vpop.f32.mrb[0].mxu0
  %v4389 = vadd.f32 0.0, %v4388
  %v4390 = vpop.f32.mrb[0].mxu0
  %4391 = vdwg.mxu0
  %v4392 = vmax.f32 %v4216, %v4354
  %v4393 = vmax.f32 %v4221, %v4359
  %v4394 = vmax.f32 %v4226, %v4364
  %v4395 = vmax.f32 %v4231, %v4369
  %v4396 = vmax.f32 %v4236, %v4374
  %v4397 = vmax.f32 %v4241, %v4379
  %v4398 = vmax.f32 %v4246, %v4384
  %v4399 = vmax.f32 %v4251, %v4389
  %v4400 = vmax.f32 %v4392, 0.0
  %v4401 = vmax.f32 %v4393, 0.0
  %v4402 = vmax.f32 %v4394, 0.0
  %v4403 = vmax.f32 %v4395, 0.0
  %v4404 = vmax.f32 %v4396, 0.0
  %v4405 = vmax.f32 %v4397, 0.0
  %v4406 = vmax.f32 %v4398, 0.0
  %v4407 = vmax.f32 %v4399, 0.0
  %vm4408 = vcmask 654336
  %4409 = vst.msk [vmem:[#allocation3] sm:$0xff] %vm4408, %v4400
  %4410 = vst.msk [vmem:[#allocation3 + $0x8] sm:$0xff] %vm4408, %v4401
  %4411 = vst.msk [vmem:[#allocation3 + $0x10] sm:$0xff] %vm4408, %v4402
  %4412 = vst.msk [vmem:[#allocation3 + $0x18] sm:$0xff] %vm4408, %v4403
  %4413 = vst.msk [vmem:[#allocation3 + $0x20] sm:$0xff] %vm4408, %v4404
  %4414 = vst.msk [vmem:[#allocation3 + $0x28] sm:$0xff] %vm4408, %v4405
  %4415 = vst.msk [vmem:[#allocation3 + $0x30] sm:$0xff] %vm4408, %v4406
  %4416 = vst.msk [vmem:[#allocation3 + $0x38] sm:$0xff] %vm4408, %v4407
  %v4417 = vld [vmem:[#allocation3] sm:$0x1]
  %v4418 = vld [vmem:[#allocation3 + $0x8] sm:$0x1]
  %v4419 = vld [vmem:[#allocation3 + $0x10] sm:$0x1]
  %v4420 = vld [vmem:[#allocation3 + $0x18] sm:$0x1]
  %v4421 = vld [vmem:[#allocation3 + $0x20] sm:$0x1]
  %v4422 = vld [vmem:[#allocation3 + $0x28] sm:$0x1]
  %v4423 = vld [vmem:[#allocation3 + $0x30] sm:$0x1]
  %v4424 = vld [vmem:[#allocation3 + $0x38] sm:$0x1]
  %v4425 = vld [vmem:[%s9] sm:$0xff]
  %v4426 = vld [vmem:[%s9 + $0x8] sm:$0xff]
  %v4427 = vld [vmem:[%s9 + $0x10] sm:$0xff]
  %v4428 = vld [vmem:[%s9 + $0x18] sm:$0xff]
  %v4429 = vld [vmem:[%s9 + $0x20] sm:$0xff]
  %v4430 = vld [vmem:[%s9 + $0x28] sm:$0xff]
  %v4431 = vld [vmem:[%s9 + $0x30] sm:$0xff]
  %v4432 = vld [vmem:[%s9 + $0x38] sm:$0xff]
  %v4433 = vld [vmem:[%s9 + $0x40] sm:$0xff]
  %v4434 = vld [vmem:[%s9 + $0x48] sm:$0xff]
  %v4435 = vld [vmem:[#allocation3 + $0x1] sm:$0x1]
  %v4436 = vld [vmem:[#allocation3 + $0x9] sm:$0x1]
  %v4437 = vld [vmem:[#allocation3 + $0x11] sm:$0x1]
  %v4438 = vld [vmem:[#allocation3 + $0x19] sm:$0x1]
  %v4439 = vld [vmem:[#allocation3 + $0x21] sm:$0x1]
  %v4440 = vld [vmem:[#allocation3 + $0x29] sm:$0x1]
  %v4441 = vld [vmem:[#allocation3 + $0x31] sm:$0x1]
  %v4442 = vld [vmem:[#allocation3 + $0x39] sm:$0x1]
  %s4443 = scalar_lea.vmem %s9, 80
  %v4444 = vld [vmem:[%s4443] sm:$0xff]
  %v4445 = vld [vmem:[%s4443 + $0x8] sm:$0xff]
  %v4446 = vld [vmem:[%s4443 + $0x10] sm:$0xff]
  %v4447 = vld [vmem:[%s4443 + $0x18] sm:$0xff]
  %v4448 = vld [vmem:[%s4443 + $0x20] sm:$0xff]
  %v4449 = vld [vmem:[%s4443 + $0x28] sm:$0xff]
  %v4450 = vld [vmem:[%s4443 + $0x30] sm:$0xff]
  %v4451 = vld [vmem:[%s4443 + $0x38] sm:$0xff]
  %v4452 = vld [vmem:[%s4443 + $0x40] sm:$0xff]
  %v4453 = vld [vmem:[%s4443 + $0x48] sm:$0xff]
  %v4462 = vrot.slane %v4436, 7
  %vm4463 = vcmask 1041409
  %v4464 = vsel %vm4463, %v4462, %v4435
  %v4465 = vrot.slane %v4437, 6
  %vm4466 = vcmask 1042434
  %v4467 = vsel %vm4466, %v4465, %v4464
  %v4468 = vrot.slane %v4438, 5
  %vm4469 = vcmask 1043459
  %v4470 = vsel %vm4469, %v4468, %v4467
  %v4471 = vrot.slane %v4439, 4
  %vm4472 = vcmask 1044484
  %v4473 = vsel %vm4472, %v4471, %v4470
  %v4474 = vrot.slane %v4440, 3
  %vm4475 = vcmask 1045509
  %v4476 = vsel %vm4475, %v4474, %v4473
  %v4477 = vrot.slane %v4441, 2
  %vm4478 = vcmask 1046534
  %v4479 = vsel %vm4478, %v4477, %v4476
  %v4480 = vrot.slane %v4442, 1
  %vm4481 = vcmask 1047559
  %v4482 = vsel %vm4481, %v4480, %v4479
  %v4483 = vsel %vm4408, %v4482, 0
  %4485 = vmatprep.subr.mxu0 0.0
  %4486 = vmatpush1.msra.mxu0 %v4444
  %4487 = vmatprep.subr.mxu0 0.0
  %4488 = vmatpush1.msra.mxu0 %v4445
  %4489 = vmatprep.subr.mxu0 0.0
  %4490 = vmatpush1.msra.mxu0 %v4446
  %4491 = vmatprep.subr.mxu0 0.0
  %4492 = vmatpush1.msra.mxu0 %v4447
  %4493 = vmatprep.subr.mxu0 0.0
  %4494 = vmatpush1.msra.mxu0 %v4448
  %4495 = vmatprep.subr.mxu0 0.0
  %4496 = vmatpush1.msra.mxu0 %v4449
  %4497 = vmatprep.subr.mxu0 0.0
  %4498 = vmatpush1.msra.mxu0 %v4450
  %4499 = vmatprep.subr.mxu0 0.0
  %4500 = vmatpush1.msra.mxu0 %v4451
  %4501 = vmatprep.subr.mxu0 0.0
  %4502 = vmatpush1.msra.mxu0 %v4452
  %4503 = vmatprep.subr.mxu0 0.0
  %4504 = vmatpush1.msra.mxu0 %v4453
  %4505 = vmatprep.subr.mxu0 0.0
  %4506 = vmatpush1.msra.mxu0 0.0
  %4507 = vmatprep.subr.mxu0 0.0
  %4508 = vmatpush1.msra.mxu0 0.0
  %4509 = vmatprep.subr.mxu0 0.0
  %4510 = vmatpush1.msra.mxu0 0.0
  %4511 = vmatprep.subr.mxu0 0.0
  %4512 = vmatpush1.msra.mxu0 0.0
  %4513 = vmatprep.subr.mxu0 0.0
  %4514 = vmatpush1.msra.mxu0 0.0
  %4515 = vmatprep.subr.mxu0 0.0
  %4516 = vmatpush1.msra.mxu0 0.0
  %4517 = vmatprep.subr.mxu0 0.0
  %4518 = vmatpush1.msra.mxu0 0.0
  %4519 = vmatprep.subr.mxu0 0.0
  %4520 = vmatpush1.msra.mxu0 0.0
  %4521 = vmatprep.subr.mxu0 0.0
  %4522 = vmatpush1.msra.mxu0 0.0
  %4523 = vmatprep.subr.mxu0 0.0
  %4524 = vmatpush1.msra.mxu0 0.0
  %4525 = vmatprep.subr.mxu0 0.0
  %4526 = vmatpush1.msra.mxu0 0.0
  %4527 = vmatprep.subr.mxu0 0.0
  %4528 = vmatpush1.msra.mxu0 0.0
  %4529 = vmatprep.subr.mxu0 0.0
  %4530 = vmatpush1.msra.mxu0 0.0
  %4531 = vmatprep.subr.mxu0 0.0
  %4532 = vmatpush1.msra.mxu0 0.0
  %4533 = vmatprep.subr.mxu0 0.0
  %4534 = vmatpush1.msra.mxu0 0.0
  %4535 = vmatprep.subr.mxu0 0.0
  %4536 = vmatpush1.msra.mxu0 0.0
  %4537 = vmatprep.subr.mxu0 0.0
  %4538 = vmatpush1.msra.mxu0 0.0
  %4539 = vmatprep.subr.mxu0 0.0
  %4540 = vmatpush1.msra.mxu0 0.0
  %4541 = vmatprep.subr.mxu0 0.0
  %4542 = vmatpush1.msra.mxu0 0.0
  %4543 = vmatprep.subr.mxu0 0.0
  %4544 = vmatpush1.msra.mxu0 0.0
  %4545 = vmatprep.subr.mxu0 0.0
  %4546 = vmatpush1.msra.mxu0 0.0
  %4547 = vmatprep.subr.mxu0 0.0
  %4548 = vmatpush1.msra.mxu0 0.0
  %4549 = vmatprep.mubr.f32.mxu0 0.0
  %4550 = vmatmul.mubr.f32.gmra.mrb[0].mxu0 %v4483
  %v4551 = vpop.f32.mrb[0].mxu0
  %v4552 = vadd.f32 0.0, %v4551
  %v4553 = vpop.f32.mrb[0].mxu0
  %4554 = vdwg.mxu0
  %v4563 = vrot.slane %v4418, 7
  %v4564 = vsel %vm4463, %v4563, %v4417
  %v4565 = vrot.slane %v4419, 6
  %v4566 = vsel %vm4466, %v4565, %v4564
  %v4567 = vrot.slane %v4420, 5
  %v4568 = vsel %vm4469, %v4567, %v4566
  %v4569 = vrot.slane %v4421, 4
  %v4570 = vsel %vm4472, %v4569, %v4568
  %v4571 = vrot.slane %v4422, 3
  %v4572 = vsel %vm4475, %v4571, %v4570
  %v4573 = vrot.slane %v4423, 2
  %v4574 = vsel %vm4478, %v4573, %v4572
  %v4575 = vrot.slane %v4424, 1
  %v4576 = vsel %vm4481, %v4575, %v4574
  %v4577 = vsel %vm4408, %v4576, 0
  %4579 = vmatprep.subr.mxu0 0.0
  %4580 = vmatpush1.msra.mxu0 %v4425
  %4581 = vmatprep.subr.mxu0 0.0
  %4582 = vmatpush1.msra.mxu0 %v4426
  %4583 = vmatprep.subr.mxu0 0.0
  %4584 = vmatpush1.msra.mxu0 %v4427
  %4585 = vmatprep.subr.mxu0 0.0
  %4586 = vmatpush1.msra.mxu0 %v4428
  %4587 = vmatprep.subr.mxu0 0.0
  %4588 = vmatpush1.msra.mxu0 %v4429
  %4589 = vmatprep.subr.mxu0 0.0
  %4590 = vmatpush1.msra.mxu0 %v4430
  %4591 = vmatprep.subr.mxu0 0.0
  %4592 = vmatpush1.msra.mxu0 %v4431
  %4593 = vmatprep.subr.mxu0 0.0
  %4594 = vmatpush1.msra.mxu0 %v4432
  %4595 = vmatprep.subr.mxu0 0.0
  %4596 = vmatpush1.msra.mxu0 %v4433
  %4597 = vmatprep.subr.mxu0 0.0
  %4598 = vmatpush1.msra.mxu0 %v4434
  %4599 = vmatprep.subr.mxu0 0.0
  %4600 = vmatpush1.msra.mxu0 0.0
  %4601 = vmatprep.subr.mxu0 0.0
  %4602 = vmatpush1.msra.mxu0 0.0
  %4603 = vmatprep.subr.mxu0 0.0
  %4604 = vmatpush1.msra.mxu0 0.0
  %4605 = vmatprep.subr.mxu0 0.0
  %4606 = vmatpush1.msra.mxu0 0.0
  %4607 = vmatprep.subr.mxu0 0.0
  %4608 = vmatpush1.msra.mxu0 0.0
  %4609 = vmatprep.subr.mxu0 0.0
  %4610 = vmatpush1.msra.mxu0 0.0
  %4611 = vmatprep.subr.mxu0 0.0
  %4612 = vmatpush1.msra.mxu0 0.0
  %4613 = vmatprep.subr.mxu0 0.0
  %4614 = vmatpush1.msra.mxu0 0.0
  %4615 = vmatprep.subr.mxu0 0.0
  %4616 = vmatpush1.msra.mxu0 0.0
  %4617 = vmatprep.subr.mxu0 0.0
  %4618 = vmatpush1.msra.mxu0 0.0
  %4619 = vmatprep.subr.mxu0 0.0
  %4620 = vmatpush1.msra.mxu0 0.0
  %4621 = vmatprep.subr.mxu0 0.0
  %4622 = vmatpush1.msra.mxu0 0.0
  %4623 = vmatprep.subr.mxu0 0.0
  %4624 = vmatpush1.msra.mxu0 0.0
  %4625 = vmatprep.subr.mxu0 0.0
  %4626 = vmatpush1.msra.mxu0 0.0
  %4627 = vmatprep.subr.mxu0 0.0
  %4628 = vmatpush1.msra.mxu0 0.0
  %4629 = vmatprep.subr.mxu0 0.0
  %4630 = vmatpush1.msra.mxu0 0.0
  %4631 = vmatprep.subr.mxu0 0.0
  %4632 = vmatpush1.msra.mxu0 0.0
  %4633 = vmatprep.subr.mxu0 0.0
  %4634 = vmatpush1.msra.mxu0 0.0
  %4635 = vmatprep.subr.mxu0 0.0
  %4636 = vmatpush1.msra.mxu0 0.0
  %4637 = vmatprep.subr.mxu0 0.0
  %4638 = vmatpush1.msra.mxu0 0.0
  %4639 = vmatprep.subr.mxu0 0.0
  %4640 = vmatpush1.msra.mxu0 0.0
  %4641 = vmatprep.subr.mxu0 0.0
  %4642 = vmatpush1.msra.mxu0 0.0
  %4643 = vmatprep.mubr.f32.mxu0 0.0
  %4644 = vmatmul.mubr.f32.gmra.mrb[0].mxu0 %v4577
  %v4645 = vpop.f32.mrb[0].mxu0
  %v4646 = vadd.f32 %v4552, %v4645
  %v4647 = vpop.f32.mrb[0].mxu0
  %4648 = vdwg.mxu0
  %v4649 = vld [vmem:[#allocation3 + $0x2] sm:$0x1]
  %v4650 = vld [vmem:[#allocation3 + $0xa] sm:$0x1]
  %v4651 = vld [vmem:[#allocation3 + $0x12] sm:$0x1]
  %v4652 = vld [vmem:[#allocation3 + $0x1a] sm:$0x1]
  %v4653 = vld [vmem:[#allocation3 + $0x22] sm:$0x1]
  %v4654 = vld [vmem:[#allocation3 + $0x2a] sm:$0x1]
  %v4655 = vld [vmem:[#allocation3 + $0x32] sm:$0x1]
  %v4656 = vld [vmem:[#allocation3 + $0x3a] sm:$0x1]
  %s4657 = scalar_lea.vmem %s9, 160
  %v4658 = vld [vmem:[%s4657] sm:$0xff]
  %v4659 = vld [vmem:[%s4657 + $0x8] sm:$0xff]
  %v4660 = vld [vmem:[%s4657 + $0x10] sm:$0xff]
  %v4661 = vld [vmem:[%s4657 + $0x18] sm:$0xff]
  %v4662 = vld [vmem:[%s4657 + $0x20] sm:$0xff]
  %v4663 = vld [vmem:[%s4657 + $0x28] sm:$0xff]
  %v4664 = vld [vmem:[%s4657 + $0x30] sm:$0xff]
  %v4665 = vld [vmem:[%s4657 + $0x38] sm:$0xff]
  %v4666 = vld [vmem:[%s4657 + $0x40] sm:$0xff]
  %v4667 = vld [vmem:[%s4657 + $0x48] sm:$0xff]
  %v4676 = vrot.slane %v4650, 7
  %v4677 = vsel %vm4463, %v4676, %v4649
  %v4678 = vrot.slane %v4651, 6
  %v4679 = vsel %vm4466, %v4678, %v4677
  %v4680 = vrot.slane %v4652, 5
  %v4681 = vsel %vm4469, %v4680, %v4679
  %v4682 = vrot.slane %v4653, 4
  %v4683 = vsel %vm4472, %v4682, %v4681
  %v4684 = vrot.slane %v4654, 3
  %v4685 = vsel %vm4475, %v4684, %v4683
  %v4686 = vrot.slane %v4655, 2
  %v4687 = vsel %vm4478, %v4686, %v4685
  %v4688 = vrot.slane %v4656, 1
  %v4689 = vsel %vm4481, %v4688, %v4687
  %v4690 = vsel %vm4408, %v4689, 0
  %4692 = vmatprep.subr.mxu0 0.0
  %4693 = vmatpush1.msra.mxu0 %v4658
  %4694 = vmatprep.subr.mxu0 0.0
  %4695 = vmatpush1.msra.mxu0 %v4659
  %4696 = vmatprep.subr.mxu0 0.0
  %4697 = vmatpush1.msra.mxu0 %v4660
  %4698 = vmatprep.subr.mxu0 0.0
  %4699 = vmatpush1.msra.mxu0 %v4661
  %4700 = vmatprep.subr.mxu0 0.0
  %4701 = vmatpush1.msra.mxu0 %v4662
  %4702 = vmatprep.subr.mxu0 0.0
  %4703 = vmatpush1.msra.mxu0 %v4663
  %4704 = vmatprep.subr.mxu0 0.0
  %4705 = vmatpush1.msra.mxu0 %v4664
  %4706 = vmatprep.subr.mxu0 0.0
  %4707 = vmatpush1.msra.mxu0 %v4665
  %4708 = vmatprep.subr.mxu0 0.0
  %4709 = vmatpush1.msra.mxu0 %v4666
  %4710 = vmatprep.subr.mxu0 0.0
  %4711 = vmatpush1.msra.mxu0 %v4667
  %4712 = vmatprep.subr.mxu0 0.0
  %4713 = vmatpush1.msra.mxu0 0.0
  %4714 = vmatprep.subr.mxu0 0.0
  %4715 = vmatpush1.msra.mxu0 0.0
  %4716 = vmatprep.subr.mxu0 0.0
  %4717 = vmatpush1.msra.mxu0 0.0
  %4718 = vmatprep.subr.mxu0 0.0
  %4719 = vmatpush1.msra.mxu0 0.0
  %4720 = vmatprep.subr.mxu0 0.0
  %4721 = vmatpush1.msra.mxu0 0.0
  %4722 = vmatprep.subr.mxu0 0.0
  %4723 = vmatpush1.msra.mxu0 0.0
  %4724 = vmatprep.subr.mxu0 0.0
  %4725 = vmatpush1.msra.mxu0 0.0
  %4726 = vmatprep.subr.mxu0 0.0
  %4727 = vmatpush1.msra.mxu0 0.0
  %4728 = vmatprep.subr.mxu0 0.0
  %4729 = vmatpush1.msra.mxu0 0.0
  %4730 = vmatprep.subr.mxu0 0.0
  %4731 = vmatpush1.msra.mxu0 0.0
  %4732 = vmatprep.subr.mxu0 0.0
  %4733 = vmatpush1.msra.mxu0 0.0
  %4734 = vmatprep.subr.mxu0 0.0
  %4735 = vmatpush1.msra.mxu0 0.0
  %4736 = vmatprep.subr.mxu0 0.0
  %4737 = vmatpush1.msra.mxu0 0.0
  %4738 = vmatprep.subr.mxu0 0.0
  %4739 = vmatpush1.msra.mxu0 0.0
  %4740 = vmatprep.subr.mxu0 0.0
  %4741 = vmatpush1.msra.mxu0 0.0
  %4742 = vmatprep.subr.mxu0 0.0
  %4743 = vmatpush1.msra.mxu0 0.0
  %4744 = vmatprep.subr.mxu0 0.0
  %4745 = vmatpush1.msra.mxu0 0.0
  %4746 = vmatprep.subr.mxu0 0.0
  %4747 = vmatpush1.msra.mxu0 0.0
  %4748 = vmatprep.subr.mxu0 0.0
  %4749 = vmatpush1.msra.mxu0 0.0
  %4750 = vmatprep.subr.mxu0 0.0
  %4751 = vmatpush1.msra.mxu0 0.0
  %4752 = vmatprep.subr.mxu0 0.0
  %4753 = vmatpush1.msra.mxu0 0.0
  %4754 = vmatprep.subr.mxu0 0.0
  %4755 = vmatpush1.msra.mxu0 0.0
  %4756 = vmatprep.mubr.f32.mxu0 0.0
  %4757 = vmatmul.mubr.f32.gmra.mrb[0].mxu0 %v4690
  %v4758 = vpop.f32.mrb[0].mxu0
  %v4759 = vadd.f32 0.0, %v4758
  %v4760 = vpop.f32.mrb[0].mxu0
  %4761 = vdwg.mxu0
  %v4762 = vadd.f32 %v4646, %v4759
  %v4763 = vld [vmem:[#allocation3 + $0x3] sm:$0x1]
  %v4764 = vld [vmem:[#allocation3 + $0xb] sm:$0x1]
  %v4765 = vld [vmem:[#allocation3 + $0x13] sm:$0x1]
  %v4766 = vld [vmem:[#allocation3 + $0x1b] sm:$0x1]
  %v4767 = vld [vmem:[#allocation3 + $0x23] sm:$0x1]
  %v4768 = vld [vmem:[#allocation3 + $0x2b] sm:$0x1]
  %v4769 = vld [vmem:[#allocation3 + $0x33] sm:$0x1]
  %v4770 = vld [vmem:[#allocation3 + $0x3b] sm:$0x1]
  %s4771 = scalar_lea.vmem %s9, 240
  %v4772 = vld [vmem:[%s4771] sm:$0xff]
  %v4773 = vld [vmem:[%s4771 + $0x8] sm:$0xff]
  %v4774 = vld [vmem:[%s4771 + $0x10] sm:$0xff]
  %v4775 = vld [vmem:[%s4771 + $0x18] sm:$0xff]
  %v4776 = vld [vmem:[%s4771 + $0x20] sm:$0xff]
  %v4777 = vld [vmem:[%s4771 + $0x28] sm:$0xff]
  %v4778 = vld [vmem:[%s4771 + $0x30] sm:$0xff]
  %v4779 = vld [vmem:[%s4771 + $0x38] sm:$0xff]
  %v4780 = vld [vmem:[%s4771 + $0x40] sm:$0xff]
  %v4781 = vld [vmem:[%s4771 + $0x48] sm:$0xff]
  %v4790 = vrot.slane %v4764, 7
  %v4791 = vsel %vm4463, %v4790, %v4763
  %v4792 = vrot.slane %v4765, 6
  %v4793 = vsel %vm4466, %v4792, %v4791
  %v4794 = vrot.slane %v4766, 5
  %v4795 = vsel %vm4469, %v4794, %v4793
  %v4796 = vrot.slane %v4767, 4
  %v4797 = vsel %vm4472, %v4796, %v4795
  %v4798 = vrot.slane %v4768, 3
  %v4799 = vsel %vm4475, %v4798, %v4797
  %v4800 = vrot.slane %v4769, 2
  %v4801 = vsel %vm4478, %v4800, %v4799
  %v4802 = vrot.slane %v4770, 1
  %v4803 = vsel %vm4481, %v4802, %v4801
  %v4804 = vsel %vm4408, %v4803, 0
  %4806 = vmatprep.subr.mxu0 0.0
  %4807 = vmatpush1.msra.mxu0 %v4772
  %4808 = vmatprep.subr.mxu0 0.0
  %4809 = vmatpush1.msra.mxu0 %v4773
  %4810 = vmatprep.subr.mxu0 0.0
  %4811 = vmatpush1.msra.mxu0 %v4774
  %4812 = vmatprep.subr.mxu0 0.0
  %4813 = vmatpush1.msra.mxu0 %v4775
  %4814 = vmatprep.subr.mxu0 0.0
  %4815 = vmatpush1.msra.mxu0 %v4776
  %4816 = vmatprep.subr.mxu0 0.0
  %4817 = vmatpush1.msra.mxu0 %v4777
  %4818 = vmatprep.subr.mxu0 0.0
  %4819 = vmatpush1.msra.mxu0 %v4778
  %4820 = vmatprep.subr.mxu0 0.0
  %4821 = vmatpush1.msra.mxu0 %v4779
  %4822 = vmatprep.subr.mxu0 0.0
  %4823 = vmatpush1.msra.mxu0 %v4780
  %4824 = vmatprep.subr.mxu0 0.0
  %4825 = vmatpush1.msra.mxu0 %v4781
  %4826 = vmatprep.subr.mxu0 0.0
  %4827 = vmatpush1.msra.mxu0 0.0
  %4828 = vmatprep.subr.mxu0 0.0
  %4829 = vmatpush1.msra.mxu0 0.0
  %4830 = vmatprep.subr.mxu0 0.0
  %4831 = vmatpush1.msra.mxu0 0.0
  %4832 = vmatprep.subr.mxu0 0.0
  %4833 = vmatpush1.msra.mxu0 0.0
  %4834 = vmatprep.subr.mxu0 0.0
  %4835 = vmatpush1.msra.mxu0 0.0
  %4836 = vmatprep.subr.mxu0 0.0
  %4837 = vmatpush1.msra.mxu0 0.0
  %4838 = vmatprep.subr.mxu0 0.0
  %4839 = vmatpush1.msra.mxu0 0.0
  %4840 = vmatprep.subr.mxu0 0.0
  %4841 = vmatpush1.msra.mxu0 0.0
  %4842 = vmatprep.subr.mxu0 0.0
  %4843 = vmatpush1.msra.mxu0 0.0
  %4844 = vmatprep.subr.mxu0 0.0
  %4845 = vmatpush1.msra.mxu0 0.0
  %4846 = vmatprep.subr.mxu0 0.0
  %4847 = vmatpush1.msra.mxu0 0.0
  %4848 = vmatprep.subr.mxu0 0.0
  %4849 = vmatpush1.msra.mxu0 0.0
  %4850 = vmatprep.subr.mxu0 0.0
  %4851 = vmatpush1.msra.mxu0 0.0
  %4852 = vmatprep.subr.mxu0 0.0
  %4853 = vmatpush1.msra.mxu0 0.0
  %4854 = vmatprep.subr.mxu0 0.0
  %4855 = vmatpush1.msra.mxu0 0.0
  %4856 = vmatprep.subr.mxu0 0.0
  %4857 = vmatpush1.msra.mxu0 0.0
  %4858 = vmatprep.subr.mxu0 0.0
  %4859 = vmatpush1.msra.mxu0 0.0
  %4860 = vmatprep.subr.mxu0 0.0
  %4861 = vmatpush1.msra.mxu0 0.0
  %4862 = vmatprep.subr.mxu0 0.0
  %4863 = vmatpush1.msra.mxu0 0.0
  %4864 = vmatprep.subr.mxu0 0.0
  %4865 = vmatpush1.msra.mxu0 0.0
  %4866 = vmatprep.subr.mxu0 0.0
  %4867 = vmatpush1.msra.mxu0 0.0
  %4868 = vmatprep.subr.mxu0 0.0
  %4869 = vmatpush1.msra.mxu0 0.0
  %4870 = vmatprep.mubr.f32.mxu0 0.0
  %4871 = vmatmul.mubr.f32.gmra.mrb[0].mxu0 %v4804
  %v4872 = vpop.f32.mrb[0].mxu0
  %v4873 = vadd.f32 0.0, %v4872
  %v4874 = vpop.f32.mrb[0].mxu0
  %4875 = vdwg.mxu0
  %v4876 = vadd.f32 %v4762, %v4873
  %v4877 = vld [vmem:[%s10] sm:$0x1]
  %v4879 = vlaneseq
  %v4880 = vshrl.u32 %v4879, 7
  %v4881 = vsub.s32 0, %v4880
  %v4882 = vrot.slane %v4877, %v4881
  %v4884 = vadd.f32 %v4876, %v4882
  %v4885 = vmax.f32 %v4884, 0.0
  %v4886 = vld [vmem:[%s11] sm:$0xff]
  %v4887 = vld [vmem:[%s11 + $0x8] sm:$0xff]
  %v4888 = vld [vmem:[%s11 + $0x10] sm:$0xff]
  %v4889 = vld [vmem:[%s11 + $0x18] sm:$0xff]
  %v4890 = vld [vmem:[%s11 + $0x20] sm:$0xff]
  %v4891 = vld [vmem:[%s11 + $0x28] sm:$0xff]
  %v4892 = vld [vmem:[%s11 + $0x30] sm:$0x3]
  %v4893 = vld [vmem:[%s12] sm:$0x1]
  %v4895 = vlaneseq
  %v4896 = vshrl.u32 %v4895, 7
  %v4897 = vsub.s32 0, %v4896
  %v4898 = vrot.slane %v4893, %v4897
  %vm4900 = vcmask 408576
  %v4902 = vsel %vm4900, %v4885, 0
  %vm4904 = vcmask 1041408
  %v4906 = vsel %vm4904, %v4892, 0
  %4908 = vmatprep.subr.mxu0 0.0
  %4909 = vmatpush1.msra.mxu0 %v4886
  %4910 = vmatprep.subr.mxu0 0.0
  %4911 = vmatpush1.msra.mxu0 %v4887
  %4912 = vmatprep.subr.mxu0 0.0
  %4913 = vmatpush1.msra.mxu0 %v4888
  %4914 = vmatprep.subr.mxu0 0.0
  %4915 = vmatpush1.msra.mxu0 %v4889
  %4916 = vmatprep.subr.mxu0 0.0
  %4917 = vmatpush1.msra.mxu0 %v4890
  %4918 = vmatprep.subr.mxu0 0.0
  %4919 = vmatpush1.msra.mxu0 %v4891
  %4920 = vmatprep.subr.mxu0 0.0
  %4921 = vmatpush1.msra.mxu0 %v4906
  %4922 = vmatprep.subr.mxu0 0.0
  %4923 = vmatpush1.msra.mxu0 0.0
  %4924 = vmatprep.subr.mxu0 0.0
  %4925 = vmatpush1.msra.mxu0 0.0
  %4926 = vmatprep.subr.mxu0 0.0
  %4927 = vmatpush1.msra.mxu0 0.0
  %4928 = vmatprep.subr.mxu0 0.0
  %4929 = vmatpush1.msra.mxu0 0.0
  %4930 = vmatprep.subr.mxu0 0.0
  %4931 = vmatpush1.msra.mxu0 0.0
  %4932 = vmatprep.subr.mxu0 0.0
  %4933 = vmatpush1.msra.mxu0 0.0
  %4934 = vmatprep.subr.mxu0 0.0
  %4935 = vmatpush1.msra.mxu0 0.0
  %4936 = vmatprep.subr.mxu0 0.0
  %4937 = vmatpush1.msra.mxu0 0.0
  %4938 = vmatprep.subr.mxu0 0.0
  %4939 = vmatpush1.msra.mxu0 0.0
  %4940 = vmatprep.subr.mxu0 0.0
  %4941 = vmatpush1.msra.mxu0 0.0
  %4942 = vmatprep.subr.mxu0 0.0
  %4943 = vmatpush1.msra.mxu0 0.0
  %4944 = vmatprep.subr.mxu0 0.0
  %4945 = vmatpush1.msra.mxu0 0.0
  %4946 = vmatprep.subr.mxu0 0.0
  %4947 = vmatpush1.msra.mxu0 0.0
  %4948 = vmatprep.subr.mxu0 0.0
  %4949 = vmatpush1.msra.mxu0 0.0
  %4950 = vmatprep.subr.mxu0 0.0
  %4951 = vmatpush1.msra.mxu0 0.0
  %4952 = vmatprep.subr.mxu0 0.0
  %4953 = vmatpush1.msra.mxu0 0.0
  %4954 = vmatprep.subr.mxu0 0.0
  %4955 = vmatpush1.msra.mxu0 0.0
  %4956 = vmatprep.subr.mxu0 0.0
  %4957 = vmatpush1.msra.mxu0 0.0
  %4958 = vmatprep.subr.mxu0 0.0
  %4959 = vmatpush1.msra.mxu0 0.0
  %4960 = vmatprep.subr.mxu0 0.0
  %4961 = vmatpush1.msra.mxu0 0.0
  %4962 = vmatprep.subr.mxu0 0.0
  %4963 = vmatpush1.msra.mxu0 0.0
  %4964 = vmatprep.subr.mxu0 0.0
  %4965 = vmatpush1.msra.mxu0 0.0
  %4966 = vmatprep.subr.mxu0 0.0
  %4967 = vmatpush1.msra.mxu0 0.0
  %4968 = vmatprep.subr.mxu0 0.0
  %4969 = vmatpush1.msra.mxu0 0.0
  %4970 = vmatprep.subr.mxu0 0.0
  %4971 = vmatpush1.msra.mxu0 0.0
  %4972 = vmatprep.mubr.f32.mxu0 0.0
  %4973 = vmatmul.mubr.f32.gmra.mrb[0].mxu0 %v4902
  %v4974 = vpop.f32.mrb[0].mxu0
  %v4975 = vadd.f32 %v4898, %v4974
  %v4976 = vpop.f32.mrb[0].mxu0
  %4977 = vdwg.mxu0
  %vm4978 = vcmask 80896
  %v4979 = vsel %vm4978, %v4975, -inf
  %4980 = vmax.xlane.f32.xlu0 %v4979
  %v4981 = vpop.xlane.xlu0 %4980
  %v4982 = vsub.f32 %v4975, %v4981
  %v4983 = vmul.f32 %v4982, 1.442695
  %v4984 = vpow.pop %v4983
  %v4985 = vsel %vm4978, %v4984, 0.0
  %4986 = vadd.xlane.f32.xlu0 %v4985
  %v4987 = vpop.xlane.xlu0 %4986
  %v4988 = vlog2.pop %v4987
  %v4989 = vmul.f32 %v4988, 0.6931472
  %v4990 = vsub.f32 %v4982, %v4989
  %4991 = vst.msk [vmem:[%s13] sm:$0xff] %vm4978, %v4990
  // Predicated region
  $region54: #{mnist_cnn_forward.1} parent=0 // pred_check
    _
  $region55: #{mnist_cnn_forward.1} parent=0 // pred_check_branch
    %4993 = sbr.rel (0) target = $region57
  $region56: #{mnist_cnn_forward.1} parent=0 // pred_region
    _
  $region57: #{mnist_cnn_forward.1} parent=0 // pred_fallthru
    _
  // Predicated region
  $region58: #{mnist_cnn_forward.1} parent=0 // pred_check
    _
  $region59: #{mnist_cnn_forward.1} parent=0 // pred_check_branch
    %4995 = sbr.rel (0) target = $region61
  $region60: #{mnist_cnn_forward.1} parent=0 // pred_region
    _
  $region61: #{mnist_cnn_forward.1} parent=0 // pred_fallthru
    _

</llo_original>
